<compile_context>
chip_gen: v5e
topology: v5e:2x2
jax: 0.10.0
libtpu: 0.0.40
codegen_flags: <defaults>
</compile_context>

<pallas_src>
import math

import jax
import jax.numpy as jnp
import numpy as np
from jax.experimental import pallas as pl
from jax.experimental.pallas import tpu as pltpu

# ----------------------------- configuration --------------------------------
EMBED_DIM = 32          # args.decoder_embed_dim
NUM_HEADS = 4           # args.decoder_attention_heads
HEAD_DIM = EMBED_DIM // NUM_HEADS
FFN_DIM = 64            # args.decoder_ffn_embed_dim
DEC_LEN = 8             # decoder seq_len (T)
ENC_LEN = 16            # encoder src_len (S)
BATCH = 2
ENC_PROJ_LEN = 8        # args.encoder_projected_length
DEC_PROJ_LEN = 8        # args.decoder_projected_length (buffer unused in fwd)
LN_EPS = 1e-5


# --------------------------- in-kernel helpers -------------------------------
def _layer_norm(y, g, b):
    mean = jnp.mean(y, axis=-1, keepdims=True)
    var = jnp.mean(jnp.square(y - mean), axis=-1, keepdims=True)
    return (y - mean) * jax.lax.rsqrt(var + LN_EPS) * g + b


def _softmax_last(s):
    m = jnp.max(s, axis=-1, keepdims=True)
    e = jnp.exp(s - m)
    return e / jnp.sum(e, axis=-1, keepdims=True)


def _mha(q, k, v, need_weights):
    """Multi-head attention on 2-D (tokens, E) tiles.

    q is already scaled by 1/sqrt(head_dim). Heads are static column slices
    (tiny tiles; per-head 2D dots are MXU-granularity-bound anyway).
    Returns (context (Tq, E), head-averaged probs (Tq, Tk) or None).
    """
    ctx = []
    probs_sum = None
    for h in range(NUM_HEADS):
        sl = slice(h * HEAD_DIM, (h + 1) * HEAD_DIM)
        s = jnp.dot(q[:, sl], k[:, sl].T, preferred_element_type=jnp.float32)
        p = _softmax_last(s)
        if need_weights:
            probs_sum = p if probs_sum is None else probs_sum + p
        ctx.append(jnp.dot(p, v[:, sl], preferred_element_type=jnp.float32))
    ctx = jnp.concatenate(ctx, axis=-1)
    if need_weights:
        return ctx, probs_sum * (1.0 / NUM_HEADS)
    return ctx, None


# ------------------------------- fused kernel ---------------------------------
def _fused_decoder_layer_kernel(
        x_ref, enc_ref, pe_ref,
        sa_wqkv_ref, sa_bqkv_ref, sa_wo_ref, sa_bo_ref, sa_g_ref, sa_b_ref,
        ea_wq_ref, ea_bq_ref, ea_wkv_ref, ea_bkv_ref, ea_wo_ref, ea_bo_ref,
        ea_g_ref, ea_b_ref,
        ff_w1_ref, ff_b1_ref, ff_w2_ref, ff_b2_ref, ff_g_ref, ff_b_ref,
        o_ref, attn_ref):
    E = EMBED_DIM
    head_scale = 1.0 / math.sqrt(HEAD_DIM)
    pack_scale = 1.0 / math.sqrt(EMBED_DIM)

    # Hoist all weight loads out of the batch loop (single VMEM read each).
    pe = pe_ref[...]
    sa_wqkv = sa_wqkv_ref[...]; sa_bqkv = sa_bqkv_ref[...]
    sa_wo = sa_wo_ref[...]; sa_bo = sa_bo_ref[...]
    sa_g = sa_g_ref[...]; sa_b = sa_b_ref[...]
    ea_wq = ea_wq_ref[...]; ea_bq = ea_bq_ref[...]
    ea_wkv = ea_wkv_ref[...]; ea_bkv = ea_bkv_ref[...]
    ea_wo = ea_wo_ref[...]; ea_bo = ea_bo_ref[...]
    ea_g = ea_g_ref[...]; ea_b = ea_b_ref[...]
    ff_w1 = ff_w1_ref[...]; ff_b1 = ff_b1_ref[...]
    ff_w2 = ff_w2_ref[...]; ff_b2 = ff_b2_ref[...]
    ff_g = ff_g_ref[...]; ff_b = ff_b_ref[...]

    # Whole batch handled in one invocation; B is tiny -> static unroll.
    for b in range(BATCH):
        x = x_ref[:, b, :]          # (T, E), native T-major layout
        enc = enc_ref[:, b, :]      # (S, E)

        # ---- self-attention sublayer (post-LayerNorm) ----
        qkv = jnp.dot(x, sa_wqkv, preferred_element_type=jnp.float32) + sa_bqkv
        q = qkv[:, :E] * head_scale
        k = qkv[:, E:2 * E]
        v = qkv[:, 2 * E:]
        ctx, _ = _mha(q, k, v, need_weights=False)
        attn_out = jnp.dot(ctx, sa_wo, preferred_element_type=jnp.float32) + sa_bo
        x = _layer_norm(x + attn_out, sa_g, sa_b)

        # ---- encoder attention sublayer (pack via sinusoidal queries) ----
        kv = jnp.dot(enc, ea_wkv, preferred_element_type=jnp.float32) + ea_bkv
        k = kv[:, :E]
        v = kv[:, E:]
        pack_s = jnp.dot(pe, k.T, preferred_element_type=jnp.float32) * pack_scale
        pack_w = _softmax_last(pack_s)                       # (Lk, S)
        kc = jnp.dot(pack_w, k, preferred_element_type=jnp.float32)   # (Lk, E)
        vc = jnp.dot(pack_w, v, preferred_element_type=jnp.float32)
        q = (jnp.dot(x, ea_wq, preferred_element_type=jnp.float32) + ea_bq) * head_scale
        ctx, avg_p = _mha(q, kc, vc, need_weights=True)
        attn_out = jnp.dot(ctx, ea_wo, preferred_element_type=jnp.float32) + ea_bo
        x = _layer_norm(x + attn_out, ea_g, ea_b)
        attn_ref[b] = avg_p                                  # (T, Lk)

        # ---- feed-forward sublayer ----
        h = jnp.maximum(jnp.dot(x, ff_w1, preferred_element_type=jnp.float32) + ff_b1, 0.0)
        y = jnp.dot(h, ff_w2, preferred_element_type=jnp.float32) + ff_b2
        o_ref[:, b, :] = _layer_norm(x + y, ff_g, ff_b)


# --------------------------- pallas_call wrapper ------------------------------
_PACKED_KEYS = (
    "pe",
    "sa_wqkv", "sa_bqkv", "sa_wo", "sa_bo", "sa_g", "sa_b",
    "ea_wq", "ea_bq", "ea_wkv", "ea_bkv", "ea_wo", "ea_bo", "ea_g", "ea_b",
    "ff_w1", "ff_b1", "ff_w2", "ff_b2", "ff_g", "ff_b",
)


def pack_params(params):
    """One-time setup: fuse QKV / KV weights and pre-transpose to (in, out)."""
    sa, ea, ff = params["self_attn"], params["enc_attn"], params["ffn"]
    return dict(
        pe=params["enc_pos"],
        sa_wqkv=jnp.concatenate([sa["wq"].T, sa["wk"].T, sa["wv"].T], axis=1),  # (E, 3E)
        sa_bqkv=jnp.concatenate([sa["bq"], sa["bk"], sa["bv"]], axis=1),        # (1, 3E)
        sa_wo=sa["wo"].T, sa_bo=sa["bo"], sa_g=sa["ln_g"], sa_b=sa["ln_b"],
        ea_wq=ea["wq"].T, ea_bq=ea["bq"],
        ea_wkv=jnp.concatenate([ea["wk"].T, ea["wv"].T], axis=1),               # (E, 2E)
        ea_bkv=jnp.concatenate([ea["bk"], ea["bv"]], axis=1),                   # (1, 2E)
        ea_wo=ea["wo"].T, ea_bo=ea["bo"], ea_g=ea["ln_g"], ea_b=ea["ln_b"],
        ff_w1=ff["w1"].T, ff_b1=ff["b1"],
        ff_w2=ff["w2"].T, ff_b2=ff["b2"],
        ff_g=ff["ln_g"], ff_b=ff["ln_b"],
    )


def moon_decoder_layer_forward(packed, x, encoder_out):
    """x: (T, B, E), encoder_out: (S, B, E)  ->  (x (T,B,E), attn (B,T,Lk), None)."""
    T, B, E = x.shape
    Lk = packed["pe"].shape[0]
    weights = [packed[k] for k in _PACKED_KEYS]
    vmem = pl.BlockSpec(memory_space=pltpu.MemorySpace.VMEM)
    out, attn = pl.pallas_call(
        _fused_decoder_layer_kernel,
        out_shape=(jax.ShapeDtypeStruct((T, B, E), jnp.float32),
                   jax.ShapeDtypeStruct((B, T, Lk), jnp.float32)),
        in_specs=[vmem] * (2 + len(weights)),
        out_specs=(vmem, vmem),
    )(x, encoder_out, *weights)
    return out, attn, None


# ------------------------- parameters / buffers -------------------------------
def sinusoidal_positional_embedding(length, embed_dim):
    half_dim = embed_dim // 2
    emb = math.log(10000) / (half_dim - 1)
    freqs = jnp.exp(jnp.arange(half_dim, dtype=jnp.float32) * -emb)
    ang = jnp.arange(length, dtype=jnp.float32)[:, None] * freqs[None, :]
    pe = jnp.concatenate([jnp.sin(ang), jnp.cos(ang)], axis=1).reshape(length, -1)
    if embed_dim % 2 == 1:
        pe = jnp.concatenate([pe, jnp.zeros((length, 1), jnp.float32)], axis=1)
    return pe


def _linear(key, out_dim, in_dim):
    kw, kb = jax.random.split(key)
    bound = 1.0 / math.sqrt(in_dim)
    w = jax.random.uniform(kw, (out_dim, in_dim), jnp.float32, -bound, bound)
    b = jax.random.uniform(kb, (1, out_dim), jnp.float32, -bound, bound)
    return w, b


def init_params(key):
    ks = jax.random.split(key, 4)

    def attn_params(k4):
        k = jax.random.split(k4, 4)
        wq, bq = _linear(k[0], EMBED_DIM, EMBED_DIM)
        wk, bk = _linear(k[1], EMBED_DIM, EMBED_DIM)
        wv, bv = _linear(k[2], EMBED_DIM, EMBED_DIM)
        wo, bo = _linear(k[3], EMBED_DIM, EMBED_DIM)
        return dict(wq=wq, bq=bq, wk=wk, bk=bk, wv=wv, bv=bv, wo=wo, bo=bo,
                    ln_g=jnp.ones((1, EMBED_DIM), jnp.float32),
                    ln_b=jnp.zeros((1, EMBED_DIM), jnp.float32))

    w1, b1 = _linear(ks[2], FFN_DIM, EMBED_DIM)
    w2, b2 = _linear(ks[3], EMBED_DIM, FFN_DIM)
    return dict(
        self_attn=attn_params(ks[0]),
        enc_attn=attn_params(ks[1]),
        ffn=dict(w1=w1, b1=b1, w2=w2, b2=b2,
                 ln_g=jnp.ones((1, EMBED_DIM), jnp.float32),
                 ln_b=jnp.zeros((1, EMBED_DIM), jnp.float32)),
        enc_pos=sinusoidal_positional_embedding(ENC_PROJ_LEN, EMBED_DIM),
        dec_pos=sinusoidal_positional_embedding(DEC_PROJ_LEN, EMBED_DIM),
    )


# --------------------------- pure-JAX reference -------------------------------
def _ref_ln(y, g, b):
    mean = jnp.mean(y, axis=-1, keepdims=True)
    var = jnp.mean(jnp.square(y - mean), axis=-1, keepdims=True)
    return (y - mean) * jax.lax.rsqrt(var + LN_EPS) * g + b


def _ref_mha(q, k, v):
    ctx, ps = [], []
    for h in range(NUM_HEADS):
        sl = slice(h * HEAD_DIM, (h + 1) * HEAD_DIM)
        p = jax.nn.softmax(q[:, sl] @ k[:, sl].T, axis=-1)
        ps.append(p)
        ctx.append(p @ v[:, sl])
    return jnp.concatenate(ctx, -1), sum(ps) / NUM_HEADS


def reference_forward(params, x_tbe, enc_sbe):
    sa, ea, ff = params["self_attn"], params["enc_attn"], params["ffn"]
    pe = params["enc_pos"]
    scale = 1.0 / math.sqrt(HEAD_DIM)
    outs, attns = [], []
    for b in range(x_tbe.shape[1]):
        x = x_tbe[:, b, :]
        enc = enc_sbe[:, b, :]
        q = (x @ sa["wq"].T + sa["bq"]) * scale
        ctx, _ = _ref_mha(q, x @ sa["wk"].T + sa["bk"], x @ sa["wv"].T + sa["bv"])
        x = _ref_ln(x + ctx @ sa["wo"].T + sa["bo"], sa["ln_g"], sa["ln_b"])
        k = enc @ ea["wk"].T + ea["bk"]
        v = enc @ ea["wv"].T + ea["bv"]
        pw = jax.nn.softmax(pe @ k.T / math.sqrt(EMBED_DIM), axis=-1)
        q = (x @ ea["wq"].T + ea["bq"]) * scale
        ctx, ap = _ref_mha(q, pw @ k, pw @ v)
        x = _ref_ln(x + ctx @ ea["wo"].T + ea["bo"], ea["ln_g"], ea["ln_b"])
        h = jnp.maximum(x @ ff["w1"].T + ff["b1"], 0.0)
        x = _ref_ln(x + h @ ff["w2"].T + ff["b2"], ff["ln_g"], ff["ln_b"])
        outs.append(x)
        attns.append(ap)
    return jnp.stack(outs, axis=1), jnp.stack(attns, axis=0)


# ---------------------------------- main --------------------------------------
if __name__ == "__main__":
    key = jax.random.PRNGKey(0)
    kx, kenc, kp = jax.random.split(key, 3)
    x = jax.random.normal(kx, (DEC_LEN, BATCH, EMBED_DIM), jnp.float32)
    encoder_out = jax.random.normal(kenc, (ENC_LEN, BATCH, EMBED_DIM), jnp.float32)
    params = init_params(kp)
    packed = pack_params(params)   # one-time weight fusion / pre-transpose

    out, attn, _ = moon_decoder_layer_forward(packed, x, encoder_out)
    out = jax.block_until_ready(out)
    attn = jax.block_until_ready(attn)

    ref_out, ref_attn = reference_forward(params, x, encoder_out)
    np.testing.assert_allclose(np.asarray(out), np.asarray(ref_out),
                               rtol=2e-2, atol=2e-2)
    np.testing.assert_allclose(np.asarray(attn), np.asarray(ref_attn),
                               rtol=2e-2, atol=2e-2)
    print("KERNEL_OK")
</pallas_src>

<mosaic_0001>
module attributes {stable_mosaic.version = 11 : i64} {
  func.func @_fused_decoder_layer_kernel(%arg0: memref<8x2x32xf32, #tpu.memory_space<vmem>>, %arg1: memref<16x2x32xf32, #tpu.memory_space<vmem>>, %arg2: memref<8x32xf32, #tpu.memory_space<vmem>>, %arg3: memref<32x96xf32, #tpu.memory_space<vmem>>, %arg4: memref<1x96xf32, #tpu.memory_space<vmem>>, %arg5: memref<32x32xf32, #tpu.memory_space<vmem>>, %arg6: memref<1x32xf32, #tpu.memory_space<vmem>>, %arg7: memref<1x32xf32, #tpu.memory_space<vmem>>, %arg8: memref<1x32xf32, #tpu.memory_space<vmem>>, %arg9: memref<32x32xf32, #tpu.memory_space<vmem>>, %arg10: memref<1x32xf32, #tpu.memory_space<vmem>>, %arg11: memref<32x64xf32, #tpu.memory_space<vmem>>, %arg12: memref<1x64xf32, #tpu.memory_space<vmem>>, %arg13: memref<32x32xf32, #tpu.memory_space<vmem>>, %arg14: memref<1x32xf32, #tpu.memory_space<vmem>>, %arg15: memref<1x32xf32, #tpu.memory_space<vmem>>, %arg16: memref<1x32xf32, #tpu.memory_space<vmem>>, %arg17: memref<32x64xf32, #tpu.memory_space<vmem>>, %arg18: memref<1x64xf32, #tpu.memory_space<vmem>>, %arg19: memref<64x32xf32, #tpu.memory_space<vmem>>, %arg20: memref<1x32xf32, #tpu.memory_space<vmem>>, %arg21: memref<1x32xf32, #tpu.memory_space<vmem>>, %arg22: memref<1x32xf32, #tpu.memory_space<vmem>>, %arg23: memref<8x2x32xf32, #tpu.memory_space<vmem>>, %arg24: memref<2x8x8xf32, #tpu.memory_space<vmem>>) attributes {dimension_semantics = [], scalar_prefetch = 0 : i64, scratch_operands = 0 : i64, tpu.core_type = #tpu.core_type<tc>} {
    %c0 = arith.constant 0 : index
    %c0_0 = arith.constant 0 : index
    %0 = vector.load %arg2[%c0, %c0_0] : memref<8x32xf32, #tpu.memory_space<vmem>>, vector<8x32xf32>
    %c0_1 = arith.constant 0 : index
    %c0_2 = arith.constant 0 : index
    %1 = vector.load %arg3[%c0_1, %c0_2] : memref<32x96xf32, #tpu.memory_space<vmem>>, vector<32x96xf32>
    %c0_3 = arith.constant 0 : index
    %c0_4 = arith.constant 0 : index
    %2 = vector.load %arg4[%c0_3, %c0_4] : memref<1x96xf32, #tpu.memory_space<vmem>>, vector<1x96xf32>
    %c0_5 = arith.constant 0 : index
    %c0_6 = arith.constant 0 : index
    %3 = vector.load %arg5[%c0_5, %c0_6] : memref<32x32xf32, #tpu.memory_space<vmem>>, vector<32x32xf32>
    %c0_7 = arith.constant 0 : index
    %c0_8 = arith.constant 0 : index
    %4 = vector.load %arg6[%c0_7, %c0_8] : memref<1x32xf32, #tpu.memory_space<vmem>>, vector<1x32xf32>
    %c0_9 = arith.constant 0 : index
    %c0_10 = arith.constant 0 : index
    %5 = vector.load %arg7[%c0_9, %c0_10] : memref<1x32xf32, #tpu.memory_space<vmem>>, vector<1x32xf32>
    %c0_11 = arith.constant 0 : index
    %c0_12 = arith.constant 0 : index
    %6 = vector.load %arg8[%c0_11, %c0_12] : memref<1x32xf32, #tpu.memory_space<vmem>>, vector<1x32xf32>
    %c0_13 = arith.constant 0 : index
    %c0_14 = arith.constant 0 : index
    %7 = vector.load %arg9[%c0_13, %c0_14] : memref<32x32xf32, #tpu.memory_space<vmem>>, vector<32x32xf32>
    %c0_15 = arith.constant 0 : index
    %c0_16 = arith.constant 0 : index
    %8 = vector.load %arg10[%c0_15, %c0_16] : memref<1x32xf32, #tpu.memory_space<vmem>>, vector<1x32xf32>
    %c0_17 = arith.constant 0 : index
    %c0_18 = arith.constant 0 : index
    %9 = vector.load %arg11[%c0_17, %c0_18] : memref<32x64xf32, #tpu.memory_space<vmem>>, vector<32x64xf32>
    %c0_19 = arith.constant 0 : index
    %c0_20 = arith.constant 0 : index
    %10 = vector.load %arg12[%c0_19, %c0_20] : memref<1x64xf32, #tpu.memory_space<vmem>>, vector<1x64xf32>
    %c0_21 = arith.constant 0 : index
    %c0_22 = arith.constant 0 : index
    %11 = vector.load %arg13[%c0_21, %c0_22] : memref<32x32xf32, #tpu.memory_space<vmem>>, vector<32x32xf32>
    %c0_23 = arith.constant 0 : index
    %c0_24 = arith.constant 0 : index
    %12 = vector.load %arg14[%c0_23, %c0_24] : memref<1x32xf32, #tpu.memory_space<vmem>>, vector<1x32xf32>
    %c0_25 = arith.constant 0 : index
    %c0_26 = arith.constant 0 : index
    %13 = vector.load %arg15[%c0_25, %c0_26] : memref<1x32xf32, #tpu.memory_space<vmem>>, vector<1x32xf32>
    %c0_27 = arith.constant 0 : index
    %c0_28 = arith.constant 0 : index
    %14 = vector.load %arg16[%c0_27, %c0_28] : memref<1x32xf32, #tpu.memory_space<vmem>>, vector<1x32xf32>
    %c0_29 = arith.constant 0 : index
    %c0_30 = arith.constant 0 : index
    %15 = vector.load %arg17[%c0_29, %c0_30] : memref<32x64xf32, #tpu.memory_space<vmem>>, vector<32x64xf32>
    %c0_31 = arith.constant 0 : index
    %c0_32 = arith.constant 0 : index
    %16 = vector.load %arg18[%c0_31, %c0_32] : memref<1x64xf32, #tpu.memory_space<vmem>>, vector<1x64xf32>
    %c0_33 = arith.constant 0 : index
    %c0_34 = arith.constant 0 : index
    %17 = vector.load %arg19[%c0_33, %c0_34] : memref<64x32xf32, #tpu.memory_space<vmem>>, vector<64x32xf32>
    %c0_35 = arith.constant 0 : index
    %c0_36 = arith.constant 0 : index
    %18 = vector.load %arg20[%c0_35, %c0_36] : memref<1x32xf32, #tpu.memory_space<vmem>>, vector<1x32xf32>
    %c0_37 = arith.constant 0 : index
    %c0_38 = arith.constant 0 : index
    %19 = vector.load %arg21[%c0_37, %c0_38] : memref<1x32xf32, #tpu.memory_space<vmem>>, vector<1x32xf32>
    %c0_39 = arith.constant 0 : index
    %c0_40 = arith.constant 0 : index
    %20 = vector.load %arg22[%c0_39, %c0_40] : memref<1x32xf32, #tpu.memory_space<vmem>>, vector<1x32xf32>
    %c0_41 = arith.constant 0 : index
    %c0_42 = arith.constant 0 : index
    %c0_43 = arith.constant 0 : index
    %21 = vector.load %arg0[%c0_41, %c0_42, %c0_43] : memref<8x2x32xf32, #tpu.memory_space<vmem>>, vector<8x1x32xf32>
    %22 = vector.shape_cast %21 : vector<8x1x32xf32> to vector<8x32xf32>
    %c0_44 = arith.constant 0 : index
    %c0_45 = arith.constant 0 : index
    %c0_46 = arith.constant 0 : index
    %23 = vector.load %arg1[%c0_44, %c0_45, %c0_46] : memref<16x2x32xf32, #tpu.memory_space<vmem>>, vector<16x1x32xf32>
    %24 = vector.shape_cast %23 : vector<16x1x32xf32> to vector<16x32xf32>
    %cst = arith.constant dense<0.000000e+00> : vector<8x96xf32>
    %25 = tpu.matmul %22, %1, %cst {dimension_numbers = #tpu.dot_dimension_numbers<[1], [0], [0], [1], [0, 0, 1, 1], [], []>} : vector<8x32xf32>, vector<32x96xf32>, vector<8x96xf32> -> vector<8x96xf32>
    %26 = vector.broadcast %2 : vector<1x96xf32> to vector<8x96xf32>
    %27 = arith.addf %25, %26 : vector<8x96xf32>
    %28 = vector.extract_strided_slice %27 {offsets = [0, 0], sizes = [8, 32], strides = [1, 1]} : vector<8x96xf32> to vector<8x32xf32>
    %cst_47 = arith.constant 0.353553385 : f32
    %29 = vector.broadcast %cst_47 : f32 to vector<8x32xf32>
    %30 = arith.mulf %28, %29 : vector<8x32xf32>
    %31 = vector.extract_strided_slice %27 {offsets = [0, 32], sizes = [8, 32], strides = [1, 1]} : vector<8x96xf32> to vector<8x32xf32>
    %32 = vector.extract_strided_slice %27 {offsets = [0, 64], sizes = [8, 32], strides = [1, 1]} : vector<8x96xf32> to vector<8x32xf32>
    %33 = vector.extract_strided_slice %30 {offsets = [0, 0], sizes = [8, 8], strides = [1, 1]} : vector<8x32xf32> to vector<8x8xf32>
    %34 = vector.extract_strided_slice %31 {offsets = [0, 0], sizes = [8, 8], strides = [1, 1]} : vector<8x32xf32> to vector<8x8xf32>
    %35 = tpu.transpose %34, [1, 0] : vector<8x8xf32> -> vector<8x8xf32>
    %cst_48 = arith.constant dense<0.000000e+00> : vector<8x8xf32>
    %36 = tpu.matmul %33, %35, %cst_48 {dimension_numbers = #tpu.dot_dimension_numbers<[1], [0], [0], [1], [0, 0, 1, 1], [], []>} : vector<8x8xf32>, vector<8x8xf32>, vector<8x8xf32> -> vector<8x8xf32>
    %cst_49 = arith.constant dense<0xFF800000> : vector<8xf32>
    %37 = vector.multi_reduction <maximumf>, %36, %cst_49 [1] : vector<8x8xf32> to vector<8xf32>
    %38 = vector.shape_cast %37 : vector<8xf32> to vector<8x1xf32>
    %39 = vector.broadcast %38 : vector<8x1xf32> to vector<8x8xf32>
    %40 = arith.subf %36, %39 : vector<8x8xf32>
    %41 = math.exp %40 : vector<8x8xf32>
    %cst_50 = arith.constant dense<0.000000e+00> : vector<8xf32>
    %42 = vector.multi_reduction <add>, %41, %cst_50 [1] : vector<8x8xf32> to vector<8xf32>
    %43 = vector.shape_cast %42 : vector<8xf32> to vector<8x1xf32>
    %44 = vector.broadcast %43 : vector<8x1xf32> to vector<8x8xf32>
    %45 = arith.divf %41, %44 : vector<8x8xf32>
    %46 = vector.extract_strided_slice %32 {offsets = [0, 0], sizes = [8, 8], strides = [1, 1]} : vector<8x32xf32> to vector<8x8xf32>
    %cst_51 = arith.constant dense<0.000000e+00> : vector<8x8xf32>
    %47 = tpu.matmul %45, %46, %cst_51 {dimension_numbers = #tpu.dot_dimension_numbers<[1], [0], [0], [1], [0, 0, 1, 1], [], []>} : vector<8x8xf32>, vector<8x8xf32>, vector<8x8xf32> -> vector<8x8xf32>
    %48 = vector.extract_strided_slice %30 {offsets = [0, 8], sizes = [8, 8], strides = [1, 1]} : vector<8x32xf32> to vector<8x8xf32>
    %49 = vector.extract_strided_slice %31 {offsets = [0, 8], sizes = [8, 8], strides = [1, 1]} : vector<8x32xf32> to vector<8x8xf32>
    %50 = tpu.transpose %49, [1, 0] : vector<8x8xf32> -> vector<8x8xf32>
    %cst_52 = arith.constant dense<0.000000e+00> : vector<8x8xf32>
    %51 = tpu.matmul %48, %50, %cst_52 {dimension_numbers = #tpu.dot_dimension_numbers<[1], [0], [0], [1], [0, 0, 1, 1], [], []>} : vector<8x8xf32>, vector<8x8xf32>, vector<8x8xf32> -> vector<8x8xf32>
    %cst_53 = arith.constant dense<0xFF800000> : vector<8xf32>
    %52 = vector.multi_reduction <maximumf>, %51, %cst_53 [1] : vector<8x8xf32> to vector<8xf32>
    %53 = vector.shape_cast %52 : vector<8xf32> to vector<8x1xf32>
    %54 = vector.broadcast %53 : vector<8x1xf32> to vector<8x8xf32>
    %55 = arith.subf %51, %54 : vector<8x8xf32>
    %56 = math.exp %55 : vector<8x8xf32>
    %cst_54 = arith.constant dense<0.000000e+00> : vector<8xf32>
    %57 = vector.multi_reduction <add>, %56, %cst_54 [1] : vector<8x8xf32> to vector<8xf32>
    %58 = vector.shape_cast %57 : vector<8xf32> to vector<8x1xf32>
    %59 = vector.broadcast %58 : vector<8x1xf32> to vector<8x8xf32>
    %60 = arith.divf %56, %59 : vector<8x8xf32>
    %61 = vector.extract_strided_slice %32 {offsets = [0, 8], sizes = [8, 8], strides = [1, 1]} : vector<8x32xf32> to vector<8x8xf32>
    %cst_55 = arith.constant dense<0.000000e+00> : vector<8x8xf32>
    %62 = tpu.matmul %60, %61, %cst_55 {dimension_numbers = #tpu.dot_dimension_numbers<[1], [0], [0], [1], [0, 0, 1, 1], [], []>} : vector<8x8xf32>, vector<8x8xf32>, vector<8x8xf32> -> vector<8x8xf32>
    %63 = vector.extract_strided_slice %30 {offsets = [0, 16], sizes = [8, 8], strides = [1, 1]} : vector<8x32xf32> to vector<8x8xf32>
    %64 = vector.extract_strided_slice %31 {offsets = [0, 16], sizes = [8, 8], strides = [1, 1]} : vector<8x32xf32> to vector<8x8xf32>
    %65 = tpu.transpose %64, [1, 0] : vector<8x8xf32> -> vector<8x8xf32>
    %cst_56 = arith.constant dense<0.000000e+00> : vector<8x8xf32>
    %66 = tpu.matmul %63, %65, %cst_56 {dimension_numbers = #tpu.dot_dimension_numbers<[1], [0], [0], [1], [0, 0, 1, 1], [], []>} : vector<8x8xf32>, vector<8x8xf32>, vector<8x8xf32> -> vector<8x8xf32>
    %cst_57 = arith.constant dense<0xFF800000> : vector<8xf32>
    %67 = vector.multi_reduction <maximumf>, %66, %cst_57 [1] : vector<8x8xf32> to vector<8xf32>
    %68 = vector.shape_cast %67 : vector<8xf32> to vector<8x1xf32>
    %69 = vector.broadcast %68 : vector<8x1xf32> to vector<8x8xf32>
    %70 = arith.subf %66, %69 : vector<8x8xf32>
    %71 = math.exp %70 : vector<8x8xf32>
    %cst_58 = arith.constant dense<0.000000e+00> : vector<8xf32>
    %72 = vector.multi_reduction <add>, %71, %cst_58 [1] : vector<8x8xf32> to vector<8xf32>
    %73 = vector.shape_cast %72 : vector<8xf32> to vector<8x1xf32>
    %74 = vector.broadcast %73 : vector<8x1xf32> to vector<8x8xf32>
    %75 = arith.divf %71, %74 : vector<8x8xf32>
    %76 = vector.extract_strided_slice %32 {offsets = [0, 16], sizes = [8, 8], strides = [1, 1]} : vector<8x32xf32> to vector<8x8xf32>
    %cst_59 = arith.constant dense<0.000000e+00> : vector<8x8xf32>
    %77 = tpu.matmul %75, %76, %cst_59 {dimension_numbers = #tpu.dot_dimension_numbers<[1], [0], [0], [1], [0, 0, 1, 1], [], []>} : vector<8x8xf32>, vector<8x8xf32>, vector<8x8xf32> -> vector<8x8xf32>
    %78 = vector.extract_strided_slice %30 {offsets = [0, 24], sizes = [8, 8], strides = [1, 1]} : vector<8x32xf32> to vector<8x8xf32>
    %79 = vector.extract_strided_slice %31 {offsets = [0, 24], sizes = [8, 8], strides = [1, 1]} : vector<8x32xf32> to vector<8x8xf32>
    %80 = tpu.transpose %79, [1, 0] : vector<8x8xf32> -> vector<8x8xf32>
    %cst_60 = arith.constant dense<0.000000e+00> : vector<8x8xf32>
    %81 = tpu.matmul %78, %80, %cst_60 {dimension_numbers = #tpu.dot_dimension_numbers<[1], [0], [0], [1], [0, 0, 1, 1], [], []>} : vector<8x8xf32>, vector<8x8xf32>, vector<8x8xf32> -> vector<8x8xf32>
    %cst_61 = arith.constant dense<0xFF800000> : vector<8xf32>
    %82 = vector.multi_reduction <maximumf>, %81, %cst_61 [1] : vector<8x8xf32> to vector<8xf32>
    %83 = vector.shape_cast %82 : vector<8xf32> to vector<8x1xf32>
    %84 = vector.broadcast %83 : vector<8x1xf32> to vector<8x8xf32>
    %85 = arith.subf %81, %84 : vector<8x8xf32>
    %86 = math.exp %85 : vector<8x8xf32>
    %cst_62 = arith.constant dense<0.000000e+00> : vector<8xf32>
    %87 = vector.multi_reduction <add>, %86, %cst_62 [1] : vector<8x8xf32> to vector<8xf32>
    %88 = vector.shape_cast %87 : vector<8xf32> to vector<8x1xf32>
    %89 = vector.broadcast %88 : vector<8x1xf32> to vector<8x8xf32>
    %90 = arith.divf %86, %89 : vector<8x8xf32>
    %91 = vector.extract_strided_slice %32 {offsets = [0, 24], sizes = [8, 8], strides = [1, 1]} : vector<8x32xf32> to vector<8x8xf32>
    %cst_63 = arith.constant dense<0.000000e+00> : vector<8x8xf32>
    %92 = tpu.matmul %90, %91, %cst_63 {dimension_numbers = #tpu.dot_dimension_numbers<[1], [0], [0], [1], [0, 0, 1, 1], [], []>} : vector<8x8xf32>, vector<8x8xf32>, vector<8x8xf32> -> vector<8x8xf32>
    %93 = tpu.concatenate %47, %62, %77, %92 in 1 : vector<8x8xf32>, vector<8x8xf32>, vector<8x8xf32>, vector<8x8xf32> -> vector<8x32xf32>
    %cst_64 = arith.constant dense<0.000000e+00> : vector<8x32xf32>
    %94 = tpu.matmul %93, %3, %cst_64 {dimension_numbers = #tpu.dot_dimension_numbers<[1], [0], [0], [1], [0, 0, 1, 1], [], []>} : vector<8x32xf32>, vector<32x32xf32>, vector<8x32xf32> -> vector<8x32xf32>
    %95 = vector.broadcast %4 : vector<1x32xf32> to vector<8x32xf32>
    %96 = arith.addf %94, %95 : vector<8x32xf32>
    %97 = arith.addf %22, %96 : vector<8x32xf32>
    %cst_65 = arith.constant dense<0.000000e+00> : vector<8xf32>
    %98 = vector.multi_reduction <add>, %97, %cst_65 [1] : vector<8x32xf32> to vector<8xf32>
    %99 = vector.shape_cast %98 : vector<8xf32> to vector<8x1xf32>
    %cst_66 = arith.constant 3.200000e+01 : f32
    %100 = vector.broadcast %cst_66 : f32 to vector<8x1xf32>
    %101 = arith.divf %99, %100 : vector<8x1xf32>
    %102 = vector.broadcast %101 : vector<8x1xf32> to vector<8x32xf32>
    %103 = arith.subf %97, %102 : vector<8x32xf32>
    %104 = arith.mulf %103, %103 : vector<8x32xf32>
    %cst_67 = arith.constant dense<0.000000e+00> : vector<8xf32>
    %105 = vector.multi_reduction <add>, %104, %cst_67 [1] : vector<8x32xf32> to vector<8xf32>
    %106 = vector.shape_cast %105 : vector<8xf32> to vector<8x1xf32>
    %cst_68 = arith.constant 3.200000e+01 : f32
    %107 = vector.broadcast %cst_68 : f32 to vector<8x1xf32>
    %108 = arith.divf %106, %107 : vector<8x1xf32>
    %109 = vector.broadcast %101 : vector<8x1xf32> to vector<8x32xf32>
    %110 = arith.subf %97, %109 : vector<8x32xf32>
    %cst_69 = arith.constant 9.99999974E-6 : f32
    %111 = vector.broadcast %cst_69 : f32 to vector<8x1xf32>
    %112 = arith.addf %108, %111 : vector<8x1xf32>
    %113 = math.rsqrt %112 : vector<8x1xf32>
    %114 = vector.broadcast %113 : vector<8x1xf32> to vector<8x32xf32>
    %115 = arith.mulf %110, %114 : vector<8x32xf32>
    %116 = vector.broadcast %5 : vector<1x32xf32> to vector<8x32xf32>
    %117 = arith.mulf %115, %116 : vector<8x32xf32>
    %118 = vector.broadcast %6 : vector<1x32xf32> to vector<8x32xf32>
    %119 = arith.addf %117, %118 : vector<8x32xf32>
    %cst_70 = arith.constant dense<0.000000e+00> : vector<16x64xf32>
    %120 = tpu.matmul %24, %9, %cst_70 {dimension_numbers = #tpu.dot_dimension_numbers<[1], [0], [0], [1], [0, 0, 1, 1], [], []>} : vector<16x32xf32>, vector<32x64xf32>, vector<16x64xf32> -> vector<16x64xf32>
    %121 = vector.broadcast %10 : vector<1x64xf32> to vector<16x64xf32>
    %122 = arith.addf %120, %121 : vector<16x64xf32>
    %123 = vector.extract_strided_slice %122 {offsets = [0, 0], sizes = [16, 32], strides = [1, 1]} : vector<16x64xf32> to vector<16x32xf32>
    %124 = vector.extract_strided_slice %122 {offsets = [0, 32], sizes = [16, 32], strides = [1, 1]} : vector<16x64xf32> to vector<16x32xf32>
    %125 = tpu.transpose %123, [1, 0] : vector<16x32xf32> -> vector<32x16xf32>
    %cst_71 = arith.constant dense<0.000000e+00> : vector<8x16xf32>
    %126 = tpu.matmul %0, %125, %cst_71 {dimension_numbers = #tpu.dot_dimension_numbers<[1], [0], [0], [1], [0, 0, 1, 1], [], []>} : vector<8x32xf32>, vector<32x16xf32>, vector<8x16xf32> -> vector<8x16xf32>
    %cst_72 = arith.constant 0.176776692 : f32
    %127 = vector.broadcast %cst_72 : f32 to vector<8x16xf32>
    %128 = arith.mulf %126, %127 : vector<8x16xf32>
    %cst_73 = arith.constant dense<0xFF800000> : vector<8xf32>
    %129 = vector.multi_reduction <maximumf>, %128, %cst_73 [1] : vector<8x16xf32> to vector<8xf32>
    %130 = vector.shape_cast %129 : vector<8xf32> to vector<8x1xf32>
    %131 = vector.broadcast %130 : vector<8x1xf32> to vector<8x16xf32>
    %132 = arith.subf %128, %131 : vector<8x16xf32>
    %133 = math.exp %132 : vector<8x16xf32>
    %cst_74 = arith.constant dense<0.000000e+00> : vector<8xf32>
    %134 = vector.multi_reduction <add>, %133, %cst_74 [1] : vector<8x16xf32> to vector<8xf32>
    %135 = vector.shape_cast %134 : vector<8xf32> to vector<8x1xf32>
    %136 = vector.broadcast %135 : vector<8x1xf32> to vector<8x16xf32>
    %137 = arith.divf %133, %136 : vector<8x16xf32>
    %cst_75 = arith.constant dense<0.000000e+00> : vector<8x32xf32>
    %138 = tpu.matmul %137, %123, %cst_75 {dimension_numbers = #tpu.dot_dimension_numbers<[1], [0], [0], [1], [0, 0, 1, 1], [], []>} : vector<8x16xf32>, vector<16x32xf32>, vector<8x32xf32> -> vector<8x32xf32>
    %cst_76 = arith.constant dense<0.000000e+00> : vector<8x32xf32>
    %139 = tpu.matmul %137, %124, %cst_76 {dimension_numbers = #tpu.dot_dimension_numbers<[1], [0], [0], [1], [0, 0, 1, 1], [], []>} : vector<8x16xf32>, vector<16x32xf32>, vector<8x32xf32> -> vector<8x32xf32>
    %cst_77 = arith.constant dense<0.000000e+00> : vector<8x32xf32>
    %140 = tpu.matmul %119, %7, %cst_77 {dimension_numbers = #tpu.dot_dimension_numbers<[1], [0], [0], [1], [0, 0, 1, 1], [], []>} : vector<8x32xf32>, vector<32x32xf32>, vector<8x32xf32> -> vector<8x32xf32>
    %141 = vector.broadcast %8 : vector<1x32xf32> to vector<8x32xf32>
    %142 = arith.addf %140, %141 : vector<8x32xf32>
    %cst_78 = arith.constant 0.353553385 : f32
    %143 = vector.broadcast %cst_78 : f32 to vector<8x32xf32>
    %144 = arith.mulf %142, %143 : vector<8x32xf32>
    %145 = vector.extract_strided_slice %144 {offsets = [0, 0], sizes = [8, 8], strides = [1, 1]} : vector<8x32xf32> to vector<8x8xf32>
    %146 = vector.extract_strided_slice %138 {offsets = [0, 0], sizes = [8, 8], strides = [1, 1]} : vector<8x32xf32> to vector<8x8xf32>
    %147 = tpu.transpose %146, [1, 0] : vector<8x8xf32> -> vector<8x8xf32>
    %cst_79 = arith.constant dense<0.000000e+00> : vector<8x8xf32>
    %148 = tpu.matmul %145, %147, %cst_79 {dimension_numbers = #tpu.dot_dimension_numbers<[1], [0], [0], [1], [0, 0, 1, 1], [], []>} : vector<8x8xf32>, vector<8x8xf32>, vector<8x8xf32> -> vector<8x8xf32>
    %cst_80 = arith.constant dense<0xFF800000> : vector<8xf32>
    %149 = vector.multi_reduction <maximumf>, %148, %cst_80 [1] : vector<8x8xf32> to vector<8xf32>
    %150 = vector.shape_cast %149 : vector<8xf32> to vector<8x1xf32>
    %151 = vector.broadcast %150 : vector<8x1xf32> to vector<8x8xf32>
    %152 = arith.subf %148, %151 : vector<8x8xf32>
    %153 = math.exp %152 : vector<8x8xf32>
    %cst_81 = arith.constant dense<0.000000e+00> : vector<8xf32>
    %154 = vector.multi_reduction <add>, %153, %cst_81 [1] : vector<8x8xf32> to vector<8xf32>
    %155 = vector.shape_cast %154 : vector<8xf32> to vector<8x1xf32>
    %156 = vector.broadcast %155 : vector<8x1xf32> to vector<8x8xf32>
    %157 = arith.divf %153, %156 : vector<8x8xf32>
    %158 = vector.extract_strided_slice %139 {offsets = [0, 0], sizes = [8, 8], strides = [1, 1]} : vector<8x32xf32> to vector<8x8xf32>
    %cst_82 = arith.constant dense<0.000000e+00> : vector<8x8xf32>
    %159 = tpu.matmul %157, %158, %cst_82 {dimension_numbers = #tpu.dot_dimension_numbers<[1], [0], [0], [1], [0, 0, 1, 1], [], []>} : vector<8x8xf32>, vector<8x8xf32>, vector<8x8xf32> -> vector<8x8xf32>
    %160 = vector.extract_strided_slice %144 {offsets = [0, 8], sizes = [8, 8], strides = [1, 1]} : vector<8x32xf32> to vector<8x8xf32>
    %161 = vector.extract_strided_slice %138 {offsets = [0, 8], sizes = [8, 8], strides = [1, 1]} : vector<8x32xf32> to vector<8x8xf32>
    %162 = tpu.transpose %161, [1, 0] : vector<8x8xf32> -> vector<8x8xf32>
    %cst_83 = arith.constant dense<0.000000e+00> : vector<8x8xf32>
    %163 = tpu.matmul %160, %162, %cst_83 {dimension_numbers = #tpu.dot_dimension_numbers<[1], [0], [0], [1], [0, 0, 1, 1], [], []>} : vector<8x8xf32>, vector<8x8xf32>, vector<8x8xf32> -> vector<8x8xf32>
    %cst_84 = arith.constant dense<0xFF800000> : vector<8xf32>
    %164 = vector.multi_reduction <maximumf>, %163, %cst_84 [1] : vector<8x8xf32> to vector<8xf32>
    %165 = vector.shape_cast %164 : vector<8xf32> to vector<8x1xf32>
    %166 = vector.broadcast %165 : vector<8x1xf32> to vector<8x8xf32>
    %167 = arith.subf %163, %166 : vector<8x8xf32>
    %168 = math.exp %167 : vector<8x8xf32>
    %cst_85 = arith.constant dense<0.000000e+00> : vector<8xf32>
    %169 = vector.multi_reduction <add>, %168, %cst_85 [1] : vector<8x8xf32> to vector<8xf32>
    %170 = vector.shape_cast %169 : vector<8xf32> to vector<8x1xf32>
    %171 = vector.broadcast %170 : vector<8x1xf32> to vector<8x8xf32>
    %172 = arith.divf %168, %171 : vector<8x8xf32>
    %173 = arith.addf %157, %172 : vector<8x8xf32>
    %174 = vector.extract_strided_slice %139 {offsets = [0, 8], sizes = [8, 8], strides = [1, 1]} : vector<8x32xf32> to vector<8x8xf32>
    %cst_86 = arith.constant dense<0.000000e+00> : vector<8x8xf32>
    %175 = tpu.matmul %172, %174, %cst_86 {dimension_numbers = #tpu.dot_dimension_numbers<[1], [0], [0], [1], [0, 0, 1, 1], [], []>} : vector<8x8xf32>, vector<8x8xf32>, vector<8x8xf32> -> vector<8x8xf32>
    %176 = vector.extract_strided_slice %144 {offsets = [0, 16], sizes = [8, 8], strides = [1, 1]} : vector<8x32xf32> to vector<8x8xf32>
    %177 = vector.extract_strided_slice %138 {offsets = [0, 16], sizes = [8, 8], strides = [1, 1]} : vector<8x32xf32> to vector<8x8xf32>
    %178 = tpu.transpose %177, [1, 0] : vector<8x8xf32> -> vector<8x8xf32>
    %cst_87 = arith.constant dense<0.000000e+00> : vector<8x8xf32>
    %179 = tpu.matmul %176, %178, %cst_87 {dimension_numbers = #tpu.dot_dimension_numbers<[1], [0], [0], [1], [0, 0, 1, 1], [], []>} : vector<8x8xf32>, vector<8x8xf32>, vector<8x8xf32> -> vector<8x8xf32>
    %cst_88 = arith.constant dense<0xFF800000> : vector<8xf32>
    %180 = vector.multi_reduction <maximumf>, %179, %cst_88 [1] : vector<8x8xf32> to vector<8xf32>
    %181 = vector.shape_cast %180 : vector<8xf32> to vector<8x1xf32>
    %182 = vector.broadcast %181 : vector<8x1xf32> to vector<8x8xf32>
    %183 = arith.subf %179, %182 : vector<8x8xf32>
    %184 = math.exp %183 : vector<8x8xf32>
    %cst_89 = arith.constant dense<0.000000e+00> : vector<8xf32>
    %185 = vector.multi_reduction <add>, %184, %cst_89 [1] : vector<8x8xf32> to vector<8xf32>
    %186 = vector.shape_cast %185 : vector<8xf32> to vector<8x1xf32>
    %187 = vector.broadcast %186 : vector<8x1xf32> to vector<8x8xf32>
    %188 = arith.divf %184, %187 : vector<8x8xf32>
    %189 = arith.addf %173, %188 : vector<8x8xf32>
    %190 = vector.extract_strided_slice %139 {offsets = [0, 16], sizes = [8, 8], strides = [1, 1]} : vector<8x32xf32> to vector<8x8xf32>
    %cst_90 = arith.constant dense<0.000000e+00> : vector<8x8xf32>
    %191 = tpu.matmul %188, %190, %cst_90 {dimension_numbers = #tpu.dot_dimension_numbers<[1], [0], [0], [1], [0, 0, 1, 1], [], []>} : vector<8x8xf32>, vector<8x8xf32>, vector<8x8xf32> -> vector<8x8xf32>
    %192 = vector.extract_strided_slice %144 {offsets = [0, 24], sizes = [8, 8], strides = [1, 1]} : vector<8x32xf32> to vector<8x8xf32>
    %193 = vector.extract_strided_slice %138 {offsets = [0, 24], sizes = [8, 8], strides = [1, 1]} : vector<8x32xf32> to vector<8x8xf32>
    %194 = tpu.transpose %193, [1, 0] : vector<8x8xf32> -> vector<8x8xf32>
    %cst_91 = arith.constant dense<0.000000e+00> : vector<8x8xf32>
    %195 = tpu.matmul %192, %194, %cst_91 {dimension_numbers = #tpu.dot_dimension_numbers<[1], [0], [0], [1], [0, 0, 1, 1], [], []>} : vector<8x8xf32>, vector<8x8xf32>, vector<8x8xf32> -> vector<8x8xf32>
    %cst_92 = arith.constant dense<0xFF800000> : vector<8xf32>
    %196 = vector.multi_reduction <maximumf>, %195, %cst_92 [1] : vector<8x8xf32> to vector<8xf32>
    %197 = vector.shape_cast %196 : vector<8xf32> to vector<8x1xf32>
    %198 = vector.broadcast %197 : vector<8x1xf32> to vector<8x8xf32>
    %199 = arith.subf %195, %198 : vector<8x8xf32>
    %200 = math.exp %199 : vector<8x8xf32>
    %cst_93 = arith.constant dense<0.000000e+00> : vector<8xf32>
    %201 = vector.multi_reduction <add>, %200, %cst_93 [1] : vector<8x8xf32> to vector<8xf32>
    %202 = vector.shape_cast %201 : vector<8xf32> to vector<8x1xf32>
    %203 = vector.broadcast %202 : vector<8x1xf32> to vector<8x8xf32>
    %204 = arith.divf %200, %203 : vector<8x8xf32>
    %205 = arith.addf %189, %204 : vector<8x8xf32>
    %206 = vector.extract_strided_slice %139 {offsets = [0, 24], sizes = [8, 8], strides = [1, 1]} : vector<8x32xf32> to vector<8x8xf32>
    %cst_94 = arith.constant dense<0.000000e+00> : vector<8x8xf32>
    %207 = tpu.matmul %204, %206, %cst_94 {dimension_numbers = #tpu.dot_dimension_numbers<[1], [0], [0], [1], [0, 0, 1, 1], [], []>} : vector<8x8xf32>, vector<8x8xf32>, vector<8x8xf32> -> vector<8x8xf32>
    %208 = tpu.concatenate %159, %175, %191, %207 in 1 : vector<8x8xf32>, vector<8x8xf32>, vector<8x8xf32>, vector<8x8xf32> -> vector<8x32xf32>
    %cst_95 = arith.constant 2.500000e-01 : f32
    %209 = vector.broadcast %cst_95 : f32 to vector<8x8xf32>
    %210 = arith.mulf %205, %209 : vector<8x8xf32>
    %cst_96 = arith.constant dense<0.000000e+00> : vector<8x32xf32>
    %211 = tpu.matmul %208, %11, %cst_96 {dimension_numbers = #tpu.dot_dimension_numbers<[1], [0], [0], [1], [0, 0, 1, 1], [], []>} : vector<8x32xf32>, vector<32x32xf32>, vector<8x32xf32> -> vector<8x32xf32>
    %212 = vector.broadcast %12 : vector<1x32xf32> to vector<8x32xf32>
    %213 = arith.addf %211, %212 : vector<8x32xf32>
    %214 = arith.addf %119, %213 : vector<8x32xf32>
    %cst_97 = arith.constant dense<0.000000e+00> : vector<8xf32>
    %215 = vector.multi_reduction <add>, %214, %cst_97 [1] : vector<8x32xf32> to vector<8xf32>
    %216 = vector.shape_cast %215 : vector<8xf32> to vector<8x1xf32>
    %cst_98 = arith.constant 3.200000e+01 : f32
    %217 = vector.broadcast %cst_98 : f32 to vector<8x1xf32>
    %218 = arith.divf %216, %217 : vector<8x1xf32>
    %219 = vector.broadcast %218 : vector<8x1xf32> to vector<8x32xf32>
    %220 = arith.subf %214, %219 : vector<8x32xf32>
    %221 = arith.mulf %220, %220 : vector<8x32xf32>
    %cst_99 = arith.constant dense<0.000000e+00> : vector<8xf32>
    %222 = vector.multi_reduction <add>, %221, %cst_99 [1] : vector<8x32xf32> to vector<8xf32>
    %223 = vector.shape_cast %222 : vector<8xf32> to vector<8x1xf32>
    %cst_100 = arith.constant 3.200000e+01 : f32
    %224 = vector.broadcast %cst_100 : f32 to vector<8x1xf32>
    %225 = arith.divf %223, %224 : vector<8x1xf32>
    %226 = vector.broadcast %218 : vector<8x1xf32> to vector<8x32xf32>
    %227 = arith.subf %214, %226 : vector<8x32xf32>
    %cst_101 = arith.constant 9.99999974E-6 : f32
    %228 = vector.broadcast %cst_101 : f32 to vector<8x1xf32>
    %229 = arith.addf %225, %228 : vector<8x1xf32>
    %230 = math.rsqrt %229 : vector<8x1xf32>
    %231 = vector.broadcast %230 : vector<8x1xf32> to vector<8x32xf32>
    %232 = arith.mulf %227, %231 : vector<8x32xf32>
    %233 = vector.broadcast %13 : vector<1x32xf32> to vector<8x32xf32>
    %234 = arith.mulf %232, %233 : vector<8x32xf32>
    %235 = vector.broadcast %14 : vector<1x32xf32> to vector<8x32xf32>
    %236 = arith.addf %234, %235 : vector<8x32xf32>
    %c0_102 = arith.constant 0 : index
    %c0_103 = arith.constant 0 : index
    %c0_104 = arith.constant 0 : index
    %237 = vector.load %arg24[%c0_102, %c0_103, %c0_104] : memref<2x8x8xf32, #tpu.memory_space<vmem>>, vector<1x8x8xf32>
    %238 = vector.shape_cast %237 : vector<1x8x8xf32> to vector<8x8xf32>
    %239 = vector.shape_cast %210 : vector<8x8xf32> to vector<1x8x8xf32>
    tpu.vector_store %arg24[%c0_102, %c0_103, %c0_104], %239 {strides = array<i32>} : memref<2x8x8xf32, #tpu.memory_space<vmem>>, vector<1x8x8xf32>,
    %cst_105 = arith.constant dense<0.000000e+00> : vector<8x64xf32>
    %240 = tpu.matmul %236, %15, %cst_105 {dimension_numbers = #tpu.dot_dimension_numbers<[1], [0], [0], [1], [0, 0, 1, 1], [], []>} : vector<8x32xf32>, vector<32x64xf32>, vector<8x64xf32> -> vector<8x64xf32>
    %241 = vector.broadcast %16 : vector<1x64xf32> to vector<8x64xf32>
    %242 = arith.addf %240, %241 : vector<8x64xf32>
    %cst_106 = arith.constant 0.000000e+00 : f32
    %243 = vector.broadcast %cst_106 : f32 to vector<8x64xf32>
    %244 = arith.maximumf %242, %243 : vector<8x64xf32>
    %cst_107 = arith.constant dense<0.000000e+00> : vector<8x32xf32>
    %245 = tpu.matmul %244, %17, %cst_107 {dimension_numbers = #tpu.dot_dimension_numbers<[1], [0], [0], [1], [0, 0, 1, 1], [], []>} : vector<8x64xf32>, vector<64x32xf32>, vector<8x32xf32> -> vector<8x32xf32>
    %246 = vector.broadcast %18 : vector<1x32xf32> to vector<8x32xf32>
    %247 = arith.addf %245, %246 : vector<8x32xf32>
    %248 = arith.addf %236, %247 : vector<8x32xf32>
    %cst_108 = arith.constant dense<0.000000e+00> : vector<8xf32>
    %249 = vector.multi_reduction <add>, %248, %cst_108 [1] : vector<8x32xf32> to vector<8xf32>
    %250 = vector.shape_cast %249 : vector<8xf32> to vector<8x1xf32>
    %cst_109 = arith.constant 3.200000e+01 : f32
    %251 = vector.broadcast %cst_109 : f32 to vector<8x1xf32>
    %252 = arith.divf %250, %251 : vector<8x1xf32>
    %253 = vector.broadcast %252 : vector<8x1xf32> to vector<8x32xf32>
    %254 = arith.subf %248, %253 : vector<8x32xf32>
    %255 = arith.mulf %254, %254 : vector<8x32xf32>
    %cst_110 = arith.constant dense<0.000000e+00> : vector<8xf32>
    %256 = vector.multi_reduction <add>, %255, %cst_110 [1] : vector<8x32xf32> to vector<8xf32>
    %257 = vector.shape_cast %256 : vector<8xf32> to vector<8x1xf32>
    %cst_111 = arith.constant 3.200000e+01 : f32
    %258 = vector.broadcast %cst_111 : f32 to vector<8x1xf32>
    %259 = arith.divf %257, %258 : vector<8x1xf32>
    %260 = vector.broadcast %252 : vector<8x1xf32> to vector<8x32xf32>
    %261 = arith.subf %248, %260 : vector<8x32xf32>
    %cst_112 = arith.constant 9.99999974E-6 : f32
    %262 = vector.broadcast %cst_112 : f32 to vector<8x1xf32>
    %263 = arith.addf %259, %262 : vector<8x1xf32>
    %264 = math.rsqrt %263 : vector<8x1xf32>
    %265 = vector.broadcast %264 : vector<8x1xf32> to vector<8x32xf32>
    %266 = arith.mulf %261, %265 : vector<8x32xf32>
    %267 = vector.broadcast %19 : vector<1x32xf32> to vector<8x32xf32>
    %268 = arith.mulf %266, %267 : vector<8x32xf32>
    %269 = vector.broadcast %20 : vector<1x32xf32> to vector<8x32xf32>
    %270 = arith.addf %268, %269 : vector<8x32xf32>
    %c0_113 = arith.constant 0 : index
    %c0_114 = arith.constant 0 : index
    %c0_115 = arith.constant 0 : index
    %271 = vector.load %arg23[%c0_113, %c0_114, %c0_115] : memref<8x2x32xf32, #tpu.memory_space<vmem>>, vector<8x1x32xf32>
    %272 = vector.shape_cast %271 : vector<8x1x32xf32> to vector<8x32xf32>
    %273 = vector.shape_cast %270 : vector<8x32xf32> to vector<8x1x32xf32>
    tpu.vector_store %arg23[%c0_113, %c0_114, %c0_115], %273 {strides = array<i32>} : memref<8x2x32xf32, #tpu.memory_space<vmem>>, vector<8x1x32xf32>,
    %c0_116 = arith.constant 0 : index
    %c1 = arith.constant 1 : index
    %c0_117 = arith.constant 0 : index
    %274 = vector.load %arg0[%c0_116, %c1, %c0_117] : memref<8x2x32xf32, #tpu.memory_space<vmem>>, vector<8x1x32xf32>
    %275 = vector.shape_cast %274 : vector<8x1x32xf32> to vector<8x32xf32>
    %c0_118 = arith.constant 0 : index
    %c1_119 = arith.constant 1 : index
    %c0_120 = arith.constant 0 : index
    %276 = vector.load %arg1[%c0_118, %c1_119, %c0_120] : memref<16x2x32xf32, #tpu.memory_space<vmem>>, vector<16x1x32xf32>
    %277 = vector.shape_cast %276 : vector<16x1x32xf32> to vector<16x32xf32>
    %cst_121 = arith.constant dense<0.000000e+00> : vector<8x96xf32>
    %278 = tpu.matmul %275, %1, %cst_121 {dimension_numbers = #tpu.dot_dimension_numbers<[1], [0], [0], [1], [0, 0, 1, 1], [], []>} : vector<8x32xf32>, vector<32x96xf32>, vector<8x96xf32> -> vector<8x96xf32>
    %279 = vector.broadcast %2 : vector<1x96xf32> to vector<8x96xf32>
    %280 = arith.addf %278, %279 : vector<8x96xf32>
    %281 = vector.extract_strided_slice %280 {offsets = [0, 0], sizes = [8, 32], strides = [1, 1]} : vector<8x96xf32> to vector<8x32xf32>
    %cst_122 = arith.constant 0.353553385 : f32
    %282 = vector.broadcast %cst_122 : f32 to vector<8x32xf32>
    %283 = arith.mulf %281, %282 : vector<8x32xf32>
    %284 = vector.extract_strided_slice %280 {offsets = [0, 32], sizes = [8, 32], strides = [1, 1]} : vector<8x96xf32> to vector<8x32xf32>
    %285 = vector.extract_strided_slice %280 {offsets = [0, 64], sizes = [8, 32], strides = [1, 1]} : vector<8x96xf32> to vector<8x32xf32>
    %286 = vector.extract_strided_slice %283 {offsets = [0, 0], sizes = [8, 8], strides = [1, 1]} : vector<8x32xf32> to vector<8x8xf32>
    %287 = vector.extract_strided_slice %284 {offsets = [0, 0], sizes = [8, 8], strides = [1, 1]} : vector<8x32xf32> to vector<8x8xf32>
    %288 = tpu.transpose %287, [1, 0] : vector<8x8xf32> -> vector<8x8xf32>
    %cst_123 = arith.constant dense<0.000000e+00> : vector<8x8xf32>
    %289 = tpu.matmul %286, %288, %cst_123 {dimension_numbers = #tpu.dot_dimension_numbers<[1], [0], [0], [1], [0, 0, 1, 1], [], []>} : vector<8x8xf32>, vector<8x8xf32>, vector<8x8xf32> -> vector<8x8xf32>
    %cst_124 = arith.constant dense<0xFF800000> : vector<8xf32>
    %290 = vector.multi_reduction <maximumf>, %289, %cst_124 [1] : vector<8x8xf32> to vector<8xf32>
    %291 = vector.shape_cast %290 : vector<8xf32> to vector<8x1xf32>
    %292 = vector.broadcast %291 : vector<8x1xf32> to vector<8x8xf32>
    %293 = arith.subf %289, %292 : vector<8x8xf32>
    %294 = math.exp %293 : vector<8x8xf32>
    %cst_125 = arith.constant dense<0.000000e+00> : vector<8xf32>
    %295 = vector.multi_reduction <add>, %294, %cst_125 [1] : vector<8x8xf32> to vector<8xf32>
    %296 = vector.shape_cast %295 : vector<8xf32> to vector<8x1xf32>
    %297 = vector.broadcast %296 : vector<8x1xf32> to vector<8x8xf32>
    %298 = arith.divf %294, %297 : vector<8x8xf32>
    %299 = vector.extract_strided_slice %285 {offsets = [0, 0], sizes = [8, 8], strides = [1, 1]} : vector<8x32xf32> to vector<8x8xf32>
    %cst_126 = arith.constant dense<0.000000e+00> : vector<8x8xf32>
    %300 = tpu.matmul %298, %299, %cst_126 {dimension_numbers = #tpu.dot_dimension_numbers<[1], [0], [0], [1], [0, 0, 1, 1], [], []>} : vector<8x8xf32>, vector<8x8xf32>, vector<8x8xf32> -> vector<8x8xf32>
    %301 = vector.extract_strided_slice %283 {offsets = [0, 8], sizes = [8, 8], strides = [1, 1]} : vector<8x32xf32> to vector<8x8xf32>
    %302 = vector.extract_strided_slice %284 {offsets = [0, 8], sizes = [8, 8], strides = [1, 1]} : vector<8x32xf32> to vector<8x8xf32>
    %303 = tpu.transpose %302, [1, 0] : vector<8x8xf32> -> vector<8x8xf32>
    %cst_127 = arith.constant dense<0.000000e+00> : vector<8x8xf32>
    %304 = tpu.matmul %301, %303, %cst_127 {dimension_numbers = #tpu.dot_dimension_numbers<[1], [0], [0], [1], [0, 0, 1, 1], [], []>} : vector<8x8xf32>, vector<8x8xf32>, vector<8x8xf32> -> vector<8x8xf32>
    %cst_128 = arith.constant dense<0xFF800000> : vector<8xf32>
    %305 = vector.multi_reduction <maximumf>, %304, %cst_128 [1] : vector<8x8xf32> to vector<8xf32>
    %306 = vector.shape_cast %305 : vector<8xf32> to vector<8x1xf32>
    %307 = vector.broadcast %306 : vector<8x1xf32> to vector<8x8xf32>
    %308 = arith.subf %304, %307 : vector<8x8xf32>
    %309 = math.exp %308 : vector<8x8xf32>
    %cst_129 = arith.constant dense<0.000000e+00> : vector<8xf32>
    %310 = vector.multi_reduction <add>, %309, %cst_129 [1] : vector<8x8xf32> to vector<8xf32>
    %311 = vector.shape_cast %310 : vector<8xf32> to vector<8x1xf32>
    %312 = vector.broadcast %311 : vector<8x1xf32> to vector<8x8xf32>
    %313 = arith.divf %309, %312 : vector<8x8xf32>
    %314 = vector.extract_strided_slice %285 {offsets = [0, 8], sizes = [8, 8], strides = [1, 1]} : vector<8x32xf32> to vector<8x8xf32>
    %cst_130 = arith.constant dense<0.000000e+00> : vector<8x8xf32>
    %315 = tpu.matmul %313, %314, %cst_130 {dimension_numbers = #tpu.dot_dimension_numbers<[1], [0], [0], [1], [0, 0, 1, 1], [], []>} : vector<8x8xf32>, vector<8x8xf32>, vector<8x8xf32> -> vector<8x8xf32>
    %316 = vector.extract_strided_slice %283 {offsets = [0, 16], sizes = [8, 8], strides = [1, 1]} : vector<8x32xf32> to vector<8x8xf32>
    %317 = vector.extract_strided_slice %284 {offsets = [0, 16], sizes = [8, 8], strides = [1, 1]} : vector<8x32xf32> to vector<8x8xf32>
    %318 = tpu.transpose %317, [1, 0] : vector<8x8xf32> -> vector<8x8xf32>
    %cst_131 = arith.constant dense<0.000000e+00> : vector<8x8xf32>
    %319 = tpu.matmul %316, %318, %cst_131 {dimension_numbers = #tpu.dot_dimension_numbers<[1], [0], [0], [1], [0, 0, 1, 1], [], []>} : vector<8x8xf32>, vector<8x8xf32>, vector<8x8xf32> -> vector<8x8xf32>
    %cst_132 = arith.constant dense<0xFF800000> : vector<8xf32>
    %320 = vector.multi_reduction <maximumf>, %319, %cst_132 [1] : vector<8x8xf32> to vector<8xf32>
    %321 = vector.shape_cast %320 : vector<8xf32> to vector<8x1xf32>
    %322 = vector.broadcast %321 : vector<8x1xf32> to vector<8x8xf32>
    %323 = arith.subf %319, %322 : vector<8x8xf32>
    %324 = math.exp %323 : vector<8x8xf32>
    %cst_133 = arith.constant dense<0.000000e+00> : vector<8xf32>
    %325 = vector.multi_reduction <add>, %324, %cst_133 [1] : vector<8x8xf32> to vector<8xf32>
    %326 = vector.shape_cast %325 : vector<8xf32> to vector<8x1xf32>
    %327 = vector.broadcast %326 : vector<8x1xf32> to vector<8x8xf32>
    %328 = arith.divf %324, %327 : vector<8x8xf32>
    %329 = vector.extract_strided_slice %285 {offsets = [0, 16], sizes = [8, 8], strides = [1, 1]} : vector<8x32xf32> to vector<8x8xf32>
    %cst_134 = arith.constant dense<0.000000e+00> : vector<8x8xf32>
    %330 = tpu.matmul %328, %329, %cst_134 {dimension_numbers = #tpu.dot_dimension_numbers<[1], [0], [0], [1], [0, 0, 1, 1], [], []>} : vector<8x8xf32>, vector<8x8xf32>, vector<8x8xf32> -> vector<8x8xf32>
    %331 = vector.extract_strided_slice %283 {offsets = [0, 24], sizes = [8, 8], strides = [1, 1]} : vector<8x32xf32> to vector<8x8xf32>
    %332 = vector.extract_strided_slice %284 {offsets = [0, 24], sizes = [8, 8], strides = [1, 1]} : vector<8x32xf32> to vector<8x8xf32>
    %333 = tpu.transpose %332, [1, 0] : vector<8x8xf32> -> vector<8x8xf32>
    %cst_135 = arith.constant dense<0.000000e+00> : vector<8x8xf32>
    %334 = tpu.matmul %331, %333, %cst_135 {dimension_numbers = #tpu.dot_dimension_numbers<[1], [0], [0], [1], [0, 0, 1, 1], [], []>} : vector<8x8xf32>, vector<8x8xf32>, vector<8x8xf32> -> vector<8x8xf32>
    %cst_136 = arith.constant dense<0xFF800000> : vector<8xf32>
    %335 = vector.multi_reduction <maximumf>, %334, %cst_136 [1] : vector<8x8xf32> to vector<8xf32>
    %336 = vector.shape_cast %335 : vector<8xf32> to vector<8x1xf32>
    %337 = vector.broadcast %336 : vector<8x1xf32> to vector<8x8xf32>
    %338 = arith.subf %334, %337 : vector<8x8xf32>
    %339 = math.exp %338 : vector<8x8xf32>
    %cst_137 = arith.constant dense<0.000000e+00> : vector<8xf32>
    %340 = vector.multi_reduction <add>, %339, %cst_137 [1] : vector<8x8xf32> to vector<8xf32>
    %341 = vector.shape_cast %340 : vector<8xf32> to vector<8x1xf32>
    %342 = vector.broadcast %341 : vector<8x1xf32> to vector<8x8xf32>
    %343 = arith.divf %339, %342 : vector<8x8xf32>
    %344 = vector.extract_strided_slice %285 {offsets = [0, 24], sizes = [8, 8], strides = [1, 1]} : vector<8x32xf32> to vector<8x8xf32>
    %cst_138 = arith.constant dense<0.000000e+00> : vector<8x8xf32>
    %345 = tpu.matmul %343, %344, %cst_138 {dimension_numbers = #tpu.dot_dimension_numbers<[1], [0], [0], [1], [0, 0, 1, 1], [], []>} : vector<8x8xf32>, vector<8x8xf32>, vector<8x8xf32> -> vector<8x8xf32>
    %346 = tpu.concatenate %300, %315, %330, %345 in 1 : vector<8x8xf32>, vector<8x8xf32>, vector<8x8xf32>, vector<8x8xf32> -> vector<8x32xf32>
    %cst_139 = arith.constant dense<0.000000e+00> : vector<8x32xf32>
    %347 = tpu.matmul %346, %3, %cst_139 {dimension_numbers = #tpu.dot_dimension_numbers<[1], [0], [0], [1], [0, 0, 1, 1], [], []>} : vector<8x32xf32>, vector<32x32xf32>, vector<8x32xf32> -> vector<8x32xf32>
    %348 = vector.broadcast %4 : vector<1x32xf32> to vector<8x32xf32>
    %349 = arith.addf %347, %348 : vector<8x32xf32>
    %350 = arith.addf %275, %349 : vector<8x32xf32>
    %cst_140 = arith.constant dense<0.000000e+00> : vector<8xf32>
    %351 = vector.multi_reduction <add>, %350, %cst_140 [1] : vector<8x32xf32> to vector<8xf32>
    %352 = vector.shape_cast %351 : vector<8xf32> to vector<8x1xf32>
    %cst_141 = arith.constant 3.200000e+01 : f32
    %353 = vector.broadcast %cst_141 : f32 to vector<8x1xf32>
    %354 = arith.divf %352, %353 : vector<8x1xf32>
    %355 = vector.broadcast %354 : vector<8x1xf32> to vector<8x32xf32>
    %356 = arith.subf %350, %355 : vector<8x32xf32>
    %357 = arith.mulf %356, %356 : vector<8x32xf32>
    %cst_142 = arith.constant dense<0.000000e+00> : vector<8xf32>
    %358 = vector.multi_reduction <add>, %357, %cst_142 [1] : vector<8x32xf32> to vector<8xf32>
    %359 = vector.shape_cast %358 : vector<8xf32> to vector<8x1xf32>
    %cst_143 = arith.constant 3.200000e+01 : f32
    %360 = vector.broadcast %cst_143 : f32 to vector<8x1xf32>
    %361 = arith.divf %359, %360 : vector<8x1xf32>
    %362 = vector.broadcast %354 : vector<8x1xf32> to vector<8x32xf32>
    %363 = arith.subf %350, %362 : vector<8x32xf32>
    %cst_144 = arith.constant 9.99999974E-6 : f32
    %364 = vector.broadcast %cst_144 : f32 to vector<8x1xf32>
    %365 = arith.addf %361, %364 : vector<8x1xf32>
    %366 = math.rsqrt %365 : vector<8x1xf32>
    %367 = vector.broadcast %366 : vector<8x1xf32> to vector<8x32xf32>
    %368 = arith.mulf %363, %367 : vector<8x32xf32>
    %369 = vector.broadcast %5 : vector<1x32xf32> to vector<8x32xf32>
    %370 = arith.mulf %368, %369 : vector<8x32xf32>
    %371 = vector.broadcast %6 : vector<1x32xf32> to vector<8x32xf32>
    %372 = arith.addf %370, %371 : vector<8x32xf32>
    %cst_145 = arith.constant dense<0.000000e+00> : vector<16x64xf32>
    %373 = tpu.matmul %277, %9, %cst_145 {dimension_numbers = #tpu.dot_dimension_numbers<[1], [0], [0], [1], [0, 0, 1, 1], [], []>} : vector<16x32xf32>, vector<32x64xf32>, vector<16x64xf32> -> vector<16x64xf32>
    %374 = vector.broadcast %10 : vector<1x64xf32> to vector<16x64xf32>
    %375 = arith.addf %373, %374 : vector<16x64xf32>
    %376 = vector.extract_strided_slice %375 {offsets = [0, 0], sizes = [16, 32], strides = [1, 1]} : vector<16x64xf32> to vector<16x32xf32>
    %377 = vector.extract_strided_slice %375 {offsets = [0, 32], sizes = [16, 32], strides = [1, 1]} : vector<16x64xf32> to vector<16x32xf32>
    %378 = tpu.transpose %376, [1, 0] : vector<16x32xf32> -> vector<32x16xf32>
    %cst_146 = arith.constant dense<0.000000e+00> : vector<8x16xf32>
    %379 = tpu.matmul %0, %378, %cst_146 {dimension_numbers = #tpu.dot_dimension_numbers<[1], [0], [0], [1], [0, 0, 1, 1], [], []>} : vector<8x32xf32>, vector<32x16xf32>, vector<8x16xf32> -> vector<8x16xf32>
    %cst_147 = arith.constant 0.176776692 : f32
    %380 = vector.broadcast %cst_147 : f32 to vector<8x16xf32>
    %381 = arith.mulf %379, %380 : vector<8x16xf32>
    %cst_148 = arith.constant dense<0xFF800000> : vector<8xf32>
    %382 = vector.multi_reduction <maximumf>, %381, %cst_148 [1] : vector<8x16xf32> to vector<8xf32>
    %383 = vector.shape_cast %382 : vector<8xf32> to vector<8x1xf32>
    %384 = vector.broadcast %383 : vector<8x1xf32> to vector<8x16xf32>
    %385 = arith.subf %381, %384 : vector<8x16xf32>
    %386 = math.exp %385 : vector<8x16xf32>
    %cst_149 = arith.constant dense<0.000000e+00> : vector<8xf32>
    %387 = vector.multi_reduction <add>, %386, %cst_149 [1] : vector<8x16xf32> to vector<8xf32>
    %388 = vector.shape_cast %387 : vector<8xf32> to vector<8x1xf32>
    %389 = vector.broadcast %388 : vector<8x1xf32> to vector<8x16xf32>
    %390 = arith.divf %386, %389 : vector<8x16xf32>
    %cst_150 = arith.constant dense<0.000000e+00> : vector<8x32xf32>
    %391 = tpu.matmul %390, %376, %cst_150 {dimension_numbers = #tpu.dot_dimension_numbers<[1], [0], [0], [1], [0, 0, 1, 1], [], []>} : vector<8x16xf32>, vector<16x32xf32>, vector<8x32xf32> -> vector<8x32xf32>
    %cst_151 = arith.constant dense<0.000000e+00> : vector<8x32xf32>
    %392 = tpu.matmul %390, %377, %cst_151 {dimension_numbers = #tpu.dot_dimension_numbers<[1], [0], [0], [1], [0, 0, 1, 1], [], []>} : vector<8x16xf32>, vector<16x32xf32>, vector<8x32xf32> -> vector<8x32xf32>
    %cst_152 = arith.constant dense<0.000000e+00> : vector<8x32xf32>
    %393 = tpu.matmul %372, %7, %cst_152 {dimension_numbers = #tpu.dot_dimension_numbers<[1], [0], [0], [1], [0, 0, 1, 1], [], []>} : vector<8x32xf32>, vector<32x32xf32>, vector<8x32xf32> -> vector<8x32xf32>
    %394 = vector.broadcast %8 : vector<1x32xf32> to vector<8x32xf32>
    %395 = arith.addf %393, %394 : vector<8x32xf32>
    %cst_153 = arith.constant 0.353553385 : f32
    %396 = vector.broadcast %cst_153 : f32 to vector<8x32xf32>
    %397 = arith.mulf %395, %396 : vector<8x32xf32>
    %398 = vector.extract_strided_slice %397 {offsets = [0, 0], sizes = [8, 8], strides = [1, 1]} : vector<8x32xf32> to vector<8x8xf32>
    %399 = vector.extract_strided_slice %391 {offsets = [0, 0], sizes = [8, 8], strides = [1, 1]} : vector<8x32xf32> to vector<8x8xf32>
    %400 = tpu.transpose %399, [1, 0] : vector<8x8xf32> -> vector<8x8xf32>
    %cst_154 = arith.constant dense<0.000000e+00> : vector<8x8xf32>
    %401 = tpu.matmul %398, %400, %cst_154 {dimension_numbers = #tpu.dot_dimension_numbers<[1], [0], [0], [1], [0, 0, 1, 1], [], []>} : vector<8x8xf32>, vector<8x8xf32>, vector<8x8xf32> -> vector<8x8xf32>
    %cst_155 = arith.constant dense<0xFF800000> : vector<8xf32>
    %402 = vector.multi_reduction <maximumf>, %401, %cst_155 [1] : vector<8x8xf32> to vector<8xf32>
    %403 = vector.shape_cast %402 : vector<8xf32> to vector<8x1xf32>
    %404 = vector.broadcast %403 : vector<8x1xf32> to vector<8x8xf32>
    %405 = arith.subf %401, %404 : vector<8x8xf32>
    %406 = math.exp %405 : vector<8x8xf32>
    %cst_156 = arith.constant dense<0.000000e+00> : vector<8xf32>
    %407 = vector.multi_reduction <add>, %406, %cst_156 [1] : vector<8x8xf32> to vector<8xf32>
    %408 = vector.shape_cast %407 : vector<8xf32> to vector<8x1xf32>
    %409 = vector.broadcast %408 : vector<8x1xf32> to vector<8x8xf32>
    %410 = arith.divf %406, %409 : vector<8x8xf32>
    %411 = vector.extract_strided_slice %392 {offsets = [0, 0], sizes = [8, 8], strides = [1, 1]} : vector<8x32xf32> to vector<8x8xf32>
    %cst_157 = arith.constant dense<0.000000e+00> : vector<8x8xf32>
    %412 = tpu.matmul %410, %411, %cst_157 {dimension_numbers = #tpu.dot_dimension_numbers<[1], [0], [0], [1], [0, 0, 1, 1], [], []>} : vector<8x8xf32>, vector<8x8xf32>, vector<8x8xf32> -> vector<8x8xf32>
    %413 = vector.extract_strided_slice %397 {offsets = [0, 8], sizes = [8, 8], strides = [1, 1]} : vector<8x32xf32> to vector<8x8xf32>
    %414 = vector.extract_strided_slice %391 {offsets = [0, 8], sizes = [8, 8], strides = [1, 1]} : vector<8x32xf32> to vector<8x8xf32>
    %415 = tpu.transpose %414, [1, 0] : vector<8x8xf32> -> vector<8x8xf32>
    %cst_158 = arith.constant dense<0.000000e+00> : vector<8x8xf32>
    %416 = tpu.matmul %413, %415, %cst_158 {dimension_numbers = #tpu.dot_dimension_numbers<[1], [0], [0], [1], [0, 0, 1, 1], [], []>} : vector<8x8xf32>, vector<8x8xf32>, vector<8x8xf32> -> vector<8x8xf32>
    %cst_159 = arith.constant dense<0xFF800000> : vector<8xf32>
    %417 = vector.multi_reduction <maximumf>, %416, %cst_159 [1] : vector<8x8xf32> to vector<8xf32>
    %418 = vector.shape_cast %417 : vector<8xf32> to vector<8x1xf32>
    %419 = vector.broadcast %418 : vector<8x1xf32> to vector<8x8xf32>
    %420 = arith.subf %416, %419 : vector<8x8xf32>
    %421 = math.exp %420 : vector<8x8xf32>
    %cst_160 = arith.constant dense<0.000000e+00> : vector<8xf32>
    %422 = vector.multi_reduction <add>, %421, %cst_160 [1] : vector<8x8xf32> to vector<8xf32>
    %423 = vector.shape_cast %422 : vector<8xf32> to vector<8x1xf32>
    %424 = vector.broadcast %423 : vector<8x1xf32> to vector<8x8xf32>
    %425 = arith.divf %421, %424 : vector<8x8xf32>
    %426 = arith.addf %410, %425 : vector<8x8xf32>
    %427 = vector.extract_strided_slice %392 {offsets = [0, 8], sizes = [8, 8], strides = [1, 1]} : vector<8x32xf32> to vector<8x8xf32>
    %cst_161 = arith.constant dense<0.000000e+00> : vector<8x8xf32>
    %428 = tpu.matmul %425, %427, %cst_161 {dimension_numbers = #tpu.dot_dimension_numbers<[1], [0], [0], [1], [0, 0, 1, 1], [], []>} : vector<8x8xf32>, vector<8x8xf32>, vector<8x8xf32> -> vector<8x8xf32>
    %429 = vector.extract_strided_slice %397 {offsets = [0, 16], sizes = [8, 8], strides = [1, 1]} : vector<8x32xf32> to vector<8x8xf32>
    %430 = vector.extract_strided_slice %391 {offsets = [0, 16], sizes = [8, 8], strides = [1, 1]} : vector<8x32xf32> to vector<8x8xf32>
    %431 = tpu.transpose %430, [1, 0] : vector<8x8xf32> -> vector<8x8xf32>
    %cst_162 = arith.constant dense<0.000000e+00> : vector<8x8xf32>
    %432 = tpu.matmul %429, %431, %cst_162 {dimension_numbers = #tpu.dot_dimension_numbers<[1], [0], [0], [1], [0, 0, 1, 1], [], []>} : vector<8x8xf32>, vector<8x8xf32>, vector<8x8xf32> -> vector<8x8xf32>
    %cst_163 = arith.constant dense<0xFF800000> : vector<8xf32>
    %433 = vector.multi_reduction <maximumf>, %432, %cst_163 [1] : vector<8x8xf32> to vector<8xf32>
    %434 = vector.shape_cast %433 : vector<8xf32> to vector<8x1xf32>
    %435 = vector.broadcast %434 : vector<8x1xf32> to vector<8x8xf32>
    %436 = arith.subf %432, %435 : vector<8x8xf32>
    %437 = math.exp %436 : vector<8x8xf32>
    %cst_164 = arith.constant dense<0.000000e+00> : vector<8xf32>
    %438 = vector.multi_reduction <add>, %437, %cst_164 [1] : vector<8x8xf32> to vector<8xf32>
    %439 = vector.shape_cast %438 : vector<8xf32> to vector<8x1xf32>
    %440 = vector.broadcast %439 : vector<8x1xf32> to vector<8x8xf32>
    %441 = arith.divf %437, %440 : vector<8x8xf32>
    %442 = arith.addf %426, %441 : vector<8x8xf32>
    %443 = vector.extract_strided_slice %392 {offsets = [0, 16], sizes = [8, 8], strides = [1, 1]} : vector<8x32xf32> to vector<8x8xf32>
    %cst_165 = arith.constant dense<0.000000e+00> : vector<8x8xf32>
    %444 = tpu.matmul %441, %443, %cst_165 {dimension_numbers = #tpu.dot_dimension_numbers<[1], [0], [0], [1], [0, 0, 1, 1], [], []>} : vector<8x8xf32>, vector<8x8xf32>, vector<8x8xf32> -> vector<8x8xf32>
    %445 = vector.extract_strided_slice %397 {offsets = [0, 24], sizes = [8, 8], strides = [1, 1]} : vector<8x32xf32> to vector<8x8xf32>
    %446 = vector.extract_strided_slice %391 {offsets = [0, 24], sizes = [8, 8], strides = [1, 1]} : vector<8x32xf32> to vector<8x8xf32>
    %447 = tpu.transpose %446, [1, 0] : vector<8x8xf32> -> vector<8x8xf32>
    %cst_166 = arith.constant dense<0.000000e+00> : vector<8x8xf32>
    %448 = tpu.matmul %445, %447, %cst_166 {dimension_numbers = #tpu.dot_dimension_numbers<[1], [0], [0], [1], [0, 0, 1, 1], [], []>} : vector<8x8xf32>, vector<8x8xf32>, vector<8x8xf32> -> vector<8x8xf32>
    %cst_167 = arith.constant dense<0xFF800000> : vector<8xf32>
    %449 = vector.multi_reduction <maximumf>, %448, %cst_167 [1] : vector<8x8xf32> to vector<8xf32>
    %450 = vector.shape_cast %449 : vector<8xf32> to vector<8x1xf32>
    %451 = vector.broadcast %450 : vector<8x1xf32> to vector<8x8xf32>
    %452 = arith.subf %448, %451 : vector<8x8xf32>
    %453 = math.exp %452 : vector<8x8xf32>
    %cst_168 = arith.constant dense<0.000000e+00> : vector<8xf32>
    %454 = vector.multi_reduction <add>, %453, %cst_168 [1] : vector<8x8xf32> to vector<8xf32>
    %455 = vector.shape_cast %454 : vector<8xf32> to vector<8x1xf32>
    %456 = vector.broadcast %455 : vector<8x1xf32> to vector<8x8xf32>
    %457 = arith.divf %453, %456 : vector<8x8xf32>
    %458 = arith.addf %442, %457 : vector<8x8xf32>
    %459 = vector.extract_strided_slice %392 {offsets = [0, 24], sizes = [8, 8], strides = [1, 1]} : vector<8x32xf32> to vector<8x8xf32>
    %cst_169 = arith.constant dense<0.000000e+00> : vector<8x8xf32>
    %460 = tpu.matmul %457, %459, %cst_169 {dimension_numbers = #tpu.dot_dimension_numbers<[1], [0], [0], [1], [0, 0, 1, 1], [], []>} : vector<8x8xf32>, vector<8x8xf32>, vector<8x8xf32> -> vector<8x8xf32>
    %461 = tpu.concatenate %412, %428, %444, %460 in 1 : vector<8x8xf32>, vector<8x8xf32>, vector<8x8xf32>, vector<8x8xf32> -> vector<8x32xf32>
    %cst_170 = arith.constant 2.500000e-01 : f32
    %462 = vector.broadcast %cst_170 : f32 to vector<8x8xf32>
    %463 = arith.mulf %458, %462 : vector<8x8xf32>
    %cst_171 = arith.constant dense<0.000000e+00> : vector<8x32xf32>
    %464 = tpu.matmul %461, %11, %cst_171 {dimension_numbers = #tpu.dot_dimension_numbers<[1], [0], [0], [1], [0, 0, 1, 1], [], []>} : vector<8x32xf32>, vector<32x32xf32>, vector<8x32xf32> -> vector<8x32xf32>
    %465 = vector.broadcast %12 : vector<1x32xf32> to vector<8x32xf32>
    %466 = arith.addf %464, %465 : vector<8x32xf32>
    %467 = arith.addf %372, %466 : vector<8x32xf32>
    %cst_172 = arith.constant dense<0.000000e+00> : vector<8xf32>
    %468 = vector.multi_reduction <add>, %467, %cst_172 [1] : vector<8x32xf32> to vector<8xf32>
    %469 = vector.shape_cast %468 : vector<8xf32> to vector<8x1xf32>
    %cst_173 = arith.constant 3.200000e+01 : f32
    %470 = vector.broadcast %cst_173 : f32 to vector<8x1xf32>
    %471 = arith.divf %469, %470 : vector<8x1xf32>
    %472 = vector.broadcast %471 : vector<8x1xf32> to vector<8x32xf32>
    %473 = arith.subf %467, %472 : vector<8x32xf32>
    %474 = arith.mulf %473, %473 : vector<8x32xf32>
    %cst_174 = arith.constant dense<0.000000e+00> : vector<8xf32>
    %475 = vector.multi_reduction <add>, %474, %cst_174 [1] : vector<8x32xf32> to vector<8xf32>
    %476 = vector.shape_cast %475 : vector<8xf32> to vector<8x1xf32>
    %cst_175 = arith.constant 3.200000e+01 : f32
    %477 = vector.broadcast %cst_175 : f32 to vector<8x1xf32>
    %478 = arith.divf %476, %477 : vector<8x1xf32>
    %479 = vector.broadcast %471 : vector<8x1xf32> to vector<8x32xf32>
    %480 = arith.subf %467, %479 : vector<8x32xf32>
    %cst_176 = arith.constant 9.99999974E-6 : f32
    %481 = vector.broadcast %cst_176 : f32 to vector<8x1xf32>
    %482 = arith.addf %478, %481 : vector<8x1xf32>
    %483 = math.rsqrt %482 : vector<8x1xf32>
    %484 = vector.broadcast %483 : vector<8x1xf32> to vector<8x32xf32>
    %485 = arith.mulf %480, %484 : vector<8x32xf32>
    %486 = vector.broadcast %13 : vector<1x32xf32> to vector<8x32xf32>
    %487 = arith.mulf %485, %486 : vector<8x32xf32>
    %488 = vector.broadcast %14 : vector<1x32xf32> to vector<8x32xf32>
    %489 = arith.addf %487, %488 : vector<8x32xf32>
    %c1_177 = arith.constant 1 : index
    %c0_178 = arith.constant 0 : index
    %c0_179 = arith.constant 0 : index
    %490 = vector.load %arg24[%c1_177, %c0_178, %c0_179] : memref<2x8x8xf32, #tpu.memory_space<vmem>>, vector<1x8x8xf32>
    %491 = vector.shape_cast %490 : vector<1x8x8xf32> to vector<8x8xf32>
    %492 = vector.shape_cast %463 : vector<8x8xf32> to vector<1x8x8xf32>
    tpu.vector_store %arg24[%c1_177, %c0_178, %c0_179], %492 {strides = array<i32>} : memref<2x8x8xf32, #tpu.memory_space<vmem>>, vector<1x8x8xf32>,
    %cst_180 = arith.constant dense<0.000000e+00> : vector<8x64xf32>
    %493 = tpu.matmul %489, %15, %cst_180 {dimension_numbers = #tpu.dot_dimension_numbers<[1], [0], [0], [1], [0, 0, 1, 1], [], []>} : vector<8x32xf32>, vector<32x64xf32>, vector<8x64xf32> -> vector<8x64xf32>
    %494 = vector.broadcast %16 : vector<1x64xf32> to vector<8x64xf32>
    %495 = arith.addf %493, %494 : vector<8x64xf32>
    %cst_181 = arith.constant 0.000000e+00 : f32
    %496 = vector.broadcast %cst_181 : f32 to vector<8x64xf32>
    %497 = arith.maximumf %495, %496 : vector<8x64xf32>
    %cst_182 = arith.constant dense<0.000000e+00> : vector<8x32xf32>
    %498 = tpu.matmul %497, %17, %cst_182 {dimension_numbers = #tpu.dot_dimension_numbers<[1], [0], [0], [1], [0, 0, 1, 1], [], []>} : vector<8x64xf32>, vector<64x32xf32>, vector<8x32xf32> -> vector<8x32xf32>
    %499 = vector.broadcast %18 : vector<1x32xf32> to vector<8x32xf32>
    %500 = arith.addf %498, %499 : vector<8x32xf32>
    %501 = arith.addf %489, %500 : vector<8x32xf32>
    %cst_183 = arith.constant dense<0.000000e+00> : vector<8xf32>
    %502 = vector.multi_reduction <add>, %501, %cst_183 [1] : vector<8x32xf32> to vector<8xf32>
    %503 = vector.shape_cast %502 : vector<8xf32> to vector<8x1xf32>
    %cst_184 = arith.constant 3.200000e+01 : f32
    %504 = vector.broadcast %cst_184 : f32 to vector<8x1xf32>
    %505 = arith.divf %503, %504 : vector<8x1xf32>
    %506 = vector.broadcast %505 : vector<8x1xf32> to vector<8x32xf32>
    %507 = arith.subf %501, %506 : vector<8x32xf32>
    %508 = arith.mulf %507, %507 : vector<8x32xf32>
    %cst_185 = arith.constant dense<0.000000e+00> : vector<8xf32>
    %509 = vector.multi_reduction <add>, %508, %cst_185 [1] : vector<8x32xf32> to vector<8xf32>
    %510 = vector.shape_cast %509 : vector<8xf32> to vector<8x1xf32>
    %cst_186 = arith.constant 3.200000e+01 : f32
    %511 = vector.broadcast %cst_186 : f32 to vector<8x1xf32>
    %512 = arith.divf %510, %511 : vector<8x1xf32>
    %513 = vector.broadcast %505 : vector<8x1xf32> to vector<8x32xf32>
    %514 = arith.subf %501, %513 : vector<8x32xf32>
    %cst_187 = arith.constant 9.99999974E-6 : f32
    %515 = vector.broadcast %cst_187 : f32 to vector<8x1xf32>
    %516 = arith.addf %512, %515 : vector<8x1xf32>
    %517 = math.rsqrt %516 : vector<8x1xf32>
    %518 = vector.broadcast %517 : vector<8x1xf32> to vector<8x32xf32>
    %519 = arith.mulf %514, %518 : vector<8x32xf32>
    %520 = vector.broadcast %19 : vector<1x32xf32> to vector<8x32xf32>
    %521 = arith.mulf %519, %520 : vector<8x32xf32>
    %522 = vector.broadcast %20 : vector<1x32xf32> to vector<8x32xf32>
    %523 = arith.addf %521, %522 : vector<8x32xf32>
    %c0_188 = arith.constant 0 : index
    %c1_189 = arith.constant 1 : index
    %c0_190 = arith.constant 0 : index
    %524 = vector.load %arg23[%c0_188, %c1_189, %c0_190] : memref<8x2x32xf32, #tpu.memory_space<vmem>>, vector<8x1x32xf32>
    %525 = vector.shape_cast %524 : vector<8x1x32xf32> to vector<8x32xf32>
    %526 = vector.shape_cast %523 : vector<8x32xf32> to vector<8x1x32xf32>
    tpu.vector_store %arg23[%c0_188, %c1_189, %c0_190], %526 {strides = array<i32>} : memref<8x2x32xf32, #tpu.memory_space<vmem>>, vector<8x1x32xf32>,
    return
  }
}

</mosaic_0001>

<llo_original>
// kernel: tpu_custom_call.1
$region0: #{tpu_custom_call.1}
  #allocation0 [shape = 'u32[]', space=smem, size = 0x4, offset = 0x4, fixed_abs, tag = 'smem constant byte address 0x4 - core index']
  #allocation1 [shape = 'u32[72,128]{1,0:T(1,128)}', space=vmem, size = 0x9000, scoped, tag = 'internal scratch']
  %s0 = inlined_call_operand.hbm [shape: f32[8,2,32], index: 0, kind: input, shape index: {}]
  %s1 = inlined_call_operand.vmem [shape: f32[16,2,32], index: 1, kind: input, shape index: {}]
  %s2 = inlined_call_operand.hbm [shape: f32[8,32], index: 2, kind: input, shape index: {}]
  %s3 = inlined_call_operand.vmem [shape: f32[32,96], index: 3, kind: input, shape index: {}]
  %s4 = inlined_call_operand.vmem [shape: f32[1,96], index: 4, kind: input, shape index: {}]
  %s5 = inlined_call_operand.vmem [shape: f32[32,32], index: 5, kind: input, shape index: {}]
  %s6 = inlined_call_operand.vmem [shape: f32[1,32], index: 6, kind: input, shape index: {}]
  %s7 = inlined_call_operand.vmem [shape: f32[1,32], index: 7, kind: input, shape index: {}]
  %s8 = inlined_call_operand.vmem [shape: f32[1,32], index: 8, kind: input, shape index: {}]
  %s9 = inlined_call_operand.hbm [shape: f32[32,32], index: 9, kind: input, shape index: {}]
  %s10 = inlined_call_operand.vmem [shape: f32[1,32], index: 10, kind: input, shape index: {}]
  %s11 = inlined_call_operand.hbm [shape: f32[32,64], index: 11, kind: input, shape index: {}]
  %s12 = inlined_call_operand.vmem [shape: f32[1,64], index: 12, kind: input, shape index: {}]
  %s13 = inlined_call_operand.hbm [shape: f32[32,32], index: 13, kind: input, shape index: {}]
  %s14 = inlined_call_operand.vmem [shape: f32[1,32], index: 14, kind: input, shape index: {}]
  %s15 = inlined_call_operand.vmem [shape: f32[1,32], index: 15, kind: input, shape index: {}]
  %s16 = inlined_call_operand.vmem [shape: f32[1,32], index: 16, kind: input, shape index: {}]
  %s17 = inlined_call_operand.hbm [shape: f32[32,64], index: 17, kind: input, shape index: {}]
  %s18 = inlined_call_operand.vmem [shape: f32[1,64], index: 18, kind: input, shape index: {}]
  %s19 = inlined_call_operand.vmem [shape: f32[64,32], index: 19, kind: input, shape index: {}]
  %s20 = inlined_call_operand.vmem [shape: f32[1,32], index: 20, kind: input, shape index: {}]
  %s21 = inlined_call_operand.vmem [shape: f32[1,32], index: 21, kind: input, shape index: {}]
  %s22 = inlined_call_operand.vmem [shape: f32[1,32], index: 22, kind: input, shape index: {}]
  %s23 = inlined_call_operand.hbm [shape: f32[8,2,32], index: 23, kind: output, shape index: {0}]
  %s24 = inlined_call_operand.hbm [shape: f32[2,8,8], index: 24, kind: output, shape index: {1}]
  %25 = xla_tuple %s23, %s24
  %s26 = sld [smem:[#allocation0]]
  $region134: #{tpu_custom_call.1} parent=0
    _
  %s28 = ssub.s32 1, %s26
  %s29 = scalar_select 0, %s28, %s26
  $region1: #{tpu_custom_call.1} parent=0
    #allocation2 [shape = 'u8[8192]{0}', space=vmem, size = 0x2000, scoped, tag = 'input window, operand 0, single buffered']
    #allocation3 [shape = 's32[1]{0}', space=sflag, size = 0x4, scoped, tag = 'scoped memory for tpu_custom_call.1']
    #allocation4 [shape = 's32[1]{0}', space=sflag, size = 0x4, scoped, tag = 'scoped memory for tpu_custom_call.1']
    #allocation5 [shape = 'u8[4096]{0}', space=vmem, size = 0x1000, scoped, tag = 'input window, operand 2, single buffered']
    #allocation6 [shape = 's32[1]{0}', space=sflag, size = 0x4, scoped, tag = 'scoped memory for tpu_custom_call.1']
    #allocation7 [shape = 'u8[16384]{0}', space=vmem, size = 0x4000, scoped, tag = 'input window, operand 9, single buffered']
    #allocation8 [shape = 'u8[16384]{0}', space=vmem, size = 0x4000, scoped, tag = 'input window, operand 11, single buffered']
    #allocation9 [shape = 's32[1]{0}', space=sflag, size = 0x4, scoped, tag = 'scoped memory for tpu_custom_call.1']
    #allocation10 [shape = 'u8[16384]{0}', space=vmem, size = 0x4000, scoped, tag = 'input window, operand 13, single buffered']
    #allocation11 [shape = 'u8[16384]{0}', space=vmem, size = 0x4000, scoped, tag = 'input window, operand 17, single buffered']
    #allocation12 [shape = 's32[1]{0}', space=sflag, size = 0x4, scoped, tag = 'scoped memory for tpu_custom_call.1']
    #allocation13 [shape = 'u8[8192]{0}', space=vmem, size = 0x2000, scoped, tag = 'output window, operand 0, single buffered']
    #allocation14 [shape = 'u8[8192]{0}', space=vmem, size = 0x2000, scoped, tag = 'output window, operand 1, single buffered']
    #allocation15 [shape = 's32[1]{0}', space=sflag, size = 0x4, scoped, tag = 'scoped memory for tpu_custom_call.1']
    %30 = vsyncpa [#allocation3], 0
    %31 = vsyncpa [#allocation6], 0
    %32 = vsyncpa [#allocation9], 0
    %33 = vsyncpa [#allocation12], 0
    %34 = vsyncpa [#allocation4], 0
    %35 = vsyncpa [#allocation15], 0
    // Predicated region
    $region2: #{tpu_custom_call.1} parent=1 // pred_check
      _
    $region3: #{tpu_custom_call.1} parent=1 // pred_check_branch
      %37 = sbr.rel (0) target = $region5
    $region4: #{tpu_custom_call.1} parent=1 // pred_region
      %39 = vsyncadd [#allocation3], 0
      %s40 = sshll.u32 %s0, 4
      %s41 = int_to_ptr.hbm [resolvable:$true] %s40
      %s42 = sshll.u32 [#allocation2], 4
      %s43 = int_to_ptr.vmem [resolvable:$true] %s42
      %48 = dma.hbm_to_vmem [thread:$0]  %s41, 256, %s43, [#allocation3], 32, 32, 2
    $region5: #{tpu_custom_call.1} parent=1 // pred_fallthru
      _
    // Predicated region
    $region6: #{tpu_custom_call.1} parent=1 // pred_check
      _
    $region7: #{tpu_custom_call.1} parent=1 // pred_check_branch
      %50 = sbr.rel (0) target = $region9
    $region8: #{tpu_custom_call.1} parent=1 // pred_region
      _
    $region9: #{tpu_custom_call.1} parent=1 // pred_fallthru
      _
    // Predicated region
    $region10: #{tpu_custom_call.1} parent=1 // pred_check
      _
    $region11: #{tpu_custom_call.1} parent=1 // pred_check_branch
      %52 = sbr.rel (0) target = $region13
    $region12: #{tpu_custom_call.1} parent=1 // pred_region
      %54 = vsyncadd [#allocation6], 0
      %s56 = sshll.u32 %s2, 4
      %s57 = int_to_ptr.hbm [resolvable:$true] %s56
      %s58 = sshll.u32 [#allocation5], 4
      %s59 = int_to_ptr.vmem [resolvable:$true] %s58
      %61 = dma.hbm_to_vmem [thread:$0]  %s57, 128, %s59, [#allocation6]
    $region13: #{tpu_custom_call.1} parent=1 // pred_fallthru
      _
    // Predicated region
    $region14: #{tpu_custom_call.1} parent=1 // pred_check
      _
    $region15: #{tpu_custom_call.1} parent=1 // pred_check_branch
      %63 = sbr.rel (0) target = $region17
    $region16: #{tpu_custom_call.1} parent=1 // pred_region
      _
    $region17: #{tpu_custom_call.1} parent=1 // pred_fallthru
      _
    // Predicated region
    $region18: #{tpu_custom_call.1} parent=1 // pred_check
      _
    $region19: #{tpu_custom_call.1} parent=1 // pred_check_branch
      %65 = sbr.rel (0) target = $region21
    $region20: #{tpu_custom_call.1} parent=1 // pred_region
      _
    $region21: #{tpu_custom_call.1} parent=1 // pred_fallthru
      _
    // Predicated region
    $region22: #{tpu_custom_call.1} parent=1 // pred_check
      _
    $region23: #{tpu_custom_call.1} parent=1 // pred_check_branch
      %67 = sbr.rel (0) target = $region25
    $region24: #{tpu_custom_call.1} parent=1 // pred_region
      _
    $region25: #{tpu_custom_call.1} parent=1 // pred_fallthru
      _
    // Predicated region
    $region26: #{tpu_custom_call.1} parent=1 // pred_check
      _
    $region27: #{tpu_custom_call.1} parent=1 // pred_check_branch
      %69 = sbr.rel (0) target = $region29
    $region28: #{tpu_custom_call.1} parent=1 // pred_region
      _
    $region29: #{tpu_custom_call.1} parent=1 // pred_fallthru
      _
    // Predicated region
    $region30: #{tpu_custom_call.1} parent=1 // pred_check
      _
    $region31: #{tpu_custom_call.1} parent=1 // pred_check_branch
      %71 = sbr.rel (0) target = $region33
    $region32: #{tpu_custom_call.1} parent=1 // pred_region
      _
    $region33: #{tpu_custom_call.1} parent=1 // pred_fallthru
      _
    // Predicated region
    $region34: #{tpu_custom_call.1} parent=1 // pred_check
      _
    $region35: #{tpu_custom_call.1} parent=1 // pred_check_branch
      %73 = sbr.rel (0) target = $region37
    $region36: #{tpu_custom_call.1} parent=1 // pred_region
      _
    $region37: #{tpu_custom_call.1} parent=1 // pred_fallthru
      _
    // Predicated region
    $region38: #{tpu_custom_call.1} parent=1 // pred_check
      _
    $region39: #{tpu_custom_call.1} parent=1 // pred_check_branch
      %75 = sbr.rel (0) target = $region41
    $region40: #{tpu_custom_call.1} parent=1 // pred_region
      %77 = vsyncadd [#allocation6], 0
      %s78 = sshll.u32 %s9, 4
      %s79 = int_to_ptr.hbm [resolvable:$true] %s78
      %s80 = sshll.u32 [#allocation7], 4
      %s81 = int_to_ptr.vmem [resolvable:$true] %s80
      %86 = dma.hbm_to_vmem [thread:$0]  %s79, 512, %s81, [#allocation6], 128, 128, 8
    $region41: #{tpu_custom_call.1} parent=1 // pred_fallthru
      _
    // Predicated region
    $region42: #{tpu_custom_call.1} parent=1 // pred_check
      _
    $region43: #{tpu_custom_call.1} parent=1 // pred_check_branch
      %88 = sbr.rel (0) target = $region45
    $region44: #{tpu_custom_call.1} parent=1 // pred_region
      _
    $region45: #{tpu_custom_call.1} parent=1 // pred_fallthru
      _
    // Predicated region
    $region46: #{tpu_custom_call.1} parent=1 // pred_check
      _
    $region47: #{tpu_custom_call.1} parent=1 // pred_check_branch
      %90 = sbr.rel (0) target = $region49
    $region48: #{tpu_custom_call.1} parent=1 // pred_region
      %92 = vsyncadd [#allocation9], 0
      %s93 = sshll.u32 %s11, 4
      %s94 = int_to_ptr.hbm [resolvable:$true] %s93
      %s95 = sshll.u32 [#allocation8], 4
      %s96 = int_to_ptr.vmem [resolvable:$true] %s95
      %101 = dma.hbm_to_vmem [thread:$0]  %s94, 512, %s96, [#allocation9], 128, 128, 8
    $region49: #{tpu_custom_call.1} parent=1 // pred_fallthru
      _
    // Predicated region
    $region50: #{tpu_custom_call.1} parent=1 // pred_check
      _
    $region51: #{tpu_custom_call.1} parent=1 // pred_check_branch
      %103 = sbr.rel (0) target = $region53
    $region52: #{tpu_custom_call.1} parent=1 // pred_region
      _
    $region53: #{tpu_custom_call.1} parent=1 // pred_fallthru
      _
    // Predicated region
    $region54: #{tpu_custom_call.1} parent=1 // pred_check
      _
    $region55: #{tpu_custom_call.1} parent=1 // pred_check_branch
      %105 = sbr.rel (0) target = $region57
    $region56: #{tpu_custom_call.1} parent=1 // pred_region
      %107 = vsyncadd [#allocation9], 0
      %s108 = sshll.u32 %s13, 4
      %s109 = int_to_ptr.hbm [resolvable:$true] %s108
      %s110 = sshll.u32 [#allocation10], 4
      %s111 = int_to_ptr.vmem [resolvable:$true] %s110
      %116 = dma.hbm_to_vmem [thread:$0]  %s109, 512, %s111, [#allocation9], 128, 128, 8
    $region57: #{tpu_custom_call.1} parent=1 // pred_fallthru
      _
    // Predicated region
    $region58: #{tpu_custom_call.1} parent=1 // pred_check
      _
    $region59: #{tpu_custom_call.1} parent=1 // pred_check_branch
      %118 = sbr.rel (0) target = $region61
    $region60: #{tpu_custom_call.1} parent=1 // pred_region
      _
    $region61: #{tpu_custom_call.1} parent=1 // pred_fallthru
      _
    // Predicated region
    $region62: #{tpu_custom_call.1} parent=1 // pred_check
      _
    $region63: #{tpu_custom_call.1} parent=1 // pred_check_branch
      %120 = sbr.rel (0) target = $region65
    $region64: #{tpu_custom_call.1} parent=1 // pred_region
      _
    $region65: #{tpu_custom_call.1} parent=1 // pred_fallthru
      _
    // Predicated region
    $region66: #{tpu_custom_call.1} parent=1 // pred_check
      _
    $region67: #{tpu_custom_call.1} parent=1 // pred_check_branch
      %122 = sbr.rel (0) target = $region69
    $region68: #{tpu_custom_call.1} parent=1 // pred_region
      _
    $region69: #{tpu_custom_call.1} parent=1 // pred_fallthru
      _
    // Predicated region
    $region70: #{tpu_custom_call.1} parent=1 // pred_check
      _
    $region71: #{tpu_custom_call.1} parent=1 // pred_check_branch
      %124 = sbr.rel (0) target = $region73
    $region72: #{tpu_custom_call.1} parent=1 // pred_region
      %126 = vsyncadd [#allocation12], 0
      %s127 = sshll.u32 %s17, 4
      %s128 = int_to_ptr.hbm [resolvable:$true] %s127
      %s129 = sshll.u32 [#allocation11], 4
      %s130 = int_to_ptr.vmem [resolvable:$true] %s129
      %135 = dma.hbm_to_vmem [thread:$0]  %s128, 512, %s130, [#allocation12], 128, 128, 8
    $region73: #{tpu_custom_call.1} parent=1 // pred_fallthru
      _
    // Predicated region
    $region74: #{tpu_custom_call.1} parent=1 // pred_check
      _
    $region75: #{tpu_custom_call.1} parent=1 // pred_check_branch
      %137 = sbr.rel (0) target = $region77
    $region76: #{tpu_custom_call.1} parent=1 // pred_region
      _
    $region77: #{tpu_custom_call.1} parent=1 // pred_fallthru
      _
    // Predicated region
    $region78: #{tpu_custom_call.1} parent=1 // pred_check
      _
    $region79: #{tpu_custom_call.1} parent=1 // pred_check_branch
      %139 = sbr.rel (0) target = $region81
    $region80: #{tpu_custom_call.1} parent=1 // pred_region
      _
    $region81: #{tpu_custom_call.1} parent=1 // pred_fallthru
      _
    // Predicated region
    $region82: #{tpu_custom_call.1} parent=1 // pred_check
      _
    $region83: #{tpu_custom_call.1} parent=1 // pred_check_branch
      %141 = sbr.rel (0) target = $region85
    $region84: #{tpu_custom_call.1} parent=1 // pred_region
      _
    $region85: #{tpu_custom_call.1} parent=1 // pred_fallthru
      _
    // Predicated region
    $region86: #{tpu_custom_call.1} parent=1 // pred_check
      _
    $region87: #{tpu_custom_call.1} parent=1 // pred_check_branch
      %143 = sbr.rel (0) target = $region89
    $region88: #{tpu_custom_call.1} parent=1 // pred_region
      _
    $region89: #{tpu_custom_call.1} parent=1 // pred_fallthru
      _
    // Predicated region
    $region90: #{tpu_custom_call.1} parent=1 // pred_check
      _
    $region91: #{tpu_custom_call.1} parent=1 // pred_check_branch
      %145 = sbr.rel (0) target = $region93
    $region92: #{tpu_custom_call.1} parent=1 // pred_region
      _
    $region93: #{tpu_custom_call.1} parent=1 // pred_fallthru
      _
    // Predicated region
    $region94: #{tpu_custom_call.1} parent=1 // pred_check
      _
    $region95: #{tpu_custom_call.1} parent=1 // pred_check_branch
      %147 = sbr.rel (0) target = $region97
    $region96: #{tpu_custom_call.1} parent=1 // pred_region
      %149 = dma.done [#allocation3], 256
    $region97: #{tpu_custom_call.1} parent=1 // pred_fallthru
      _
    // Predicated region
    $region98: #{tpu_custom_call.1} parent=1 // pred_check
      _
    $region99: #{tpu_custom_call.1} parent=1 // pred_check_branch
      %151 = sbr.rel (0) target = $region101
    $region100: #{tpu_custom_call.1} parent=1 // pred_region
      %153 = dma.done [#allocation6], 128
    $region101: #{tpu_custom_call.1} parent=1 // pred_fallthru
      _
    // Predicated region
    $region102: #{tpu_custom_call.1} parent=1 // pred_check
      _
    $region103: #{tpu_custom_call.1} parent=1 // pred_check_branch
      %155 = sbr.rel (0) target = $region105
    $region104: #{tpu_custom_call.1} parent=1 // pred_region
      %157 = dma.done [#allocation6], 512
    $region105: #{tpu_custom_call.1} parent=1 // pred_fallthru
      _
    // Predicated region
    $region106: #{tpu_custom_call.1} parent=1 // pred_check
      _
    $region107: #{tpu_custom_call.1} parent=1 // pred_check_branch
      %159 = sbr.rel (0) target = $region109
    $region108: #{tpu_custom_call.1} parent=1 // pred_region
      %161 = dma.done [#allocation9], 512
    $region109: #{tpu_custom_call.1} parent=1 // pred_fallthru
      _
    // Predicated region
    $region110: #{tpu_custom_call.1} parent=1 // pred_check
      _
    $region111: #{tpu_custom_call.1} parent=1 // pred_check_branch
      %163 = sbr.rel (0) target = $region113
    $region112: #{tpu_custom_call.1} parent=1 // pred_region
      %165 = dma.done [#allocation9], 512
    $region113: #{tpu_custom_call.1} parent=1 // pred_fallthru
      _
    // Predicated region
    $region114: #{tpu_custom_call.1} parent=1 // pred_check
      _
    $region115: #{tpu_custom_call.1} parent=1 // pred_check_branch
      %167 = sbr.rel (0) target = $region117
    $region116: #{tpu_custom_call.1} parent=1 // pred_region
      %169 = dma.done [#allocation12], 512
    $region117: #{tpu_custom_call.1} parent=1 // pred_fallthru
      _
    %v170 = vld [vmem:[#allocation5] sm:$0xff]
    %v171 = vld [vmem:[%s3] sm:$0xff]
    %v172 = vld [vmem:[%s3 + $0x8] sm:$0xff]
    %v173 = vld [vmem:[%s3 + $0x10] sm:$0xff]
    %v174 = vld [vmem:[%s3 + $0x18] sm:$0xff]
    %v175 = vld [vmem:[%s4] sm:$0x1]
    %v176 = vld [vmem:[%s5] sm:$0xff]
    %v177 = vld [vmem:[%s5 + $0x8] sm:$0xff]
    %v178 = vld [vmem:[%s5 + $0x10] sm:$0xff]
    %v179 = vld [vmem:[%s5 + $0x18] sm:$0xff]
    %v180 = vld [vmem:[%s6] sm:$0x1]
    %v181 = vld [vmem:[%s7] sm:$0x1]
    %v182 = vld [vmem:[%s8] sm:$0x1]
    %v183 = vld [vmem:[#allocation7] sm:$0xff]
    %v184 = vld [vmem:[#allocation7 + $0x8] sm:$0xff]
    %v185 = vld [vmem:[#allocation7 + $0x10] sm:$0xff]
    %v186 = vld [vmem:[#allocation7 + $0x18] sm:$0xff]
    %v187 = vld [vmem:[%s10] sm:$0x1]
    %v188 = vld [vmem:[#allocation8] sm:$0xff]
    %v189 = vld [vmem:[#allocation8 + $0x8] sm:$0xff]
    %v190 = vld [vmem:[#allocation8 + $0x10] sm:$0xff]
    %v191 = vld [vmem:[#allocation8 + $0x18] sm:$0xff]
    %v192 = vld [vmem:[%s12] sm:$0x1]
    %v193 = vld [vmem:[#allocation10] sm:$0xff]
    %v194 = vld [vmem:[#allocation10 + $0x8] sm:$0xff]
    %v195 = vld [vmem:[#allocation10 + $0x10] sm:$0xff]
    %v196 = vld [vmem:[#allocation10 + $0x18] sm:$0xff]
    %v197 = vld [vmem:[%s14] sm:$0x1]
    %v198 = vld [vmem:[%s15] sm:$0x1]
    %v199 = vld [vmem:[%s16] sm:$0x1]
    %v200 = vld [vmem:[#allocation11] sm:$0xff]
    %v201 = vld [vmem:[#allocation11 + $0x8] sm:$0xff]
    %v202 = vld [vmem:[#allocation11 + $0x10] sm:$0xff]
    %v203 = vld [vmem:[#allocation11 + $0x18] sm:$0xff]
    %v204 = vld [vmem:[%s18] sm:$0x1]
    %v205 = vld [vmem:[%s19] sm:$0xff]
    %v206 = vld [vmem:[%s19 + $0x8] sm:$0xff]
    %v207 = vld [vmem:[%s19 + $0x10] sm:$0xff]
    %v208 = vld [vmem:[%s19 + $0x18] sm:$0xff]
    %v209 = vld [vmem:[%s19 + $0x20] sm:$0xff]
    %v210 = vld [vmem:[%s19 + $0x28] sm:$0xff]
    %v211 = vld [vmem:[%s19 + $0x30] sm:$0xff]
    %v212 = vld [vmem:[%s19 + $0x38] sm:$0xff]
    %v213 = vld [vmem:[%s20] sm:$0x1]
    %v214 = vld [vmem:[%s21] sm:$0x1]
    %v215 = vld [vmem:[%s22] sm:$0x1]
    %v216 = vld [vmem:[#allocation2] sm:$0x1]
    %v217 = vld [vmem:[#allocation2 + $0x2] sm:$0x1]
    %v218 = vld [vmem:[#allocation2 + $0x4] sm:$0x1]
    %v219 = vld [vmem:[#allocation2 + $0x6] sm:$0x1]
    %v220 = vld [vmem:[#allocation2 + $0x8] sm:$0x1]
    %v221 = vld [vmem:[#allocation2 + $0xa] sm:$0x1]
    %v222 = vld [vmem:[#allocation2 + $0xc] sm:$0x1]
    %v223 = vld [vmem:[#allocation2 + $0xe] sm:$0x1]
    %v224 = vld [vmem:[%s1] sm:$0x1]
    %v225 = vld [vmem:[%s1 + $0x2] sm:$0x1]
    %v226 = vld [vmem:[%s1 + $0x4] sm:$0x1]
    %v227 = vld [vmem:[%s1 + $0x6] sm:$0x1]
    %v228 = vld [vmem:[%s1 + $0x8] sm:$0x1]
    %v229 = vld [vmem:[%s1 + $0xa] sm:$0x1]
    %v230 = vld [vmem:[%s1 + $0xc] sm:$0x1]
    %v231 = vld [vmem:[%s1 + $0xe] sm:$0x1]
    %v232 = vld [vmem:[%s1 + $0x10] sm:$0x1]
    %v233 = vld [vmem:[%s1 + $0x12] sm:$0x1]
    %v234 = vld [vmem:[%s1 + $0x14] sm:$0x1]
    %v235 = vld [vmem:[%s1 + $0x16] sm:$0x1]
    %v236 = vld [vmem:[%s1 + $0x18] sm:$0x1]
    %v237 = vld [vmem:[%s1 + $0x1a] sm:$0x1]
    %v238 = vld [vmem:[%s1 + $0x1c] sm:$0x1]
    %v239 = vld [vmem:[%s1 + $0x1e] sm:$0x1]
    %v241 = vperm.slane %v175, 0
    %v251 = vrot.slane %v217, 7
    %vm252 = vcmask 1041409
    %v253 = vsel %vm252, %v251, %v216
    %v254 = vrot.slane %v218, 6
    %vm255 = vcmask 1042434
    %v256 = vsel %vm255, %v254, %v253
    %v257 = vrot.slane %v219, 5
    %vm258 = vcmask 1043459
    %v259 = vsel %vm258, %v257, %v256
    %v260 = vrot.slane %v220, 4
    %vm261 = vcmask 1044484
    %v262 = vsel %vm261, %v260, %v259
    %v263 = vrot.slane %v221, 3
    %vm264 = vcmask 1045509
    %v265 = vsel %vm264, %v263, %v262
    %v266 = vrot.slane %v222, 2
    %vm267 = vcmask 1046534
    %v268 = vsel %vm267, %v266, %v265
    %v269 = vrot.slane %v223, 1
    %vm270 = vcmask 1047559
    %v271 = vsel %vm270, %v269, %v268
    %vm272 = vcmask 261120
    %v273 = vsel %vm272, %v271, 0
    %275 = vmatpush.msra.mxu0 0.0
    %276 = vmatpush.msra.mxu0 0.0
    %277 = vmatpush.msra.mxu0 0.0
    %278 = vmatpush.msra.mxu0 0.0
    %279 = vmatpush.msra.mxu0 0.0
    %280 = vmatpush.msra.mxu0 0.0
    %281 = vmatpush.msra.mxu0 0.0
    %282 = vmatpush.msra.mxu0 0.0
    %283 = vmatpush.msra.mxu0 0.0
    %284 = vmatpush.msra.mxu0 0.0
    %285 = vmatpush.msra.mxu0 0.0
    %286 = vmatpush.msra.mxu0 0.0
    %287 = vmatpush.msra.mxu0 %v174
    %288 = vmatpush.msra.mxu0 %v173
    %289 = vmatpush.msra.mxu0 %v172
    %290 = vmatpush.msra.mxu0 %v171
    %291 = vmatmul.f32.gmra.mxu0 %v273
    %v292 = vpop.f32.mrf.mxu0
    %v293 = vadd.f32 %v241, %v292
    %294 = vdwg.mxu0
    %v295 = vmul.f32 %v293, 0.35355338
    %297 = vrot.lane.b32.xlu0 %v293, 96
    %v298 = vpop.permute.xlu0 %297
    %vm299 = vcmask 64512
    %v301 = vsel %vm299, %v295, 0
    %v303 = vsel %vm299, %v298, 0
    %305 = vmatpush.xpose.msra.mxu0 0.0
    %306 = vmatpush.xpose.msra.mxu0 0.0
    %307 = vmatpush.xpose.msra.mxu0 0.0
    %308 = vmatpush.xpose.msra.mxu0 0.0
    %309 = vmatpush.xpose.msra.mxu0 0.0
    %310 = vmatpush.xpose.msra.mxu0 0.0
    %311 = vmatpush.xpose.msra.mxu0 0.0
    %312 = vmatpush.xpose.msra.mxu0 0.0
    %313 = vmatpush.xpose.msra.mxu0 0.0
    %314 = vmatpush.xpose.msra.mxu0 0.0
    %315 = vmatpush.xpose.msra.mxu0 0.0
    %316 = vmatpush.xpose.msra.mxu0 0.0
    %317 = vmatpush.xpose.msra.mxu0 0.0
    %318 = vmatpush.xpose.msra.mxu0 0.0
    %319 = vmatpush.xpose.msra.mxu0 0.0
    %320 = vmatpush.xpose.msra.mxu0 %v303
    %321 = vmatmul.f32.gmra.mxu0 %v301
    %v322 = vpop.f32.mrf.mxu0
    %v323 = vadd.f32 0.0, %v322
    %324 = vdwg.mxu0
    %v325 = vsel %vm299, %v323, -inf
    %326 = vmax.xlane.f32.xlu0 %v325
    %v327 = vpop.xlane.xlu0 %326
    %v328 = vsub.f32 %v323, %v327
    %v329 = vmul.f32 %v328, 1.442695
    %v330 = vpow.pop %v329
    %v331 = vsel %vm299, %v330, 0.0
    %332 = vadd.xlane.f32.xlu0 %v331
    %v333 = vpop.xlane.xlu0 %332
    %v334 = vrcp.pop %v333
    %v335 = vmul.f32 %v333, %v334
    %v336 = vsub.f32 1.0, %v335
    %v337 = vmul.f32 %v334, %v336
    %v338 = vadd.f32 %v334, %v337
    %vm339 = vweird.f32 %v333
    %vm340 = vweird.f32 %v334
    %vm341 = vmor %vm339, %vm340
    %v342 = vsel %vm341, %v334, %v338
    %v343 = vand.u32 2147483647, %v333
    %vm344 = vcmp.eq.f32.partialorder %v343, 8.507059e+37
    %v345 = vand.u32 %v333, 2147483648
    %v346 = vor.u32 1.1754944e-38, %v345
    %v347 = vsel %vm344, %v346, %v342
    %v348 = vmul.f32 %v330, %v347
    %349 = vrot.lane.b32.xlu0 %v293, 64
    %v350 = vpop.permute.xlu0 %349
    %v353 = vsel %vm299, %v348, 0
    %355 = vmatpush.msra.mxu0 0.0
    %356 = vmatpush.msra.mxu0 0.0
    %357 = vmatpush.msra.mxu0 0.0
    %358 = vmatpush.msra.mxu0 0.0
    %359 = vmatpush.msra.mxu0 0.0
    %360 = vmatpush.msra.mxu0 0.0
    %361 = vmatpush.msra.mxu0 0.0
    %362 = vmatpush.msra.mxu0 0.0
    %363 = vmatpush.msra.mxu0 0.0
    %364 = vmatpush.msra.mxu0 0.0
    %365 = vmatpush.msra.mxu0 0.0
    %366 = vmatpush.msra.mxu0 0.0
    %367 = vmatpush.msra.mxu0 0.0
    %368 = vmatpush.msra.mxu0 0.0
    %369 = vmatpush.msra.mxu0 0.0
    %370 = vmatpush.msra.mxu0 %v350
    %371 = vmatmul.f32.gmra.mxu0 %v353
    %v372 = vpop.f32.mrf.mxu0
    %v373 = vadd.f32 0.0, %v372
    %374 = vdwg.mxu0
    %375 = vrot.lane.b32.xlu0 %v295, 120
    %v376 = vpop.permute.xlu0 %375
    %377 = vrot.lane.b32.xlu0 %v293, 88
    %v378 = vpop.permute.xlu0 %377
    %v379 = vsel %vm299, %v376, 0
    %v381 = vsel %vm299, %v378, 0
    %383 = vmatpush.xpose.msra.mxu0 0.0
    %384 = vmatpush.xpose.msra.mxu0 0.0
    %385 = vmatpush.xpose.msra.mxu0 0.0
    %386 = vmatpush.xpose.msra.mxu0 0.0
    %387 = vmatpush.xpose.msra.mxu0 0.0
    %388 = vmatpush.xpose.msra.mxu0 0.0
    %389 = vmatpush.xpose.msra.mxu0 0.0
    %390 = vmatpush.xpose.msra.mxu0 0.0
    %391 = vmatpush.xpose.msra.mxu0 0.0
    %392 = vmatpush.xpose.msra.mxu0 0.0
    %393 = vmatpush.xpose.msra.mxu0 0.0
    %394 = vmatpush.xpose.msra.mxu0 0.0
    %395 = vmatpush.xpose.msra.mxu0 0.0
    %396 = vmatpush.xpose.msra.mxu0 0.0
    %397 = vmatpush.xpose.msra.mxu0 0.0
    %398 = vmatpush.xpose.msra.mxu0 %v381
    %399 = vmatmul.f32.gmra.mxu0 %v379
    %v400 = vpop.f32.mrf.mxu0
    %v401 = vadd.f32 0.0, %v400
    %402 = vdwg.mxu0
    %v403 = vsel %vm299, %v401, -inf
    %404 = vmax.xlane.f32.xlu0 %v403
    %v405 = vpop.xlane.xlu0 %404
    %v406 = vsub.f32 %v401, %v405
    %v407 = vmul.f32 %v406, 1.442695
    %v408 = vpow.pop %v407
    %v409 = vsel %vm299, %v408, 0.0
    %410 = vadd.xlane.f32.xlu0 %v409
    %v411 = vpop.xlane.xlu0 %410
    %v412 = vrcp.pop %v411
    %v413 = vmul.f32 %v411, %v412
    %v414 = vsub.f32 1.0, %v413
    %v415 = vmul.f32 %v412, %v414
    %v416 = vadd.f32 %v412, %v415
    %vm417 = vweird.f32 %v411
    %vm418 = vweird.f32 %v412
    %vm419 = vmor %vm417, %vm418
    %v420 = vsel %vm419, %v412, %v416
    %v421 = vand.u32 2147483647, %v411
    %vm422 = vcmp.eq.f32.partialorder %v421, 8.507059e+37
    %v423 = vand.u32 %v411, 2147483648
    %v424 = vor.u32 1.1754944e-38, %v423
    %v425 = vsel %vm422, %v424, %v420
    %v426 = vmul.f32 %v408, %v425
    %427 = vrot.lane.b32.xlu0 %v293, 56
    %v428 = vpop.permute.xlu0 %427
    %v431 = vsel %vm299, %v426, 0
    %433 = vmatpush.msra.mxu0 0.0
    %434 = vmatpush.msra.mxu0 0.0
    %435 = vmatpush.msra.mxu0 0.0
    %436 = vmatpush.msra.mxu0 0.0
    %437 = vmatpush.msra.mxu0 0.0
    %438 = vmatpush.msra.mxu0 0.0
    %439 = vmatpush.msra.mxu0 0.0
    %440 = vmatpush.msra.mxu0 0.0
    %441 = vmatpush.msra.mxu0 0.0
    %442 = vmatpush.msra.mxu0 0.0
    %443 = vmatpush.msra.mxu0 0.0
    %444 = vmatpush.msra.mxu0 0.0
    %445 = vmatpush.msra.mxu0 0.0
    %446 = vmatpush.msra.mxu0 0.0
    %447 = vmatpush.msra.mxu0 0.0
    %448 = vmatpush.msra.mxu0 %v428
    %449 = vmatmul.f32.gmra.mxu0 %v431
    %v450 = vpop.f32.mrf.mxu0
    %v451 = vadd.f32 0.0, %v450
    %452 = vdwg.mxu0
    %453 = vrot.lane.b32.xlu0 %v295, 112
    %v454 = vpop.permute.xlu0 %453
    %455 = vrot.lane.b32.xlu0 %v293, 80
    %v456 = vpop.permute.xlu0 %455
    %v457 = vsel %vm299, %v454, 0
    %v459 = vsel %vm299, %v456, 0
    %461 = vmatpush.xpose.msra.mxu0 0.0
    %462 = vmatpush.xpose.msra.mxu0 0.0
    %463 = vmatpush.xpose.msra.mxu0 0.0
    %464 = vmatpush.xpose.msra.mxu0 0.0
    %465 = vmatpush.xpose.msra.mxu0 0.0
    %466 = vmatpush.xpose.msra.mxu0 0.0
    %467 = vmatpush.xpose.msra.mxu0 0.0
    %468 = vmatpush.xpose.msra.mxu0 0.0
    %469 = vmatpush.xpose.msra.mxu0 0.0
    %470 = vmatpush.xpose.msra.mxu0 0.0
    %471 = vmatpush.xpose.msra.mxu0 0.0
    %472 = vmatpush.xpose.msra.mxu0 0.0
    %473 = vmatpush.xpose.msra.mxu0 0.0
    %474 = vmatpush.xpose.msra.mxu0 0.0
    %475 = vmatpush.xpose.msra.mxu0 0.0
    %476 = vmatpush.xpose.msra.mxu0 %v459
    %477 = vmatmul.f32.gmra.mxu0 %v457
    %v478 = vpop.f32.mrf.mxu0
    %v479 = vadd.f32 0.0, %v478
    %480 = vdwg.mxu0
    %v481 = vsel %vm299, %v479, -inf
    %482 = vmax.xlane.f32.xlu0 %v481
    %v483 = vpop.xlane.xlu0 %482
    %v484 = vsub.f32 %v479, %v483
    %v485 = vmul.f32 %v484, 1.442695
    %v486 = vpow.pop %v485
    %v487 = vsel %vm299, %v486, 0.0
    %488 = vadd.xlane.f32.xlu0 %v487
    %v489 = vpop.xlane.xlu0 %488
    %v490 = vrcp.pop %v489
    %v491 = vmul.f32 %v489, %v490
    %v492 = vsub.f32 1.0, %v491
    %v493 = vmul.f32 %v490, %v492
    %v494 = vadd.f32 %v490, %v493
    %vm495 = vweird.f32 %v489
    %vm496 = vweird.f32 %v490
    %vm497 = vmor %vm495, %vm496
    %v498 = vsel %vm497, %v490, %v494
    %v499 = vand.u32 2147483647, %v489
    %vm500 = vcmp.eq.f32.partialorder %v499, 8.507059e+37
    %v501 = vand.u32 %v489, 2147483648
    %v502 = vor.u32 1.1754944e-38, %v501
    %v503 = vsel %vm500, %v502, %v498
    %v504 = vmul.f32 %v486, %v503
    %505 = vrot.lane.b32.xlu0 %v293, 48
    %v506 = vpop.permute.xlu0 %505
    %v509 = vsel %vm299, %v504, 0
    %511 = vmatpush.msra.mxu0 0.0
    %512 = vmatpush.msra.mxu0 0.0
    %513 = vmatpush.msra.mxu0 0.0
    %514 = vmatpush.msra.mxu0 0.0
    %515 = vmatpush.msra.mxu0 0.0
    %516 = vmatpush.msra.mxu0 0.0
    %517 = vmatpush.msra.mxu0 0.0
    %518 = vmatpush.msra.mxu0 0.0
    %519 = vmatpush.msra.mxu0 0.0
    %520 = vmatpush.msra.mxu0 0.0
    %521 = vmatpush.msra.mxu0 0.0
    %522 = vmatpush.msra.mxu0 0.0
    %523 = vmatpush.msra.mxu0 0.0
    %524 = vmatpush.msra.mxu0 0.0
    %525 = vmatpush.msra.mxu0 0.0
    %526 = vmatpush.msra.mxu0 %v506
    %527 = vmatmul.f32.gmra.mxu0 %v509
    %v528 = vpop.f32.mrf.mxu0
    %v529 = vadd.f32 0.0, %v528
    %530 = vdwg.mxu0
    %531 = vrot.lane.b32.xlu0 %v295, 104
    %v532 = vpop.permute.xlu0 %531
    %533 = vrot.lane.b32.xlu0 %v293, 72
    %v534 = vpop.permute.xlu0 %533
    %v535 = vsel %vm299, %v532, 0
    %v537 = vsel %vm299, %v534, 0
    %539 = vmatpush.xpose.msra.mxu0 0.0
    %540 = vmatpush.xpose.msra.mxu0 0.0
    %541 = vmatpush.xpose.msra.mxu0 0.0
    %542 = vmatpush.xpose.msra.mxu0 0.0
    %543 = vmatpush.xpose.msra.mxu0 0.0
    %544 = vmatpush.xpose.msra.mxu0 0.0
    %545 = vmatpush.xpose.msra.mxu0 0.0
    %546 = vmatpush.xpose.msra.mxu0 0.0
    %547 = vmatpush.xpose.msra.mxu0 0.0
    %548 = vmatpush.xpose.msra.mxu0 0.0
    %549 = vmatpush.xpose.msra.mxu0 0.0
    %550 = vmatpush.xpose.msra.mxu0 0.0
    %551 = vmatpush.xpose.msra.mxu0 0.0
    %552 = vmatpush.xpose.msra.mxu0 0.0
    %553 = vmatpush.xpose.msra.mxu0 0.0
    %554 = vmatpush.xpose.msra.mxu0 %v537
    %555 = vmatmul.f32.gmra.mxu0 %v535
    %v556 = vpop.f32.mrf.mxu0
    %v557 = vadd.f32 0.0, %v556
    %558 = vdwg.mxu0
    %v559 = vsel %vm299, %v557, -inf
    %560 = vmax.xlane.f32.xlu0 %v559
    %v561 = vpop.xlane.xlu0 %560
    %v562 = vsub.f32 %v557, %v561
    %v563 = vmul.f32 %v562, 1.442695
    %v564 = vpow.pop %v563
    %v565 = vsel %vm299, %v564, 0.0
    %566 = vadd.xlane.f32.xlu0 %v565
    %v567 = vpop.xlane.xlu0 %566
    %v568 = vrcp.pop %v567
    %v569 = vmul.f32 %v567, %v568
    %v570 = vsub.f32 1.0, %v569
    %v571 = vmul.f32 %v568, %v570
    %v572 = vadd.f32 %v568, %v571
    %vm573 = vweird.f32 %v567
    %vm574 = vweird.f32 %v568
    %vm575 = vmor %vm573, %vm574
    %v576 = vsel %vm575, %v568, %v572
    %v577 = vand.u32 2147483647, %v567
    %vm578 = vcmp.eq.f32.partialorder %v577, 8.507059e+37
    %v579 = vand.u32 %v567, 2147483648
    %v580 = vor.u32 1.1754944e-38, %v579
    %v581 = vsel %vm578, %v580, %v576
    %v582 = vmul.f32 %v564, %v581
    %583 = vrot.lane.b32.xlu0 %v293, 40
    %v584 = vpop.permute.xlu0 %583
    %v587 = vsel %vm299, %v582, 0
    %589 = vmatpush.msra.mxu0 0.0
    %590 = vmatpush.msra.mxu0 0.0
    %591 = vmatpush.msra.mxu0 0.0
    %592 = vmatpush.msra.mxu0 0.0
    %593 = vmatpush.msra.mxu0 0.0
    %594 = vmatpush.msra.mxu0 0.0
    %595 = vmatpush.msra.mxu0 0.0
    %596 = vmatpush.msra.mxu0 0.0
    %597 = vmatpush.msra.mxu0 0.0
    %598 = vmatpush.msra.mxu0 0.0
    %599 = vmatpush.msra.mxu0 0.0
    %600 = vmatpush.msra.mxu0 0.0
    %601 = vmatpush.msra.mxu0 0.0
    %602 = vmatpush.msra.mxu0 0.0
    %603 = vmatpush.msra.mxu0 0.0
    %604 = vmatpush.msra.mxu0 %v584
    %605 = vmatmul.f32.gmra.mxu0 %v587
    %v606 = vpop.f32.mrf.mxu0
    %v607 = vadd.f32 0.0, %v606
    %608 = vdwg.mxu0
    %610 = vrot.lane.b32.xlu0 %v451, 8
    %v611 = vpop.permute.xlu0 %610
    %614 = vrot.lane.b32.xlu0 %v529, 16
    %v615 = vpop.permute.xlu0 %614
    %618 = vrot.lane.b32.xlu0 %v607, 24
    %v619 = vpop.permute.xlu0 %618
    %v621 = vsel %vm299, %v373, %v611
    %vm622 = vcmask 130048
    %v623 = vsel %vm622, %v621, %v615
    %vm624 = vcmask 195584
    %v625 = vsel %vm624, %v623, %v619
    %v627 = vperm.slane %v180, 0
    %v630 = vsel %vm272, %v625, 0
    %632 = vmatpush.msra.mxu0 0.0
    %633 = vmatpush.msra.mxu0 0.0
    %634 = vmatpush.msra.mxu0 0.0
    %635 = vmatpush.msra.mxu0 0.0
    %636 = vmatpush.msra.mxu0 0.0
    %637 = vmatpush.msra.mxu0 0.0
    %638 = vmatpush.msra.mxu0 0.0
    %639 = vmatpush.msra.mxu0 0.0
    %640 = vmatpush.msra.mxu0 0.0
    %641 = vmatpush.msra.mxu0 0.0
    %642 = vmatpush.msra.mxu0 0.0
    %643 = vmatpush.msra.mxu0 0.0
    %644 = vmatpush.msra.mxu0 %v179
    %645 = vmatpush.msra.mxu0 %v178
    %646 = vmatpush.msra.mxu0 %v177
    %647 = vmatpush.msra.mxu0 %v176
    %648 = vmatmul.f32.gmra.mxu0 %v630
    %v649 = vpop.f32.mrf.mxu0
    %v650 = vadd.f32 %v627, %v649
    %651 = vdwg.mxu0
    %v653 = vrot.slane %v650, 1
    %v654 = vrot.slane %v650, 2
    %v655 = vrot.slane %v650, 3
    %v656 = vrot.slane %v650, 4
    %v657 = vrot.slane %v650, 5
    %v658 = vrot.slane %v650, 6
    %v659 = vrot.slane %v650, 7
    %v668 = vadd.f32 %v216, %v650
    %v669 = vadd.f32 %v217, %v653
    %v670 = vadd.f32 %v218, %v654
    %v671 = vadd.f32 %v219, %v655
    %v672 = vadd.f32 %v220, %v656
    %v673 = vadd.f32 %v221, %v657
    %v674 = vadd.f32 %v222, %v658
    %v675 = vadd.f32 %v223, %v659
    %v684 = vrot.slane %v669, 7
    %v685 = vsel %vm252, %v684, %v668
    %v686 = vrot.slane %v670, 6
    %v687 = vsel %vm255, %v686, %v685
    %v688 = vrot.slane %v671, 5
    %v689 = vsel %vm258, %v688, %v687
    %v690 = vrot.slane %v672, 4
    %v691 = vsel %vm261, %v690, %v689
    %v692 = vrot.slane %v673, 3
    %v693 = vsel %vm264, %v692, %v691
    %v694 = vrot.slane %v674, 2
    %v695 = vsel %vm267, %v694, %v693
    %v696 = vrot.slane %v675, 1
    %v697 = vsel %vm270, %v696, %v695
    %v699 = vsel %vm272, %v697, 0.0
    %700 = vadd.xlane.f32.xlu0 %v699
    %v701 = vpop.xlane.xlu0 %700
    %v702 = vrcp.pop 32.0
    %v703 = vmul.f32 32.0, %v702
    %v704 = vsub.f32 1.0, %v703
    %v705 = vmul.f32 %v702, %v704
    %v706 = vadd.f32 %v702, %v705
    %vm707 = vweird.f32 %v702
    %v708 = vsel %vm707, %v702, %v706
    %v709 = vmul.f32 %v701, %v708
    %v711 = vrot.slane %v709, 1
    %v712 = vrot.slane %v709, 2
    %v713 = vrot.slane %v709, 3
    %v714 = vrot.slane %v709, 4
    %v715 = vrot.slane %v709, 5
    %v716 = vrot.slane %v709, 6
    %v717 = vrot.slane %v709, 7
    %v726 = vsub.f32 %v668, %v709
    %v727 = vsub.f32 %v669, %v711
    %v728 = vsub.f32 %v670, %v712
    %v729 = vsub.f32 %v671, %v713
    %v730 = vsub.f32 %v672, %v714
    %v731 = vsub.f32 %v673, %v715
    %v732 = vsub.f32 %v674, %v716
    %v733 = vsub.f32 %v675, %v717
    %v734 = vmul.f32 %v726, %v726
    %v735 = vmul.f32 %v727, %v727
    %v736 = vmul.f32 %v728, %v728
    %v737 = vmul.f32 %v729, %v729
    %v738 = vmul.f32 %v730, %v730
    %v739 = vmul.f32 %v731, %v731
    %v740 = vmul.f32 %v732, %v732
    %v741 = vmul.f32 %v733, %v733
    %v750 = vrot.slane %v735, 7
    %v751 = vsel %vm252, %v750, %v734
    %v752 = vrot.slane %v736, 6
    %v753 = vsel %vm255, %v752, %v751
    %v754 = vrot.slane %v737, 5
    %v755 = vsel %vm258, %v754, %v753
    %v756 = vrot.slane %v738, 4
    %v757 = vsel %vm261, %v756, %v755
    %v758 = vrot.slane %v739, 3
    %v759 = vsel %vm264, %v758, %v757
    %v760 = vrot.slane %v740, 2
    %v761 = vsel %vm267, %v760, %v759
    %v762 = vrot.slane %v741, 1
    %v763 = vsel %vm270, %v762, %v761
    %v765 = vsel %vm272, %v763, 0.0
    %766 = vadd.xlane.f32.xlu0 %v765
    %v767 = vpop.xlane.xlu0 %766
    %v768 = vmul.f32 %v767, %v708
    %v769 = vadd.f32 %v768, 1e-05
    %v770 = vrsqrt.pop %v769
    %v771 = vmul.f32 %v770, %v769
    %v772 = vmul.f32 %v771, %v770
    %v773 = vmul.f32 0.5, %v772
    %v774 = vsub.f32 1.5, %v773
    %v775 = vmul.f32 %v770, %v774
    %vm776 = vweird.f32 %v769
    %vm777 = vweird.f32 %v770
    %vm778 = vmor %vm776, %vm777
    %v779 = vsel %vm778, %v770, %v775
    %v781 = vrot.slane %v779, 1
    %v782 = vrot.slane %v779, 2
    %v783 = vrot.slane %v779, 3
    %v784 = vrot.slane %v779, 4
    %v785 = vrot.slane %v779, 5
    %v786 = vrot.slane %v779, 6
    %v787 = vrot.slane %v779, 7
    %v796 = vmul.f32 %v726, %v779
    %v797 = vmul.f32 %v727, %v781
    %v798 = vmul.f32 %v728, %v782
    %v799 = vmul.f32 %v729, %v783
    %v800 = vmul.f32 %v730, %v784
    %v801 = vmul.f32 %v731, %v785
    %v802 = vmul.f32 %v732, %v786
    %v803 = vmul.f32 %v733, %v787
    %v805 = vperm.slane %v181, 0
    %v807 = vmul.f32 %v796, %v805
    %v808 = vmul.f32 %v797, %v805
    %v809 = vmul.f32 %v798, %v805
    %v810 = vmul.f32 %v799, %v805
    %v811 = vmul.f32 %v800, %v805
    %v812 = vmul.f32 %v801, %v805
    %v813 = vmul.f32 %v802, %v805
    %v814 = vmul.f32 %v803, %v805
    %v816 = vperm.slane %v182, 0
    %v818 = vadd.f32 %v807, %v816
    %v819 = vadd.f32 %v808, %v816
    %v820 = vadd.f32 %v809, %v816
    %v821 = vadd.f32 %v810, %v816
    %v822 = vadd.f32 %v811, %v816
    %v823 = vadd.f32 %v812, %v816
    %v824 = vadd.f32 %v813, %v816
    %v825 = vadd.f32 %v814, %v816
    %v827 = vperm.slane %v192, 0
    %v845 = vrot.slane %v225, 7
    %v846 = vsel %vm252, %v845, %v224
    %v847 = vrot.slane %v226, 6
    %v848 = vsel %vm255, %v847, %v846
    %v849 = vrot.slane %v227, 5
    %v850 = vsel %vm258, %v849, %v848
    %v851 = vrot.slane %v228, 4
    %v852 = vsel %vm261, %v851, %v850
    %v853 = vrot.slane %v229, 3
    %v854 = vsel %vm264, %v853, %v852
    %v855 = vrot.slane %v230, 2
    %v856 = vsel %vm267, %v855, %v854
    %v857 = vrot.slane %v231, 1
    %v858 = vsel %vm270, %v857, %v856
    %v859 = vrot.slane %v233, 7
    %v860 = vsel %vm252, %v859, %v232
    %v861 = vrot.slane %v234, 6
    %v862 = vsel %vm255, %v861, %v860
    %v863 = vrot.slane %v235, 5
    %v864 = vsel %vm258, %v863, %v862
    %v865 = vrot.slane %v236, 4
    %v866 = vsel %vm261, %v865, %v864
    %v867 = vrot.slane %v237, 3
    %v868 = vsel %vm264, %v867, %v866
    %v869 = vrot.slane %v238, 2
    %v870 = vsel %vm267, %v869, %v868
    %v871 = vrot.slane %v239, 1
    %v872 = vsel %vm270, %v871, %v870
    %v873 = vsel %vm272, %v858, 0
    %v875 = vsel %vm272, %v872, 0
    %877 = vmatpush.msra.mxu0 0.0
    %878 = vmatpush.msra.mxu0 0.0
    %879 = vmatpush.msra.mxu0 0.0
    %880 = vmatpush.msra.mxu0 0.0
    %881 = vmatpush.msra.mxu0 0.0
    %882 = vmatpush.msra.mxu0 0.0
    %883 = vmatpush.msra.mxu0 0.0
    %884 = vmatpush.msra.mxu0 0.0
    %885 = vmatpush.msra.mxu0 0.0
    %886 = vmatpush.msra.mxu0 0.0
    %887 = vmatpush.msra.mxu0 0.0
    %888 = vmatpush.msra.mxu0 0.0
    %889 = vmatpush.msra.mxu0 %v191
    %890 = vmatpush.msra.mxu0 %v190
    %891 = vmatpush.msra.mxu0 %v189
    %892 = vmatpush.msra.mxu0 %v188
    %893 = vmatmul.f32.gmra.mxu0 %v873
    %v894 = vpop.f32.mrf.mxu0
    %v895 = vadd.f32 %v827, %v894
    %896 = vmatmul.f32.gmra.mxu0 %v875
    %v897 = vpop.f32.mrf.mxu0
    %v898 = vadd.f32 %v827, %v897
    %899 = vdwg.mxu0
    %v901 = vsel %vm272, %v170, 0
    %v904 = vsel %vm272, %v895, 0
    %v907 = vsel %vm272, %v898, 0
    %909 = vmatpush.xpose.msra.mxu0 0.0
    %910 = vmatpush.xpose.msra.mxu0 0.0
    %911 = vmatpush.xpose.msra.mxu0 0.0
    %912 = vmatpush.xpose.msra.mxu0 0.0
    %913 = vmatpush.xpose.msra.mxu0 0.0
    %914 = vmatpush.xpose.msra.mxu0 0.0
    %915 = vmatpush.xpose.msra.mxu0 0.0
    %916 = vmatpush.xpose.msra.mxu0 0.0
    %917 = vmatpush.xpose.msra.mxu0 0.0
    %918 = vmatpush.xpose.msra.mxu0 0.0
    %919 = vmatpush.xpose.msra.mxu0 0.0
    %920 = vmatpush.xpose.msra.mxu0 0.0
    %921 = vmatpush.xpose.msra.mxu0 0.0
    %922 = vmatpush.xpose.msra.mxu0 0.0
    %923 = vmatpush.xpose.msra.mxu0 %v907
    %924 = vmatpush.xpose.msra.mxu0 %v904
    %925 = vmatmul.f32.gmra.mxu0 %v901
    %v926 = vpop.f32.mrf.mxu0
    %v927 = vadd.f32 0.0, %v926
    %928 = vdwg.mxu0
    %v929 = vmul.f32 %v927, 0.17677669
    %v930 = vsel %vm622, %v929, -inf
    %931 = vmax.xlane.f32.xlu0 %v930
    %v932 = vpop.xlane.xlu0 %931
    %v933 = vsub.f32 %v929, %v932
    %v934 = vmul.f32 %v933, 1.442695
    %v935 = vpow.pop %v934
    %v936 = vsel %vm622, %v935, 0.0
    %937 = vadd.xlane.f32.xlu0 %v936
    %v938 = vpop.xlane.xlu0 %937
    %v939 = vrcp.pop %v938
    %v940 = vmul.f32 %v938, %v939
    %v941 = vsub.f32 1.0, %v940
    %v942 = vmul.f32 %v939, %v941
    %v943 = vadd.f32 %v939, %v942
    %vm944 = vweird.f32 %v938
    %vm945 = vweird.f32 %v939
    %vm946 = vmor %vm944, %vm945
    %v947 = vsel %vm946, %v939, %v943
    %v948 = vand.u32 2147483647, %v938
    %vm949 = vcmp.eq.f32.partialorder %v948, 8.507059e+37
    %v950 = vand.u32 %v938, 2147483648
    %v951 = vor.u32 1.1754944e-38, %v950
    %v952 = vsel %vm949, %v951, %v947
    %v953 = vmul.f32 %v935, %v952
    %v955 = vsel %vm622, %v953, 0
    %957 = vmatpush.msra.mxu0 0.0
    %958 = vmatpush.msra.mxu0 0.0
    %959 = vmatpush.msra.mxu0 0.0
    %960 = vmatpush.msra.mxu0 0.0
    %961 = vmatpush.msra.mxu0 0.0
    %962 = vmatpush.msra.mxu0 0.0
    %963 = vmatpush.msra.mxu0 0.0
    %964 = vmatpush.msra.mxu0 0.0
    %965 = vmatpush.msra.mxu0 0.0
    %966 = vmatpush.msra.mxu0 0.0
    %967 = vmatpush.msra.mxu0 0.0
    %968 = vmatpush.msra.mxu0 0.0
    %969 = vmatpush.msra.mxu0 0.0
    %970 = vmatpush.msra.mxu0 0.0
    %971 = vmatpush.msra.mxu0 %v898
    %972 = vmatpush.msra.mxu0 %v895
    %973 = vmatmul.f32.gmra.mxu0 %v955
    %v974 = vpop.f32.mrf.mxu0
    %v975 = vadd.f32 0.0, %v974
    %976 = vdwg.mxu0
    %977 = vrot.lane.b32.xlu0 %v895, 96
    %v978 = vpop.permute.xlu0 %977
    %979 = vrot.lane.b32.xlu0 %v898, 96
    %v980 = vpop.permute.xlu0 %979
    %983 = vmatpush.msra.mxu0 0.0
    %984 = vmatpush.msra.mxu0 0.0
    %985 = vmatpush.msra.mxu0 0.0
    %986 = vmatpush.msra.mxu0 0.0
    %987 = vmatpush.msra.mxu0 0.0
    %988 = vmatpush.msra.mxu0 0.0
    %989 = vmatpush.msra.mxu0 0.0
    %990 = vmatpush.msra.mxu0 0.0
    %991 = vmatpush.msra.mxu0 0.0
    %992 = vmatpush.msra.mxu0 0.0
    %993 = vmatpush.msra.mxu0 0.0
    %994 = vmatpush.msra.mxu0 0.0
    %995 = vmatpush.msra.mxu0 0.0
    %996 = vmatpush.msra.mxu0 0.0
    %997 = vmatpush.msra.mxu0 %v980
    %998 = vmatpush.msra.mxu0 %v978
    %999 = vmatmul.f32.gmra.mxu0 %v955
    %v1000 = vpop.f32.mrf.mxu0
    %v1001 = vadd.f32 0.0, %v1000
    %1002 = vdwg.mxu0
    %v1004 = vperm.slane %v187, 0
    %v1014 = vrot.slane %v819, 7
    %v1015 = vsel %vm252, %v1014, %v818
    %v1016 = vrot.slane %v820, 6
    %v1017 = vsel %vm255, %v1016, %v1015
    %v1018 = vrot.slane %v821, 5
    %v1019 = vsel %vm258, %v1018, %v1017
    %v1020 = vrot.slane %v822, 4
    %v1021 = vsel %vm261, %v1020, %v1019
    %v1022 = vrot.slane %v823, 3
    %v1023 = vsel %vm264, %v1022, %v1021
    %v1024 = vrot.slane %v824, 2
    %v1025 = vsel %vm267, %v1024, %v1023
    %v1026 = vrot.slane %v825, 1
    %v1027 = vsel %vm270, %v1026, %v1025
    %v1028 = vsel %vm272, %v1027, 0
    %1030 = vmatpush.msra.mxu0 0.0
    %1031 = vmatpush.msra.mxu0 0.0
    %1032 = vmatpush.msra.mxu0 0.0
    %1033 = vmatpush.msra.mxu0 0.0
    %1034 = vmatpush.msra.mxu0 0.0
    %1035 = vmatpush.msra.mxu0 0.0
    %1036 = vmatpush.msra.mxu0 0.0
    %1037 = vmatpush.msra.mxu0 0.0
    %1038 = vmatpush.msra.mxu0 0.0
    %1039 = vmatpush.msra.mxu0 0.0
    %1040 = vmatpush.msra.mxu0 0.0
    %1041 = vmatpush.msra.mxu0 0.0
    %1042 = vmatpush.msra.mxu0 %v186
    %1043 = vmatpush.msra.mxu0 %v185
    %1044 = vmatpush.msra.mxu0 %v184
    %1045 = vmatpush.msra.mxu0 %v183
    %1046 = vmatmul.f32.gmra.mxu0 %v1028
    %v1047 = vpop.f32.mrf.mxu0
    %v1048 = vadd.f32 %v1004, %v1047
    %1049 = vdwg.mxu0
    %v1050 = vmul.f32 %v1048, 0.35355338
    %v1052 = vsel %vm299, %v1050, 0
    %v1055 = vsel %vm299, %v975, 0
    %1057 = vmatpush.xpose.msra.mxu0 0.0
    %1058 = vmatpush.xpose.msra.mxu0 0.0
    %1059 = vmatpush.xpose.msra.mxu0 0.0
    %1060 = vmatpush.xpose.msra.mxu0 0.0
    %1061 = vmatpush.xpose.msra.mxu0 0.0
    %1062 = vmatpush.xpose.msra.mxu0 0.0
    %1063 = vmatpush.xpose.msra.mxu0 0.0
    %1064 = vmatpush.xpose.msra.mxu0 0.0
    %1065 = vmatpush.xpose.msra.mxu0 0.0
    %1066 = vmatpush.xpose.msra.mxu0 0.0
    %1067 = vmatpush.xpose.msra.mxu0 0.0
    %1068 = vmatpush.xpose.msra.mxu0 0.0
    %1069 = vmatpush.xpose.msra.mxu0 0.0
    %1070 = vmatpush.xpose.msra.mxu0 0.0
    %1071 = vmatpush.xpose.msra.mxu0 0.0
    %1072 = vmatpush.xpose.msra.mxu0 %v1055
    %1073 = vmatmul.f32.gmra.mxu0 %v1052
    %v1074 = vpop.f32.mrf.mxu0
    %v1075 = vadd.f32 0.0, %v1074
    %1076 = vdwg.mxu0
    %v1077 = vsel %vm299, %v1075, -inf
    %1078 = vmax.xlane.f32.xlu0 %v1077
    %v1079 = vpop.xlane.xlu0 %1078
    %v1080 = vsub.f32 %v1075, %v1079
    %v1081 = vmul.f32 %v1080, 1.442695
    %v1082 = vpow.pop %v1081
    %v1083 = vsel %vm299, %v1082, 0.0
    %1084 = vadd.xlane.f32.xlu0 %v1083
    %v1085 = vpop.xlane.xlu0 %1084
    %v1086 = vrcp.pop %v1085
    %v1087 = vmul.f32 %v1085, %v1086
    %v1088 = vsub.f32 1.0, %v1087
    %v1089 = vmul.f32 %v1086, %v1088
    %v1090 = vadd.f32 %v1086, %v1089
    %vm1091 = vweird.f32 %v1085
    %vm1092 = vweird.f32 %v1086
    %vm1093 = vmor %vm1091, %vm1092
    %v1094 = vsel %vm1093, %v1086, %v1090
    %v1095 = vand.u32 2147483647, %v1085
    %vm1096 = vcmp.eq.f32.partialorder %v1095, 8.507059e+37
    %v1097 = vand.u32 %v1085, 2147483648
    %v1098 = vor.u32 1.1754944e-38, %v1097
    %v1099 = vsel %vm1096, %v1098, %v1094
    %v1100 = vmul.f32 %v1082, %v1099
    %v1102 = vsel %vm299, %v1100, 0
    %1104 = vmatpush.msra.mxu0 0.0
    %1105 = vmatpush.msra.mxu0 0.0
    %1106 = vmatpush.msra.mxu0 0.0
    %1107 = vmatpush.msra.mxu0 0.0
    %1108 = vmatpush.msra.mxu0 0.0
    %1109 = vmatpush.msra.mxu0 0.0
    %1110 = vmatpush.msra.mxu0 0.0
    %1111 = vmatpush.msra.mxu0 0.0
    %1112 = vmatpush.msra.mxu0 0.0
    %1113 = vmatpush.msra.mxu0 0.0
    %1114 = vmatpush.msra.mxu0 0.0
    %1115 = vmatpush.msra.mxu0 0.0
    %1116 = vmatpush.msra.mxu0 0.0
    %1117 = vmatpush.msra.mxu0 0.0
    %1118 = vmatpush.msra.mxu0 0.0
    %1119 = vmatpush.msra.mxu0 %v1001
    %1120 = vmatmul.f32.gmra.mxu0 %v1102
    %v1121 = vpop.f32.mrf.mxu0
    %v1122 = vadd.f32 0.0, %v1121
    %1123 = vdwg.mxu0
    %1124 = vrot.lane.b32.xlu0 %v1050, 120
    %v1125 = vpop.permute.xlu0 %1124
    %1126 = vrot.lane.b32.xlu0 %v975, 120
    %v1127 = vpop.permute.xlu0 %1126
    %v1128 = vsel %vm299, %v1125, 0
    %v1130 = vsel %vm299, %v1127, 0
    %1132 = vmatpush.xpose.msra.mxu0 0.0
    %1133 = vmatpush.xpose.msra.mxu0 0.0
    %1134 = vmatpush.xpose.msra.mxu0 0.0
    %1135 = vmatpush.xpose.msra.mxu0 0.0
    %1136 = vmatpush.xpose.msra.mxu0 0.0
    %1137 = vmatpush.xpose.msra.mxu0 0.0
    %1138 = vmatpush.xpose.msra.mxu0 0.0
    %1139 = vmatpush.xpose.msra.mxu0 0.0
    %1140 = vmatpush.xpose.msra.mxu0 0.0
    %1141 = vmatpush.xpose.msra.mxu0 0.0
    %1142 = vmatpush.xpose.msra.mxu0 0.0
    %1143 = vmatpush.xpose.msra.mxu0 0.0
    %1144 = vmatpush.xpose.msra.mxu0 0.0
    %1145 = vmatpush.xpose.msra.mxu0 0.0
    %1146 = vmatpush.xpose.msra.mxu0 0.0
    %1147 = vmatpush.xpose.msra.mxu0 %v1130
    %1148 = vmatmul.f32.gmra.mxu0 %v1128
    %v1149 = vpop.f32.mrf.mxu0
    %v1150 = vadd.f32 0.0, %v1149
    %1151 = vdwg.mxu0
    %v1152 = vsel %vm299, %v1150, -inf
    %1153 = vmax.xlane.f32.xlu0 %v1152
    %v1154 = vpop.xlane.xlu0 %1153
    %v1155 = vsub.f32 %v1150, %v1154
    %v1156 = vmul.f32 %v1155, 1.442695
    %v1157 = vpow.pop %v1156
    %v1158 = vsel %vm299, %v1157, 0.0
    %1159 = vadd.xlane.f32.xlu0 %v1158
    %v1160 = vpop.xlane.xlu0 %1159
    %v1161 = vrcp.pop %v1160
    %v1162 = vmul.f32 %v1160, %v1161
    %v1163 = vsub.f32 1.0, %v1162
    %v1164 = vmul.f32 %v1161, %v1163
    %v1165 = vadd.f32 %v1161, %v1164
    %vm1166 = vweird.f32 %v1160
    %vm1167 = vweird.f32 %v1161
    %vm1168 = vmor %vm1166, %vm1167
    %v1169 = vsel %vm1168, %v1161, %v1165
    %v1170 = vand.u32 2147483647, %v1160
    %vm1171 = vcmp.eq.f32.partialorder %v1170, 8.507059e+37
    %v1172 = vand.u32 %v1160, 2147483648
    %v1173 = vor.u32 1.1754944e-38, %v1172
    %v1174 = vsel %vm1171, %v1173, %v1169
    %v1175 = vmul.f32 %v1157, %v1174
    %v1176 = vadd.f32 %v1100, %v1175
    %1178 = vrot.lane.b32.xlu0 %v1001, 120
    %v1179 = vpop.permute.xlu0 %1178
    %v1182 = vsel %vm299, %v1175, 0
    %1184 = vmatpush.msra.mxu0 0.0
    %1185 = vmatpush.msra.mxu0 0.0
    %1186 = vmatpush.msra.mxu0 0.0
    %1187 = vmatpush.msra.mxu0 0.0
    %1188 = vmatpush.msra.mxu0 0.0
    %1189 = vmatpush.msra.mxu0 0.0
    %1190 = vmatpush.msra.mxu0 0.0
    %1191 = vmatpush.msra.mxu0 0.0
    %1192 = vmatpush.msra.mxu0 0.0
    %1193 = vmatpush.msra.mxu0 0.0
    %1194 = vmatpush.msra.mxu0 0.0
    %1195 = vmatpush.msra.mxu0 0.0
    %1196 = vmatpush.msra.mxu0 0.0
    %1197 = vmatpush.msra.mxu0 0.0
    %1198 = vmatpush.msra.mxu0 0.0
    %1199 = vmatpush.msra.mxu0 %v1179
    %1200 = vmatmul.f32.gmra.mxu0 %v1182
    %v1201 = vpop.f32.mrf.mxu0
    %v1202 = vadd.f32 0.0, %v1201
    %1203 = vdwg.mxu0
    %1204 = vrot.lane.b32.xlu0 %v1050, 112
    %v1205 = vpop.permute.xlu0 %1204
    %1206 = vrot.lane.b32.xlu0 %v975, 112
    %v1207 = vpop.permute.xlu0 %1206
    %v1208 = vsel %vm299, %v1205, 0
    %v1210 = vsel %vm299, %v1207, 0
    %1212 = vmatpush.xpose.msra.mxu0 0.0
    %1213 = vmatpush.xpose.msra.mxu0 0.0
    %1214 = vmatpush.xpose.msra.mxu0 0.0
    %1215 = vmatpush.xpose.msra.mxu0 0.0
    %1216 = vmatpush.xpose.msra.mxu0 0.0
    %1217 = vmatpush.xpose.msra.mxu0 0.0
    %1218 = vmatpush.xpose.msra.mxu0 0.0
    %1219 = vmatpush.xpose.msra.mxu0 0.0
    %1220 = vmatpush.xpose.msra.mxu0 0.0
    %1221 = vmatpush.xpose.msra.mxu0 0.0
    %1222 = vmatpush.xpose.msra.mxu0 0.0
    %1223 = vmatpush.xpose.msra.mxu0 0.0
    %1224 = vmatpush.xpose.msra.mxu0 0.0
    %1225 = vmatpush.xpose.msra.mxu0 0.0
    %1226 = vmatpush.xpose.msra.mxu0 0.0
    %1227 = vmatpush.xpose.msra.mxu0 %v1210
    %1228 = vmatmul.f32.gmra.mxu0 %v1208
    %v1229 = vpop.f32.mrf.mxu0
    %v1230 = vadd.f32 0.0, %v1229
    %1231 = vdwg.mxu0
    %v1232 = vsel %vm299, %v1230, -inf
    %1233 = vmax.xlane.f32.xlu0 %v1232
    %v1234 = vpop.xlane.xlu0 %1233
    %v1235 = vsub.f32 %v1230, %v1234
    %v1236 = vmul.f32 %v1235, 1.442695
    %v1237 = vpow.pop %v1236
    %v1238 = vsel %vm299, %v1237, 0.0
    %1239 = vadd.xlane.f32.xlu0 %v1238
    %v1240 = vpop.xlane.xlu0 %1239
    %v1241 = vrcp.pop %v1240
    %v1242 = vmul.f32 %v1240, %v1241
    %v1243 = vsub.f32 1.0, %v1242
    %v1244 = vmul.f32 %v1241, %v1243
    %v1245 = vadd.f32 %v1241, %v1244
    %vm1246 = vweird.f32 %v1240
    %vm1247 = vweird.f32 %v1241
    %vm1248 = vmor %vm1246, %vm1247
    %v1249 = vsel %vm1248, %v1241, %v1245
    %v1250 = vand.u32 2147483647, %v1240
    %vm1251 = vcmp.eq.f32.partialorder %v1250, 8.507059e+37
    %v1252 = vand.u32 %v1240, 2147483648
    %v1253 = vor.u32 1.1754944e-38, %v1252
    %v1254 = vsel %vm1251, %v1253, %v1249
    %v1255 = vmul.f32 %v1237, %v1254
    %v1256 = vadd.f32 %v1176, %v1255
    %1257 = vrot.lane.b32.xlu0 %v1001, 112
    %v1258 = vpop.permute.xlu0 %1257
    %v1261 = vsel %vm299, %v1255, 0
    %1263 = vmatpush.msra.mxu0 0.0
    %1264 = vmatpush.msra.mxu0 0.0
    %1265 = vmatpush.msra.mxu0 0.0
    %1266 = vmatpush.msra.mxu0 0.0
    %1267 = vmatpush.msra.mxu0 0.0
    %1268 = vmatpush.msra.mxu0 0.0
    %1269 = vmatpush.msra.mxu0 0.0
    %1270 = vmatpush.msra.mxu0 0.0
    %1271 = vmatpush.msra.mxu0 0.0
    %1272 = vmatpush.msra.mxu0 0.0
    %1273 = vmatpush.msra.mxu0 0.0
    %1274 = vmatpush.msra.mxu0 0.0
    %1275 = vmatpush.msra.mxu0 0.0
    %1276 = vmatpush.msra.mxu0 0.0
    %1277 = vmatpush.msra.mxu0 0.0
    %1278 = vmatpush.msra.mxu0 %v1258
    %1279 = vmatmul.f32.gmra.mxu0 %v1261
    %v1280 = vpop.f32.mrf.mxu0
    %v1281 = vadd.f32 0.0, %v1280
    %1282 = vdwg.mxu0
    %1283 = vrot.lane.b32.xlu0 %v1050, 104
    %v1284 = vpop.permute.xlu0 %1283
    %1285 = vrot.lane.b32.xlu0 %v975, 104
    %v1286 = vpop.permute.xlu0 %1285
    %v1287 = vsel %vm299, %v1284, 0
    %v1289 = vsel %vm299, %v1286, 0
    %1291 = vmatpush.xpose.msra.mxu0 0.0
    %1292 = vmatpush.xpose.msra.mxu0 0.0
    %1293 = vmatpush.xpose.msra.mxu0 0.0
    %1294 = vmatpush.xpose.msra.mxu0 0.0
    %1295 = vmatpush.xpose.msra.mxu0 0.0
    %1296 = vmatpush.xpose.msra.mxu0 0.0
    %1297 = vmatpush.xpose.msra.mxu0 0.0
    %1298 = vmatpush.xpose.msra.mxu0 0.0
    %1299 = vmatpush.xpose.msra.mxu0 0.0
    %1300 = vmatpush.xpose.msra.mxu0 0.0
    %1301 = vmatpush.xpose.msra.mxu0 0.0
    %1302 = vmatpush.xpose.msra.mxu0 0.0
    %1303 = vmatpush.xpose.msra.mxu0 0.0
    %1304 = vmatpush.xpose.msra.mxu0 0.0
    %1305 = vmatpush.xpose.msra.mxu0 0.0
    %1306 = vmatpush.xpose.msra.mxu0 %v1289
    %1307 = vmatmul.f32.gmra.mxu0 %v1287
    %v1308 = vpop.f32.mrf.mxu0
    %v1309 = vadd.f32 0.0, %v1308
    %1310 = vdwg.mxu0
    %v1311 = vsel %vm299, %v1309, -inf
    %1312 = vmax.xlane.f32.xlu0 %v1311
    %v1313 = vpop.xlane.xlu0 %1312
    %v1314 = vsub.f32 %v1309, %v1313
    %v1315 = vmul.f32 %v1314, 1.442695
    %v1316 = vpow.pop %v1315
    %v1317 = vsel %vm299, %v1316, 0.0
    %1318 = vadd.xlane.f32.xlu0 %v1317
    %v1319 = vpop.xlane.xlu0 %1318
    %v1320 = vrcp.pop %v1319
    %v1321 = vmul.f32 %v1319, %v1320
    %v1322 = vsub.f32 1.0, %v1321
    %v1323 = vmul.f32 %v1320, %v1322
    %v1324 = vadd.f32 %v1320, %v1323
    %vm1325 = vweird.f32 %v1319
    %vm1326 = vweird.f32 %v1320
    %vm1327 = vmor %vm1325, %vm1326
    %v1328 = vsel %vm1327, %v1320, %v1324
    %v1329 = vand.u32 2147483647, %v1319
    %vm1330 = vcmp.eq.f32.partialorder %v1329, 8.507059e+37
    %v1331 = vand.u32 %v1319, 2147483648
    %v1332 = vor.u32 1.1754944e-38, %v1331
    %v1333 = vsel %vm1330, %v1332, %v1328
    %v1334 = vmul.f32 %v1316, %v1333
    %v1335 = vadd.f32 %v1256, %v1334
    %1336 = vrot.lane.b32.xlu0 %v1001, 104
    %v1337 = vpop.permute.xlu0 %1336
    %v1340 = vsel %vm299, %v1334, 0
    %1342 = vmatpush.msra.mxu0 0.0
    %1343 = vmatpush.msra.mxu0 0.0
    %1344 = vmatpush.msra.mxu0 0.0
    %1345 = vmatpush.msra.mxu0 0.0
    %1346 = vmatpush.msra.mxu0 0.0
    %1347 = vmatpush.msra.mxu0 0.0
    %1348 = vmatpush.msra.mxu0 0.0
    %1349 = vmatpush.msra.mxu0 0.0
    %1350 = vmatpush.msra.mxu0 0.0
    %1351 = vmatpush.msra.mxu0 0.0
    %1352 = vmatpush.msra.mxu0 0.0
    %1353 = vmatpush.msra.mxu0 0.0
    %1354 = vmatpush.msra.mxu0 0.0
    %1355 = vmatpush.msra.mxu0 0.0
    %1356 = vmatpush.msra.mxu0 0.0
    %1357 = vmatpush.msra.mxu0 %v1337
    %1358 = vmatmul.f32.gmra.mxu0 %v1340
    %v1359 = vpop.f32.mrf.mxu0
    %v1360 = vadd.f32 0.0, %v1359
    %1361 = vdwg.mxu0
    %1363 = vrot.lane.b32.xlu0 %v1202, 8
    %v1364 = vpop.permute.xlu0 %1363
    %1367 = vrot.lane.b32.xlu0 %v1281, 16
    %v1368 = vpop.permute.xlu0 %1367
    %1371 = vrot.lane.b32.xlu0 %v1360, 24
    %v1372 = vpop.permute.xlu0 %1371
    %v1374 = vsel %vm299, %v1122, %v1364
    %v1375 = vsel %vm622, %v1374, %v1368
    %v1376 = vsel %vm624, %v1375, %v1372
    %v1377 = vmul.f32 %v1335, 0.25
    %v1379 = vperm.slane %v197, 0
    %v1382 = vsel %vm272, %v1376, 0
    %1384 = vmatpush.msra.mxu0 0.0
    %1385 = vmatpush.msra.mxu0 0.0
    %1386 = vmatpush.msra.mxu0 0.0
    %1387 = vmatpush.msra.mxu0 0.0
    %1388 = vmatpush.msra.mxu0 0.0
    %1389 = vmatpush.msra.mxu0 0.0
    %1390 = vmatpush.msra.mxu0 0.0
    %1391 = vmatpush.msra.mxu0 0.0
    %1392 = vmatpush.msra.mxu0 0.0
    %1393 = vmatpush.msra.mxu0 0.0
    %1394 = vmatpush.msra.mxu0 0.0
    %1395 = vmatpush.msra.mxu0 0.0
    %1396 = vmatpush.msra.mxu0 %v196
    %1397 = vmatpush.msra.mxu0 %v195
    %1398 = vmatpush.msra.mxu0 %v194
    %1399 = vmatpush.msra.mxu0 %v193
    %1400 = vmatmul.f32.gmra.mxu0 %v1382
    %v1401 = vpop.f32.mrf.mxu0
    %v1402 = vadd.f32 %v1379, %v1401
    %1403 = vdwg.mxu0
    %v1405 = vrot.slane %v1402, 1
    %v1406 = vrot.slane %v1402, 2
    %v1407 = vrot.slane %v1402, 3
    %v1408 = vrot.slane %v1402, 4
    %v1409 = vrot.slane %v1402, 5
    %v1410 = vrot.slane %v1402, 6
    %v1411 = vrot.slane %v1402, 7
    %v1420 = vadd.f32 %v818, %v1402
    %v1421 = vadd.f32 %v819, %v1405
    %v1422 = vadd.f32 %v820, %v1406
    %v1423 = vadd.f32 %v821, %v1407
    %v1424 = vadd.f32 %v822, %v1408
    %v1425 = vadd.f32 %v823, %v1409
    %v1426 = vadd.f32 %v824, %v1410
    %v1427 = vadd.f32 %v825, %v1411
    %v1436 = vrot.slane %v1421, 7
    %v1437 = vsel %vm252, %v1436, %v1420
    %v1438 = vrot.slane %v1422, 6
    %v1439 = vsel %vm255, %v1438, %v1437
    %v1440 = vrot.slane %v1423, 5
    %v1441 = vsel %vm258, %v1440, %v1439
    %v1442 = vrot.slane %v1424, 4
    %v1443 = vsel %vm261, %v1442, %v1441
    %v1444 = vrot.slane %v1425, 3
    %v1445 = vsel %vm264, %v1444, %v1443
    %v1446 = vrot.slane %v1426, 2
    %v1447 = vsel %vm267, %v1446, %v1445
    %v1448 = vrot.slane %v1427, 1
    %v1449 = vsel %vm270, %v1448, %v1447
    %v1451 = vsel %vm272, %v1449, 0.0
    %1452 = vadd.xlane.f32.xlu0 %v1451
    %v1453 = vpop.xlane.xlu0 %1452
    %v1454 = vmul.f32 %v1453, %v708
    %v1456 = vrot.slane %v1454, 1
    %v1457 = vrot.slane %v1454, 2
    %v1458 = vrot.slane %v1454, 3
    %v1459 = vrot.slane %v1454, 4
    %v1460 = vrot.slane %v1454, 5
    %v1461 = vrot.slane %v1454, 6
    %v1462 = vrot.slane %v1454, 7
    %v1471 = vsub.f32 %v1420, %v1454
    %v1472 = vsub.f32 %v1421, %v1456
    %v1473 = vsub.f32 %v1422, %v1457
    %v1474 = vsub.f32 %v1423, %v1458
    %v1475 = vsub.f32 %v1424, %v1459
    %v1476 = vsub.f32 %v1425, %v1460
    %v1477 = vsub.f32 %v1426, %v1461
    %v1478 = vsub.f32 %v1427, %v1462
    %v1479 = vmul.f32 %v1471, %v1471
    %v1480 = vmul.f32 %v1472, %v1472
    %v1481 = vmul.f32 %v1473, %v1473
    %v1482 = vmul.f32 %v1474, %v1474
    %v1483 = vmul.f32 %v1475, %v1475
    %v1484 = vmul.f32 %v1476, %v1476
    %v1485 = vmul.f32 %v1477, %v1477
    %v1486 = vmul.f32 %v1478, %v1478
    %v1495 = vrot.slane %v1480, 7
    %v1496 = vsel %vm252, %v1495, %v1479
    %v1497 = vrot.slane %v1481, 6
    %v1498 = vsel %vm255, %v1497, %v1496
    %v1499 = vrot.slane %v1482, 5
    %v1500 = vsel %vm258, %v1499, %v1498
    %v1501 = vrot.slane %v1483, 4
    %v1502 = vsel %vm261, %v1501, %v1500
    %v1503 = vrot.slane %v1484, 3
    %v1504 = vsel %vm264, %v1503, %v1502
    %v1505 = vrot.slane %v1485, 2
    %v1506 = vsel %vm267, %v1505, %v1504
    %v1507 = vrot.slane %v1486, 1
    %v1508 = vsel %vm270, %v1507, %v1506
    %v1510 = vsel %vm272, %v1508, 0.0
    %1511 = vadd.xlane.f32.xlu0 %v1510
    %v1512 = vpop.xlane.xlu0 %1511
    %v1513 = vmul.f32 %v1512, %v708
    %v1514 = vadd.f32 %v1513, 1e-05
    %v1515 = vrsqrt.pop %v1514
    %v1516 = vmul.f32 %v1515, %v1514
    %v1517 = vmul.f32 %v1516, %v1515
    %v1518 = vmul.f32 0.5, %v1517
    %v1519 = vsub.f32 1.5, %v1518
    %v1520 = vmul.f32 %v1515, %v1519
    %vm1521 = vweird.f32 %v1514
    %vm1522 = vweird.f32 %v1515
    %vm1523 = vmor %vm1521, %vm1522
    %v1524 = vsel %vm1523, %v1515, %v1520
    %v1526 = vrot.slane %v1524, 1
    %v1527 = vrot.slane %v1524, 2
    %v1528 = vrot.slane %v1524, 3
    %v1529 = vrot.slane %v1524, 4
    %v1530 = vrot.slane %v1524, 5
    %v1531 = vrot.slane %v1524, 6
    %v1532 = vrot.slane %v1524, 7
    %v1541 = vmul.f32 %v1471, %v1524
    %v1542 = vmul.f32 %v1472, %v1526
    %v1543 = vmul.f32 %v1473, %v1527
    %v1544 = vmul.f32 %v1474, %v1528
    %v1545 = vmul.f32 %v1475, %v1529
    %v1546 = vmul.f32 %v1476, %v1530
    %v1547 = vmul.f32 %v1477, %v1531
    %v1548 = vmul.f32 %v1478, %v1532
    %v1550 = vperm.slane %v198, 0
    %v1552 = vmul.f32 %v1541, %v1550
    %v1553 = vmul.f32 %v1542, %v1550
    %v1554 = vmul.f32 %v1543, %v1550
    %v1555 = vmul.f32 %v1544, %v1550
    %v1556 = vmul.f32 %v1545, %v1550
    %v1557 = vmul.f32 %v1546, %v1550
    %v1558 = vmul.f32 %v1547, %v1550
    %v1559 = vmul.f32 %v1548, %v1550
    %v1561 = vperm.slane %v199, 0
    %v1563 = vadd.f32 %v1552, %v1561
    %v1564 = vadd.f32 %v1553, %v1561
    %v1565 = vadd.f32 %v1554, %v1561
    %v1566 = vadd.f32 %v1555, %v1561
    %v1567 = vadd.f32 %v1556, %v1561
    %v1568 = vadd.f32 %v1557, %v1561
    %v1569 = vadd.f32 %v1558, %v1561
    %v1570 = vadd.f32 %v1559, %v1561
    %1571 = vst.msk [vmem:[#allocation14] sm:$0xff] %vm299, %v1377
    %v1573 = vperm.slane %v204, 0
    %v1583 = vrot.slane %v1564, 7
    %v1584 = vsel %vm252, %v1583, %v1563
    %v1585 = vrot.slane %v1565, 6
    %v1586 = vsel %vm255, %v1585, %v1584
    %v1587 = vrot.slane %v1566, 5
    %v1588 = vsel %vm258, %v1587, %v1586
    %v1589 = vrot.slane %v1567, 4
    %v1590 = vsel %vm261, %v1589, %v1588
    %v1591 = vrot.slane %v1568, 3
    %v1592 = vsel %vm264, %v1591, %v1590
    %v1593 = vrot.slane %v1569, 2
    %v1594 = vsel %vm267, %v1593, %v1592
    %v1595 = vrot.slane %v1570, 1
    %v1596 = vsel %vm270, %v1595, %v1594
    %v1597 = vsel %vm272, %v1596, 0
    %1599 = vmatpush.msra.mxu0 0.0
    %1600 = vmatpush.msra.mxu0 0.0
    %1601 = vmatpush.msra.mxu0 0.0
    %1602 = vmatpush.msra.mxu0 0.0
    %1603 = vmatpush.msra.mxu0 0.0
    %1604 = vmatpush.msra.mxu0 0.0
    %1605 = vmatpush.msra.mxu0 0.0
    %1606 = vmatpush.msra.mxu0 0.0
    %1607 = vmatpush.msra.mxu0 0.0
    %1608 = vmatpush.msra.mxu0 0.0
    %1609 = vmatpush.msra.mxu0 0.0
    %1610 = vmatpush.msra.mxu0 0.0
    %1611 = vmatpush.msra.mxu0 %v203
    %1612 = vmatpush.msra.mxu0 %v202
    %1613 = vmatpush.msra.mxu0 %v201
    %1614 = vmatpush.msra.mxu0 %v200
    %1615 = vmatmul.f32.gmra.mxu0 %v1597
    %v1616 = vpop.f32.mrf.mxu0
    %v1617 = vadd.f32 %v1573, %v1616
    %1618 = vdwg.mxu0
    %v1619 = vmax.f32 %v1617, 0.0
    %v1621 = vperm.slane %v213, 0
    %vm1623 = vcmask 523264
    %v1625 = vsel %vm1623, %v1619, 0
    %1627 = vmatpush.msra.mxu0 0.0
    %1628 = vmatpush.msra.mxu0 0.0
    %1629 = vmatpush.msra.mxu0 0.0
    %1630 = vmatpush.msra.mxu0 0.0
    %1631 = vmatpush.msra.mxu0 0.0
    %1632 = vmatpush.msra.mxu0 0.0
    %1633 = vmatpush.msra.mxu0 0.0
    %1634 = vmatpush.msra.mxu0 0.0
    %1635 = vmatpush.msra.mxu0 %v212
    %1636 = vmatpush.msra.mxu0 %v211
    %1637 = vmatpush.msra.mxu0 %v210
    %1638 = vmatpush.msra.mxu0 %v209
    %1639 = vmatpush.msra.mxu0 %v208
    %1640 = vmatpush.msra.mxu0 %v207
    %1641 = vmatpush.msra.mxu0 %v206
    %1642 = vmatpush.msra.mxu0 %v205
    %1643 = vmatmul.f32.gmra.mxu0 %v1625
    %v1644 = vpop.f32.mrf.mxu0
    %v1645 = vadd.f32 %v1621, %v1644
    %1646 = vdwg.mxu0
    %v1648 = vrot.slane %v1645, 1
    %v1649 = vrot.slane %v1645, 2
    %v1650 = vrot.slane %v1645, 3
    %v1651 = vrot.slane %v1645, 4
    %v1652 = vrot.slane %v1645, 5
    %v1653 = vrot.slane %v1645, 6
    %v1654 = vrot.slane %v1645, 7
    %v1663 = vadd.f32 %v1563, %v1645
    %v1664 = vadd.f32 %v1564, %v1648
    %v1665 = vadd.f32 %v1565, %v1649
    %v1666 = vadd.f32 %v1566, %v1650
    %v1667 = vadd.f32 %v1567, %v1651
    %v1668 = vadd.f32 %v1568, %v1652
    %v1669 = vadd.f32 %v1569, %v1653
    %v1670 = vadd.f32 %v1570, %v1654
    %v1679 = vrot.slane %v1664, 7
    %v1680 = vsel %vm252, %v1679, %v1663
    %v1681 = vrot.slane %v1665, 6
    %v1682 = vsel %vm255, %v1681, %v1680
    %v1683 = vrot.slane %v1666, 5
    %v1684 = vsel %vm258, %v1683, %v1682
    %v1685 = vrot.slane %v1667, 4
    %v1686 = vsel %vm261, %v1685, %v1684
    %v1687 = vrot.slane %v1668, 3
    %v1688 = vsel %vm264, %v1687, %v1686
    %v1689 = vrot.slane %v1669, 2
    %v1690 = vsel %vm267, %v1689, %v1688
    %v1691 = vrot.slane %v1670, 1
    %v1692 = vsel %vm270, %v1691, %v1690
    %v1694 = vsel %vm272, %v1692, 0.0
    %1695 = vadd.xlane.f32.xlu0 %v1694
    %v1696 = vpop.xlane.xlu0 %1695
    %v1697 = vmul.f32 %v1696, %v708
    %v1699 = vrot.slane %v1697, 1
    %v1700 = vrot.slane %v1697, 2
    %v1701 = vrot.slane %v1697, 3
    %v1702 = vrot.slane %v1697, 4
    %v1703 = vrot.slane %v1697, 5
    %v1704 = vrot.slane %v1697, 6
    %v1705 = vrot.slane %v1697, 7
    %v1714 = vsub.f32 %v1663, %v1697
    %v1715 = vsub.f32 %v1664, %v1699
    %v1716 = vsub.f32 %v1665, %v1700
    %v1717 = vsub.f32 %v1666, %v1701
    %v1718 = vsub.f32 %v1667, %v1702
    %v1719 = vsub.f32 %v1668, %v1703
    %v1720 = vsub.f32 %v1669, %v1704
    %v1721 = vsub.f32 %v1670, %v1705
    %v1722 = vmul.f32 %v1714, %v1714
    %v1723 = vmul.f32 %v1715, %v1715
    %v1724 = vmul.f32 %v1716, %v1716
    %v1725 = vmul.f32 %v1717, %v1717
    %v1726 = vmul.f32 %v1718, %v1718
    %v1727 = vmul.f32 %v1719, %v1719
    %v1728 = vmul.f32 %v1720, %v1720
    %v1729 = vmul.f32 %v1721, %v1721
    %v1738 = vrot.slane %v1723, 7
    %v1739 = vsel %vm252, %v1738, %v1722
    %v1740 = vrot.slane %v1724, 6
    %v1741 = vsel %vm255, %v1740, %v1739
    %v1742 = vrot.slane %v1725, 5
    %v1743 = vsel %vm258, %v1742, %v1741
    %v1744 = vrot.slane %v1726, 4
    %v1745 = vsel %vm261, %v1744, %v1743
    %v1746 = vrot.slane %v1727, 3
    %v1747 = vsel %vm264, %v1746, %v1745
    %v1748 = vrot.slane %v1728, 2
    %v1749 = vsel %vm267, %v1748, %v1747
    %v1750 = vrot.slane %v1729, 1
    %v1751 = vsel %vm270, %v1750, %v1749
    %v1753 = vsel %vm272, %v1751, 0.0
    %1754 = vadd.xlane.f32.xlu0 %v1753
    %v1755 = vpop.xlane.xlu0 %1754
    %v1756 = vmul.f32 %v1755, %v708
    %v1757 = vadd.f32 %v1756, 1e-05
    %v1758 = vrsqrt.pop %v1757
    %v1759 = vmul.f32 %v1758, %v1757
    %v1760 = vmul.f32 %v1759, %v1758
    %v1761 = vmul.f32 0.5, %v1760
    %v1762 = vsub.f32 1.5, %v1761
    %v1763 = vmul.f32 %v1758, %v1762
    %vm1764 = vweird.f32 %v1757
    %vm1765 = vweird.f32 %v1758
    %vm1766 = vmor %vm1764, %vm1765
    %v1767 = vsel %vm1766, %v1758, %v1763
    %v1769 = vrot.slane %v1767, 1
    %v1770 = vrot.slane %v1767, 2
    %v1771 = vrot.slane %v1767, 3
    %v1772 = vrot.slane %v1767, 4
    %v1773 = vrot.slane %v1767, 5
    %v1774 = vrot.slane %v1767, 6
    %v1775 = vrot.slane %v1767, 7
    %v1784 = vmul.f32 %v1714, %v1767
    %v1785 = vmul.f32 %v1715, %v1769
    %v1786 = vmul.f32 %v1716, %v1770
    %v1787 = vmul.f32 %v1717, %v1771
    %v1788 = vmul.f32 %v1718, %v1772
    %v1789 = vmul.f32 %v1719, %v1773
    %v1790 = vmul.f32 %v1720, %v1774
    %v1791 = vmul.f32 %v1721, %v1775
    %v1793 = vperm.slane %v214, 0
    %v1795 = vmul.f32 %v1784, %v1793
    %v1796 = vmul.f32 %v1785, %v1793
    %v1797 = vmul.f32 %v1786, %v1793
    %v1798 = vmul.f32 %v1787, %v1793
    %v1799 = vmul.f32 %v1788, %v1793
    %v1800 = vmul.f32 %v1789, %v1793
    %v1801 = vmul.f32 %v1790, %v1793
    %v1802 = vmul.f32 %v1791, %v1793
    %v1804 = vperm.slane %v215, 0
    %v1806 = vadd.f32 %v1795, %v1804
    %v1807 = vadd.f32 %v1796, %v1804
    %v1808 = vadd.f32 %v1797, %v1804
    %v1809 = vadd.f32 %v1798, %v1804
    %v1810 = vadd.f32 %v1799, %v1804
    %v1811 = vadd.f32 %v1800, %v1804
    %v1812 = vadd.f32 %v1801, %v1804
    %v1813 = vadd.f32 %v1802, %v1804
    %vm1814 = vcmask 253952
    %1815 = vst.msk [vmem:[#allocation13] sm:$0x1] %vm1814, %v1806
    %1816 = vst.msk [vmem:[#allocation13 + $0x2] sm:$0x1] %vm1814, %v1807
    %1817 = vst.msk [vmem:[#allocation13 + $0x4] sm:$0x1] %vm1814, %v1808
    %1818 = vst.msk [vmem:[#allocation13 + $0x6] sm:$0x1] %vm1814, %v1809
    %1819 = vst.msk [vmem:[#allocation13 + $0x8] sm:$0x1] %vm1814, %v1810
    %1820 = vst.msk [vmem:[#allocation13 + $0xa] sm:$0x1] %vm1814, %v1811
    %1821 = vst.msk [vmem:[#allocation13 + $0xc] sm:$0x1] %vm1814, %v1812
    %1822 = vst.msk [vmem:[#allocation13 + $0xe] sm:$0x1] %vm1814, %v1813
    %v1823 = vld [vmem:[#allocation2 + $0x1] sm:$0x1]
    %v1824 = vld [vmem:[#allocation2 + $0x3] sm:$0x1]
    %v1825 = vld [vmem:[#allocation2 + $0x5] sm:$0x1]
    %v1826 = vld [vmem:[#allocation2 + $0x7] sm:$0x1]
    %v1827 = vld [vmem:[#allocation2 + $0x9] sm:$0x1]
    %v1828 = vld [vmem:[#allocation2 + $0xb] sm:$0x1]
    %v1829 = vld [vmem:[#allocation2 + $0xd] sm:$0x1]
    %v1830 = vld [vmem:[#allocation2 + $0xf] sm:$0x1]
    %v1831 = vld [vmem:[%s1 + $0x1] sm:$0x1]
    %v1832 = vld [vmem:[%s1 + $0x3] sm:$0x1]
    %v1833 = vld [vmem:[%s1 + $0x5] sm:$0x1]
    %v1834 = vld [vmem:[%s1 + $0x7] sm:$0x1]
    %v1835 = vld [vmem:[%s1 + $0x9] sm:$0x1]
    %v1836 = vld [vmem:[%s1 + $0xb] sm:$0x1]
    %v1837 = vld [vmem:[%s1 + $0xd] sm:$0x1]
    %v1838 = vld [vmem:[%s1 + $0xf] sm:$0x1]
    %v1839 = vld [vmem:[%s1 + $0x11] sm:$0x1]
    %v1840 = vld [vmem:[%s1 + $0x13] sm:$0x1]
    %v1841 = vld [vmem:[%s1 + $0x15] sm:$0x1]
    %v1842 = vld [vmem:[%s1 + $0x17] sm:$0x1]
    %v1843 = vld [vmem:[%s1 + $0x19] sm:$0x1]
    %v1844 = vld [vmem:[%s1 + $0x1b] sm:$0x1]
    %v1845 = vld [vmem:[%s1 + $0x1d] sm:$0x1]
    %v1846 = vld [vmem:[%s1 + $0x1f] sm:$0x1]
    %v1855 = vrot.slane %v1824, 7
    %v1856 = vsel %vm252, %v1855, %v1823
    %v1857 = vrot.slane %v1825, 6
    %v1858 = vsel %vm255, %v1857, %v1856
    %v1859 = vrot.slane %v1826, 5
    %v1860 = vsel %vm258, %v1859, %v1858
    %v1861 = vrot.slane %v1827, 4
    %v1862 = vsel %vm261, %v1861, %v1860
    %v1863 = vrot.slane %v1828, 3
    %v1864 = vsel %vm264, %v1863, %v1862
    %v1865 = vrot.slane %v1829, 2
    %v1866 = vsel %vm267, %v1865, %v1864
    %v1867 = vrot.slane %v1830, 1
    %v1868 = vsel %vm270, %v1867, %v1866
    %v1869 = vsel %vm272, %v1868, 0
    %1871 = vmatpush.msra.mxu0 0.0
    %1872 = vmatpush.msra.mxu0 0.0
    %1873 = vmatpush.msra.mxu0 0.0
    %1874 = vmatpush.msra.mxu0 0.0
    %1875 = vmatpush.msra.mxu0 0.0
    %1876 = vmatpush.msra.mxu0 0.0
    %1877 = vmatpush.msra.mxu0 0.0
    %1878 = vmatpush.msra.mxu0 0.0
    %1879 = vmatpush.msra.mxu0 0.0
    %1880 = vmatpush.msra.mxu0 0.0
    %1881 = vmatpush.msra.mxu0 0.0
    %1882 = vmatpush.msra.mxu0 0.0
    %1883 = vmatpush.msra.mxu0 %v174
    %1884 = vmatpush.msra.mxu0 %v173
    %1885 = vmatpush.msra.mxu0 %v172
    %1886 = vmatpush.msra.mxu0 %v171
    %1887 = vmatmul.f32.gmra.mxu0 %v1869
    %v1888 = vpop.f32.mrf.mxu0
    %v1889 = vadd.f32 %v241, %v1888
    %1890 = vdwg.mxu0
    %v1891 = vmul.f32 %v1889, 0.35355338
    %1893 = vrot.lane.b32.xlu0 %v1889, 96
    %v1894 = vpop.permute.xlu0 %1893
    %v1896 = vsel %vm299, %v1891, 0
    %v1898 = vsel %vm299, %v1894, 0
    %1900 = vmatpush.xpose.msra.mxu0 0.0
    %1901 = vmatpush.xpose.msra.mxu0 0.0
    %1902 = vmatpush.xpose.msra.mxu0 0.0
    %1903 = vmatpush.xpose.msra.mxu0 0.0
    %1904 = vmatpush.xpose.msra.mxu0 0.0
    %1905 = vmatpush.xpose.msra.mxu0 0.0
    %1906 = vmatpush.xpose.msra.mxu0 0.0
    %1907 = vmatpush.xpose.msra.mxu0 0.0
    %1908 = vmatpush.xpose.msra.mxu0 0.0
    %1909 = vmatpush.xpose.msra.mxu0 0.0
    %1910 = vmatpush.xpose.msra.mxu0 0.0
    %1911 = vmatpush.xpose.msra.mxu0 0.0
    %1912 = vmatpush.xpose.msra.mxu0 0.0
    %1913 = vmatpush.xpose.msra.mxu0 0.0
    %1914 = vmatpush.xpose.msra.mxu0 0.0
    %1915 = vmatpush.xpose.msra.mxu0 %v1898
    %1916 = vmatmul.f32.gmra.mxu0 %v1896
    %v1917 = vpop.f32.mrf.mxu0
    %v1918 = vadd.f32 0.0, %v1917
    %1919 = vdwg.mxu0
    %v1920 = vsel %vm299, %v1918, -inf
    %1921 = vmax.xlane.f32.xlu0 %v1920
    %v1922 = vpop.xlane.xlu0 %1921
    %v1923 = vsub.f32 %v1918, %v1922
    %v1924 = vmul.f32 %v1923, 1.442695
    %v1925 = vpow.pop %v1924
    %v1926 = vsel %vm299, %v1925, 0.0
    %1927 = vadd.xlane.f32.xlu0 %v1926
    %v1928 = vpop.xlane.xlu0 %1927
    %v1929 = vrcp.pop %v1928
    %v1930 = vmul.f32 %v1928, %v1929
    %v1931 = vsub.f32 1.0, %v1930
    %v1932 = vmul.f32 %v1929, %v1931
    %v1933 = vadd.f32 %v1929, %v1932
    %vm1934 = vweird.f32 %v1928
    %vm1935 = vweird.f32 %v1929
    %vm1936 = vmor %vm1934, %vm1935
    %v1937 = vsel %vm1936, %v1929, %v1933
    %v1938 = vand.u32 2147483647, %v1928
    %vm1939 = vcmp.eq.f32.partialorder %v1938, 8.507059e+37
    %v1940 = vand.u32 %v1928, 2147483648
    %v1941 = vor.u32 1.1754944e-38, %v1940
    %v1942 = vsel %vm1939, %v1941, %v1937
    %v1943 = vmul.f32 %v1925, %v1942
    %1944 = vrot.lane.b32.xlu0 %v1889, 64
    %v1945 = vpop.permute.xlu0 %1944
    %v1948 = vsel %vm299, %v1943, 0
    %1950 = vmatpush.msra.mxu0 0.0
    %1951 = vmatpush.msra.mxu0 0.0
    %1952 = vmatpush.msra.mxu0 0.0
    %1953 = vmatpush.msra.mxu0 0.0
    %1954 = vmatpush.msra.mxu0 0.0
    %1955 = vmatpush.msra.mxu0 0.0
    %1956 = vmatpush.msra.mxu0 0.0
    %1957 = vmatpush.msra.mxu0 0.0
    %1958 = vmatpush.msra.mxu0 0.0
    %1959 = vmatpush.msra.mxu0 0.0
    %1960 = vmatpush.msra.mxu0 0.0
    %1961 = vmatpush.msra.mxu0 0.0
    %1962 = vmatpush.msra.mxu0 0.0
    %1963 = vmatpush.msra.mxu0 0.0
    %1964 = vmatpush.msra.mxu0 0.0
    %1965 = vmatpush.msra.mxu0 %v1945
    %1966 = vmatmul.f32.gmra.mxu0 %v1948
    %v1967 = vpop.f32.mrf.mxu0
    %v1968 = vadd.f32 0.0, %v1967
    %1969 = vdwg.mxu0
    %1970 = vrot.lane.b32.xlu0 %v1891, 120
    %v1971 = vpop.permute.xlu0 %1970
    %1972 = vrot.lane.b32.xlu0 %v1889, 88
    %v1973 = vpop.permute.xlu0 %1972
    %v1974 = vsel %vm299, %v1971, 0
    %v1976 = vsel %vm299, %v1973, 0
    %1978 = vmatpush.xpose.msra.mxu0 0.0
    %1979 = vmatpush.xpose.msra.mxu0 0.0
    %1980 = vmatpush.xpose.msra.mxu0 0.0
    %1981 = vmatpush.xpose.msra.mxu0 0.0
    %1982 = vmatpush.xpose.msra.mxu0 0.0
    %1983 = vmatpush.xpose.msra.mxu0 0.0
    %1984 = vmatpush.xpose.msra.mxu0 0.0
    %1985 = vmatpush.xpose.msra.mxu0 0.0
    %1986 = vmatpush.xpose.msra.mxu0 0.0
    %1987 = vmatpush.xpose.msra.mxu0 0.0
    %1988 = vmatpush.xpose.msra.mxu0 0.0
    %1989 = vmatpush.xpose.msra.mxu0 0.0
    %1990 = vmatpush.xpose.msra.mxu0 0.0
    %1991 = vmatpush.xpose.msra.mxu0 0.0
    %1992 = vmatpush.xpose.msra.mxu0 0.0
    %1993 = vmatpush.xpose.msra.mxu0 %v1976
    %1994 = vmatmul.f32.gmra.mxu0 %v1974
    %v1995 = vpop.f32.mrf.mxu0
    %v1996 = vadd.f32 0.0, %v1995
    %1997 = vdwg.mxu0
    %v1998 = vsel %vm299, %v1996, -inf
    %1999 = vmax.xlane.f32.xlu0 %v1998
    %v2000 = vpop.xlane.xlu0 %1999
    %v2001 = vsub.f32 %v1996, %v2000
    %v2002 = vmul.f32 %v2001, 1.442695
    %v2003 = vpow.pop %v2002
    %v2004 = vsel %vm299, %v2003, 0.0
    %2005 = vadd.xlane.f32.xlu0 %v2004
    %v2006 = vpop.xlane.xlu0 %2005
    %v2007 = vrcp.pop %v2006
    %v2008 = vmul.f32 %v2006, %v2007
    %v2009 = vsub.f32 1.0, %v2008
    %v2010 = vmul.f32 %v2007, %v2009
    %v2011 = vadd.f32 %v2007, %v2010
    %vm2012 = vweird.f32 %v2006
    %vm2013 = vweird.f32 %v2007
    %vm2014 = vmor %vm2012, %vm2013
    %v2015 = vsel %vm2014, %v2007, %v2011
    %v2016 = vand.u32 2147483647, %v2006
    %vm2017 = vcmp.eq.f32.partialorder %v2016, 8.507059e+37
    %v2018 = vand.u32 %v2006, 2147483648
    %v2019 = vor.u32 1.1754944e-38, %v2018
    %v2020 = vsel %vm2017, %v2019, %v2015
    %v2021 = vmul.f32 %v2003, %v2020
    %2022 = vrot.lane.b32.xlu0 %v1889, 56
    %v2023 = vpop.permute.xlu0 %2022
    %v2026 = vsel %vm299, %v2021, 0
    %2028 = vmatpush.msra.mxu0 0.0
    %2029 = vmatpush.msra.mxu0 0.0
    %2030 = vmatpush.msra.mxu0 0.0
    %2031 = vmatpush.msra.mxu0 0.0
    %2032 = vmatpush.msra.mxu0 0.0
    %2033 = vmatpush.msra.mxu0 0.0
    %2034 = vmatpush.msra.mxu0 0.0
    %2035 = vmatpush.msra.mxu0 0.0
    %2036 = vmatpush.msra.mxu0 0.0
    %2037 = vmatpush.msra.mxu0 0.0
    %2038 = vmatpush.msra.mxu0 0.0
    %2039 = vmatpush.msra.mxu0 0.0
    %2040 = vmatpush.msra.mxu0 0.0
    %2041 = vmatpush.msra.mxu0 0.0
    %2042 = vmatpush.msra.mxu0 0.0
    %2043 = vmatpush.msra.mxu0 %v2023
    %2044 = vmatmul.f32.gmra.mxu0 %v2026
    %v2045 = vpop.f32.mrf.mxu0
    %v2046 = vadd.f32 0.0, %v2045
    %2047 = vdwg.mxu0
    %2048 = vrot.lane.b32.xlu0 %v1891, 112
    %v2049 = vpop.permute.xlu0 %2048
    %2050 = vrot.lane.b32.xlu0 %v1889, 80
    %v2051 = vpop.permute.xlu0 %2050
    %v2052 = vsel %vm299, %v2049, 0
    %v2054 = vsel %vm299, %v2051, 0
    %2056 = vmatpush.xpose.msra.mxu0 0.0
    %2057 = vmatpush.xpose.msra.mxu0 0.0
    %2058 = vmatpush.xpose.msra.mxu0 0.0
    %2059 = vmatpush.xpose.msra.mxu0 0.0
    %2060 = vmatpush.xpose.msra.mxu0 0.0
    %2061 = vmatpush.xpose.msra.mxu0 0.0
    %2062 = vmatpush.xpose.msra.mxu0 0.0
    %2063 = vmatpush.xpose.msra.mxu0 0.0
    %2064 = vmatpush.xpose.msra.mxu0 0.0
    %2065 = vmatpush.xpose.msra.mxu0 0.0
    %2066 = vmatpush.xpose.msra.mxu0 0.0
    %2067 = vmatpush.xpose.msra.mxu0 0.0
    %2068 = vmatpush.xpose.msra.mxu0 0.0
    %2069 = vmatpush.xpose.msra.mxu0 0.0
    %2070 = vmatpush.xpose.msra.mxu0 0.0
    %2071 = vmatpush.xpose.msra.mxu0 %v2054
    %2072 = vmatmul.f32.gmra.mxu0 %v2052
    %v2073 = vpop.f32.mrf.mxu0
    %v2074 = vadd.f32 0.0, %v2073
    %2075 = vdwg.mxu0
    %v2076 = vsel %vm299, %v2074, -inf
    %2077 = vmax.xlane.f32.xlu0 %v2076
    %v2078 = vpop.xlane.xlu0 %2077
    %v2079 = vsub.f32 %v2074, %v2078
    %v2080 = vmul.f32 %v2079, 1.442695
    %v2081 = vpow.pop %v2080
    %v2082 = vsel %vm299, %v2081, 0.0
    %2083 = vadd.xlane.f32.xlu0 %v2082
    %v2084 = vpop.xlane.xlu0 %2083
    %v2085 = vrcp.pop %v2084
    %v2086 = vmul.f32 %v2084, %v2085
    %v2087 = vsub.f32 1.0, %v2086
    %v2088 = vmul.f32 %v2085, %v2087
    %v2089 = vadd.f32 %v2085, %v2088
    %vm2090 = vweird.f32 %v2084
    %vm2091 = vweird.f32 %v2085
    %vm2092 = vmor %vm2090, %vm2091
    %v2093 = vsel %vm2092, %v2085, %v2089
    %v2094 = vand.u32 2147483647, %v2084
    %vm2095 = vcmp.eq.f32.partialorder %v2094, 8.507059e+37
    %v2096 = vand.u32 %v2084, 2147483648
    %v2097 = vor.u32 1.1754944e-38, %v2096
    %v2098 = vsel %vm2095, %v2097, %v2093
    %v2099 = vmul.f32 %v2081, %v2098
    %2100 = vrot.lane.b32.xlu0 %v1889, 48
    %v2101 = vpop.permute.xlu0 %2100
    %v2104 = vsel %vm299, %v2099, 0
    %2106 = vmatpush.msra.mxu0 0.0
    %2107 = vmatpush.msra.mxu0 0.0
    %2108 = vmatpush.msra.mxu0 0.0
    %2109 = vmatpush.msra.mxu0 0.0
    %2110 = vmatpush.msra.mxu0 0.0
    %2111 = vmatpush.msra.mxu0 0.0
    %2112 = vmatpush.msra.mxu0 0.0
    %2113 = vmatpush.msra.mxu0 0.0
    %2114 = vmatpush.msra.mxu0 0.0
    %2115 = vmatpush.msra.mxu0 0.0
    %2116 = vmatpush.msra.mxu0 0.0
    %2117 = vmatpush.msra.mxu0 0.0
    %2118 = vmatpush.msra.mxu0 0.0
    %2119 = vmatpush.msra.mxu0 0.0
    %2120 = vmatpush.msra.mxu0 0.0
    %2121 = vmatpush.msra.mxu0 %v2101
    %2122 = vmatmul.f32.gmra.mxu0 %v2104
    %v2123 = vpop.f32.mrf.mxu0
    %v2124 = vadd.f32 0.0, %v2123
    %2125 = vdwg.mxu0
    %2126 = vrot.lane.b32.xlu0 %v1891, 104
    %v2127 = vpop.permute.xlu0 %2126
    %2128 = vrot.lane.b32.xlu0 %v1889, 72
    %v2129 = vpop.permute.xlu0 %2128
    %v2130 = vsel %vm299, %v2127, 0
    %v2132 = vsel %vm299, %v2129, 0
    %2134 = vmatpush.xpose.msra.mxu0 0.0
    %2135 = vmatpush.xpose.msra.mxu0 0.0
    %2136 = vmatpush.xpose.msra.mxu0 0.0
    %2137 = vmatpush.xpose.msra.mxu0 0.0
    %2138 = vmatpush.xpose.msra.mxu0 0.0
    %2139 = vmatpush.xpose.msra.mxu0 0.0
    %2140 = vmatpush.xpose.msra.mxu0 0.0
    %2141 = vmatpush.xpose.msra.mxu0 0.0
    %2142 = vmatpush.xpose.msra.mxu0 0.0
    %2143 = vmatpush.xpose.msra.mxu0 0.0
    %2144 = vmatpush.xpose.msra.mxu0 0.0
    %2145 = vmatpush.xpose.msra.mxu0 0.0
    %2146 = vmatpush.xpose.msra.mxu0 0.0
    %2147 = vmatpush.xpose.msra.mxu0 0.0
    %2148 = vmatpush.xpose.msra.mxu0 0.0
    %2149 = vmatpush.xpose.msra.mxu0 %v2132
    %2150 = vmatmul.f32.gmra.mxu0 %v2130
    %v2151 = vpop.f32.mrf.mxu0
    %v2152 = vadd.f32 0.0, %v2151
    %2153 = vdwg.mxu0
    %v2154 = vsel %vm299, %v2152, -inf
    %2155 = vmax.xlane.f32.xlu0 %v2154
    %v2156 = vpop.xlane.xlu0 %2155
    %v2157 = vsub.f32 %v2152, %v2156
    %v2158 = vmul.f32 %v2157, 1.442695
    %v2159 = vpow.pop %v2158
    %v2160 = vsel %vm299, %v2159, 0.0
    %2161 = vadd.xlane.f32.xlu0 %v2160
    %v2162 = vpop.xlane.xlu0 %2161
    %v2163 = vrcp.pop %v2162
    %v2164 = vmul.f32 %v2162, %v2163
    %v2165 = vsub.f32 1.0, %v2164
    %v2166 = vmul.f32 %v2163, %v2165
    %v2167 = vadd.f32 %v2163, %v2166
    %vm2168 = vweird.f32 %v2162
    %vm2169 = vweird.f32 %v2163
    %vm2170 = vmor %vm2168, %vm2169
    %v2171 = vsel %vm2170, %v2163, %v2167
    %v2172 = vand.u32 2147483647, %v2162
    %vm2173 = vcmp.eq.f32.partialorder %v2172, 8.507059e+37
    %v2174 = vand.u32 %v2162, 2147483648
    %v2175 = vor.u32 1.1754944e-38, %v2174
    %v2176 = vsel %vm2173, %v2175, %v2171
    %v2177 = vmul.f32 %v2159, %v2176
    %2178 = vrot.lane.b32.xlu0 %v1889, 40
    %v2179 = vpop.permute.xlu0 %2178
    %v2182 = vsel %vm299, %v2177, 0
    %2184 = vmatpush.msra.mxu0 0.0
    %2185 = vmatpush.msra.mxu0 0.0
    %2186 = vmatpush.msra.mxu0 0.0
    %2187 = vmatpush.msra.mxu0 0.0
    %2188 = vmatpush.msra.mxu0 0.0
    %2189 = vmatpush.msra.mxu0 0.0
    %2190 = vmatpush.msra.mxu0 0.0
    %2191 = vmatpush.msra.mxu0 0.0
    %2192 = vmatpush.msra.mxu0 0.0
    %2193 = vmatpush.msra.mxu0 0.0
    %2194 = vmatpush.msra.mxu0 0.0
    %2195 = vmatpush.msra.mxu0 0.0
    %2196 = vmatpush.msra.mxu0 0.0
    %2197 = vmatpush.msra.mxu0 0.0
    %2198 = vmatpush.msra.mxu0 0.0
    %2199 = vmatpush.msra.mxu0 %v2179
    %2200 = vmatmul.f32.gmra.mxu0 %v2182
    %v2201 = vpop.f32.mrf.mxu0
    %v2202 = vadd.f32 0.0, %v2201
    %2203 = vdwg.mxu0
    %2205 = vrot.lane.b32.xlu0 %v2046, 8
    %v2206 = vpop.permute.xlu0 %2205
    %2209 = vrot.lane.b32.xlu0 %v2124, 16
    %v2210 = vpop.permute.xlu0 %2209
    %2213 = vrot.lane.b32.xlu0 %v2202, 24
    %v2214 = vpop.permute.xlu0 %2213
    %v2216 = vsel %vm299, %v1968, %v2206
    %v2217 = vsel %vm622, %v2216, %v2210
    %v2218 = vsel %vm624, %v2217, %v2214
    %v2220 = vsel %vm272, %v2218, 0
    %2222 = vmatpush.msra.mxu0 0.0
    %2223 = vmatpush.msra.mxu0 0.0
    %2224 = vmatpush.msra.mxu0 0.0
    %2225 = vmatpush.msra.mxu0 0.0
    %2226 = vmatpush.msra.mxu0 0.0
    %2227 = vmatpush.msra.mxu0 0.0
    %2228 = vmatpush.msra.mxu0 0.0
    %2229 = vmatpush.msra.mxu0 0.0
    %2230 = vmatpush.msra.mxu0 0.0
    %2231 = vmatpush.msra.mxu0 0.0
    %2232 = vmatpush.msra.mxu0 0.0
    %2233 = vmatpush.msra.mxu0 0.0
    %2234 = vmatpush.msra.mxu0 %v179
    %2235 = vmatpush.msra.mxu0 %v178
    %2236 = vmatpush.msra.mxu0 %v177
    %2237 = vmatpush.msra.mxu0 %v176
    %2238 = vmatmul.f32.gmra.mxu0 %v2220
    %v2239 = vpop.f32.mrf.mxu0
    %v2240 = vadd.f32 %v627, %v2239
    %2241 = vdwg.mxu0
    %v2243 = vrot.slane %v2240, 1
    %v2244 = vrot.slane %v2240, 2
    %v2245 = vrot.slane %v2240, 3
    %v2246 = vrot.slane %v2240, 4
    %v2247 = vrot.slane %v2240, 5
    %v2248 = vrot.slane %v2240, 6
    %v2249 = vrot.slane %v2240, 7
    %v2258 = vadd.f32 %v1823, %v2240
    %v2259 = vadd.f32 %v1824, %v2243
    %v2260 = vadd.f32 %v1825, %v2244
    %v2261 = vadd.f32 %v1826, %v2245
    %v2262 = vadd.f32 %v1827, %v2246
    %v2263 = vadd.f32 %v1828, %v2247
    %v2264 = vadd.f32 %v1829, %v2248
    %v2265 = vadd.f32 %v1830, %v2249
    %v2274 = vrot.slane %v2259, 7
    %v2275 = vsel %vm252, %v2274, %v2258
    %v2276 = vrot.slane %v2260, 6
    %v2277 = vsel %vm255, %v2276, %v2275
    %v2278 = vrot.slane %v2261, 5
    %v2279 = vsel %vm258, %v2278, %v2277
    %v2280 = vrot.slane %v2262, 4
    %v2281 = vsel %vm261, %v2280, %v2279
    %v2282 = vrot.slane %v2263, 3
    %v2283 = vsel %vm264, %v2282, %v2281
    %v2284 = vrot.slane %v2264, 2
    %v2285 = vsel %vm267, %v2284, %v2283
    %v2286 = vrot.slane %v2265, 1
    %v2287 = vsel %vm270, %v2286, %v2285
    %v2289 = vsel %vm272, %v2287, 0.0
    %2290 = vadd.xlane.f32.xlu0 %v2289
    %v2291 = vpop.xlane.xlu0 %2290
    %v2292 = vmul.f32 %v2291, %v708
    %v2294 = vrot.slane %v2292, 1
    %v2295 = vrot.slane %v2292, 2
    %v2296 = vrot.slane %v2292, 3
    %v2297 = vrot.slane %v2292, 4
    %v2298 = vrot.slane %v2292, 5
    %v2299 = vrot.slane %v2292, 6
    %v2300 = vrot.slane %v2292, 7
    %v2309 = vsub.f32 %v2258, %v2292
    %v2310 = vsub.f32 %v2259, %v2294
    %v2311 = vsub.f32 %v2260, %v2295
    %v2312 = vsub.f32 %v2261, %v2296
    %v2313 = vsub.f32 %v2262, %v2297
    %v2314 = vsub.f32 %v2263, %v2298
    %v2315 = vsub.f32 %v2264, %v2299
    %v2316 = vsub.f32 %v2265, %v2300
    %v2317 = vmul.f32 %v2309, %v2309
    %v2318 = vmul.f32 %v2310, %v2310
    %v2319 = vmul.f32 %v2311, %v2311
    %v2320 = vmul.f32 %v2312, %v2312
    %v2321 = vmul.f32 %v2313, %v2313
    %v2322 = vmul.f32 %v2314, %v2314
    %v2323 = vmul.f32 %v2315, %v2315
    %v2324 = vmul.f32 %v2316, %v2316
    %v2333 = vrot.slane %v2318, 7
    %v2334 = vsel %vm252, %v2333, %v2317
    %v2335 = vrot.slane %v2319, 6
    %v2336 = vsel %vm255, %v2335, %v2334
    %v2337 = vrot.slane %v2320, 5
    %v2338 = vsel %vm258, %v2337, %v2336
    %v2339 = vrot.slane %v2321, 4
    %v2340 = vsel %vm261, %v2339, %v2338
    %v2341 = vrot.slane %v2322, 3
    %v2342 = vsel %vm264, %v2341, %v2340
    %v2343 = vrot.slane %v2323, 2
    %v2344 = vsel %vm267, %v2343, %v2342
    %v2345 = vrot.slane %v2324, 1
    %v2346 = vsel %vm270, %v2345, %v2344
    %v2348 = vsel %vm272, %v2346, 0.0
    %2349 = vadd.xlane.f32.xlu0 %v2348
    %v2350 = vpop.xlane.xlu0 %2349
    %v2351 = vmul.f32 %v2350, %v708
    %v2352 = vadd.f32 %v2351, 1e-05
    %v2353 = vrsqrt.pop %v2352
    %v2354 = vmul.f32 %v2353, %v2352
    %v2355 = vmul.f32 %v2354, %v2353
    %v2356 = vmul.f32 0.5, %v2355
    %v2357 = vsub.f32 1.5, %v2356
    %v2358 = vmul.f32 %v2353, %v2357
    %vm2359 = vweird.f32 %v2352
    %vm2360 = vweird.f32 %v2353
    %vm2361 = vmor %vm2359, %vm2360
    %v2362 = vsel %vm2361, %v2353, %v2358
    %v2364 = vrot.slane %v2362, 1
    %v2365 = vrot.slane %v2362, 2
    %v2366 = vrot.slane %v2362, 3
    %v2367 = vrot.slane %v2362, 4
    %v2368 = vrot.slane %v2362, 5
    %v2369 = vrot.slane %v2362, 6
    %v2370 = vrot.slane %v2362, 7
    %v2379 = vmul.f32 %v2309, %v2362
    %v2380 = vmul.f32 %v2310, %v2364
    %v2381 = vmul.f32 %v2311, %v2365
    %v2382 = vmul.f32 %v2312, %v2366
    %v2383 = vmul.f32 %v2313, %v2367
    %v2384 = vmul.f32 %v2314, %v2368
    %v2385 = vmul.f32 %v2315, %v2369
    %v2386 = vmul.f32 %v2316, %v2370
    %v2387 = vmul.f32 %v2379, %v805
    %v2388 = vmul.f32 %v2380, %v805
    %v2389 = vmul.f32 %v2381, %v805
    %v2390 = vmul.f32 %v2382, %v805
    %v2391 = vmul.f32 %v2383, %v805
    %v2392 = vmul.f32 %v2384, %v805
    %v2393 = vmul.f32 %v2385, %v805
    %v2394 = vmul.f32 %v2386, %v805
    %v2395 = vadd.f32 %v2387, %v816
    %v2396 = vadd.f32 %v2388, %v816
    %v2397 = vadd.f32 %v2389, %v816
    %v2398 = vadd.f32 %v2390, %v816
    %v2399 = vadd.f32 %v2391, %v816
    %v2400 = vadd.f32 %v2392, %v816
    %v2401 = vadd.f32 %v2393, %v816
    %v2402 = vadd.f32 %v2394, %v816
    %v2419 = vrot.slane %v1832, 7
    %v2420 = vsel %vm252, %v2419, %v1831
    %v2421 = vrot.slane %v1833, 6
    %v2422 = vsel %vm255, %v2421, %v2420
    %v2423 = vrot.slane %v1834, 5
    %v2424 = vsel %vm258, %v2423, %v2422
    %v2425 = vrot.slane %v1835, 4
    %v2426 = vsel %vm261, %v2425, %v2424
    %v2427 = vrot.slane %v1836, 3
    %v2428 = vsel %vm264, %v2427, %v2426
    %v2429 = vrot.slane %v1837, 2
    %v2430 = vsel %vm267, %v2429, %v2428
    %v2431 = vrot.slane %v1838, 1
    %v2432 = vsel %vm270, %v2431, %v2430
    %v2433 = vrot.slane %v1840, 7
    %v2434 = vsel %vm252, %v2433, %v1839
    %v2435 = vrot.slane %v1841, 6
    %v2436 = vsel %vm255, %v2435, %v2434
    %v2437 = vrot.slane %v1842, 5
    %v2438 = vsel %vm258, %v2437, %v2436
    %v2439 = vrot.slane %v1843, 4
    %v2440 = vsel %vm261, %v2439, %v2438
    %v2441 = vrot.slane %v1844, 3
    %v2442 = vsel %vm264, %v2441, %v2440
    %v2443 = vrot.slane %v1845, 2
    %v2444 = vsel %vm267, %v2443, %v2442
    %v2445 = vrot.slane %v1846, 1
    %v2446 = vsel %vm270, %v2445, %v2444
    %v2447 = vsel %vm272, %v2432, 0
    %v2449 = vsel %vm272, %v2446, 0
    %2451 = vmatpush.msra.mxu0 0.0
    %2452 = vmatpush.msra.mxu0 0.0
    %2453 = vmatpush.msra.mxu0 0.0
    %2454 = vmatpush.msra.mxu0 0.0
    %2455 = vmatpush.msra.mxu0 0.0
    %2456 = vmatpush.msra.mxu0 0.0
    %2457 = vmatpush.msra.mxu0 0.0
    %2458 = vmatpush.msra.mxu0 0.0
    %2459 = vmatpush.msra.mxu0 0.0
    %2460 = vmatpush.msra.mxu0 0.0
    %2461 = vmatpush.msra.mxu0 0.0
    %2462 = vmatpush.msra.mxu0 0.0
    %2463 = vmatpush.msra.mxu0 %v191
    %2464 = vmatpush.msra.mxu0 %v190
    %2465 = vmatpush.msra.mxu0 %v189
    %2466 = vmatpush.msra.mxu0 %v188
    %2467 = vmatmul.f32.gmra.mxu0 %v2447
    %v2468 = vpop.f32.mrf.mxu0
    %v2469 = vadd.f32 %v827, %v2468
    %2470 = vmatmul.f32.gmra.mxu0 %v2449
    %v2471 = vpop.f32.mrf.mxu0
    %v2472 = vadd.f32 %v827, %v2471
    %2473 = vdwg.mxu0
    %v2475 = vsel %vm272, %v2469, 0
    %v2478 = vsel %vm272, %v2472, 0
    %2480 = vmatpush.xpose.msra.mxu0 0.0
    %2481 = vmatpush.xpose.msra.mxu0 0.0
    %2482 = vmatpush.xpose.msra.mxu0 0.0
    %2483 = vmatpush.xpose.msra.mxu0 0.0
    %2484 = vmatpush.xpose.msra.mxu0 0.0
    %2485 = vmatpush.xpose.msra.mxu0 0.0
    %2486 = vmatpush.xpose.msra.mxu0 0.0
    %2487 = vmatpush.xpose.msra.mxu0 0.0
    %2488 = vmatpush.xpose.msra.mxu0 0.0
    %2489 = vmatpush.xpose.msra.mxu0 0.0
    %2490 = vmatpush.xpose.msra.mxu0 0.0
    %2491 = vmatpush.xpose.msra.mxu0 0.0
    %2492 = vmatpush.xpose.msra.mxu0 0.0
    %2493 = vmatpush.xpose.msra.mxu0 0.0
    %2494 = vmatpush.xpose.msra.mxu0 %v2478
    %2495 = vmatpush.xpose.msra.mxu0 %v2475
    %2496 = vmatmul.f32.gmra.mxu0 %v901
    %v2497 = vpop.f32.mrf.mxu0
    %v2498 = vadd.f32 0.0, %v2497
    %2499 = vdwg.mxu0
    %v2500 = vmul.f32 %v2498, 0.17677669
    %v2501 = vsel %vm622, %v2500, -inf
    %2502 = vmax.xlane.f32.xlu0 %v2501
    %v2503 = vpop.xlane.xlu0 %2502
    %v2504 = vsub.f32 %v2500, %v2503
    %v2505 = vmul.f32 %v2504, 1.442695
    %v2506 = vpow.pop %v2505
    %v2507 = vsel %vm622, %v2506, 0.0
    %2508 = vadd.xlane.f32.xlu0 %v2507
    %v2509 = vpop.xlane.xlu0 %2508
    %v2510 = vrcp.pop %v2509
    %v2511 = vmul.f32 %v2509, %v2510
    %v2512 = vsub.f32 1.0, %v2511
    %v2513 = vmul.f32 %v2510, %v2512
    %v2514 = vadd.f32 %v2510, %v2513
    %vm2515 = vweird.f32 %v2509
    %vm2516 = vweird.f32 %v2510
    %vm2517 = vmor %vm2515, %vm2516
    %v2518 = vsel %vm2517, %v2510, %v2514
    %v2519 = vand.u32 2147483647, %v2509
    %vm2520 = vcmp.eq.f32.partialorder %v2519, 8.507059e+37
    %v2521 = vand.u32 %v2509, 2147483648
    %v2522 = vor.u32 1.1754944e-38, %v2521
    %v2523 = vsel %vm2520, %v2522, %v2518
    %v2524 = vmul.f32 %v2506, %v2523
    %v2526 = vsel %vm622, %v2524, 0
    %2528 = vmatpush.msra.mxu0 0.0
    %2529 = vmatpush.msra.mxu0 0.0
    %2530 = vmatpush.msra.mxu0 0.0
    %2531 = vmatpush.msra.mxu0 0.0
    %2532 = vmatpush.msra.mxu0 0.0
    %2533 = vmatpush.msra.mxu0 0.0
    %2534 = vmatpush.msra.mxu0 0.0
    %2535 = vmatpush.msra.mxu0 0.0
    %2536 = vmatpush.msra.mxu0 0.0
    %2537 = vmatpush.msra.mxu0 0.0
    %2538 = vmatpush.msra.mxu0 0.0
    %2539 = vmatpush.msra.mxu0 0.0
    %2540 = vmatpush.msra.mxu0 0.0
    %2541 = vmatpush.msra.mxu0 0.0
    %2542 = vmatpush.msra.mxu0 %v2472
    %2543 = vmatpush.msra.mxu0 %v2469
    %2544 = vmatmul.f32.gmra.mxu0 %v2526
    %v2545 = vpop.f32.mrf.mxu0
    %v2546 = vadd.f32 0.0, %v2545
    %2547 = vdwg.mxu0
    %2548 = vrot.lane.b32.xlu0 %v2469, 96
    %v2549 = vpop.permute.xlu0 %2548
    %2550 = vrot.lane.b32.xlu0 %v2472, 96
    %v2551 = vpop.permute.xlu0 %2550
    %2554 = vmatpush.msra.mxu0 0.0
    %2555 = vmatpush.msra.mxu0 0.0
    %2556 = vmatpush.msra.mxu0 0.0
    %2557 = vmatpush.msra.mxu0 0.0
    %2558 = vmatpush.msra.mxu0 0.0
    %2559 = vmatpush.msra.mxu0 0.0
    %2560 = vmatpush.msra.mxu0 0.0
    %2561 = vmatpush.msra.mxu0 0.0
    %2562 = vmatpush.msra.mxu0 0.0
    %2563 = vmatpush.msra.mxu0 0.0
    %2564 = vmatpush.msra.mxu0 0.0
    %2565 = vmatpush.msra.mxu0 0.0
    %2566 = vmatpush.msra.mxu0 0.0
    %2567 = vmatpush.msra.mxu0 0.0
    %2568 = vmatpush.msra.mxu0 %v2551
    %2569 = vmatpush.msra.mxu0 %v2549
    %2570 = vmatmul.f32.gmra.mxu0 %v2526
    %v2571 = vpop.f32.mrf.mxu0
    %v2572 = vadd.f32 0.0, %v2571
    %2573 = vdwg.mxu0
    %v2582 = vrot.slane %v2396, 7
    %v2583 = vsel %vm252, %v2582, %v2395
    %v2584 = vrot.slane %v2397, 6
    %v2585 = vsel %vm255, %v2584, %v2583
    %v2586 = vrot.slane %v2398, 5
    %v2587 = vsel %vm258, %v2586, %v2585
    %v2588 = vrot.slane %v2399, 4
    %v2589 = vsel %vm261, %v2588, %v2587
    %v2590 = vrot.slane %v2400, 3
    %v2591 = vsel %vm264, %v2590, %v2589
    %v2592 = vrot.slane %v2401, 2
    %v2593 = vsel %vm267, %v2592, %v2591
    %v2594 = vrot.slane %v2402, 1
    %v2595 = vsel %vm270, %v2594, %v2593
    %v2596 = vsel %vm272, %v2595, 0
    %2598 = vmatpush.msra.mxu0 0.0
    %2599 = vmatpush.msra.mxu0 0.0
    %2600 = vmatpush.msra.mxu0 0.0
    %2601 = vmatpush.msra.mxu0 0.0
    %2602 = vmatpush.msra.mxu0 0.0
    %2603 = vmatpush.msra.mxu0 0.0
    %2604 = vmatpush.msra.mxu0 0.0
    %2605 = vmatpush.msra.mxu0 0.0
    %2606 = vmatpush.msra.mxu0 0.0
    %2607 = vmatpush.msra.mxu0 0.0
    %2608 = vmatpush.msra.mxu0 0.0
    %2609 = vmatpush.msra.mxu0 0.0
    %2610 = vmatpush.msra.mxu0 %v186
    %2611 = vmatpush.msra.mxu0 %v185
    %2612 = vmatpush.msra.mxu0 %v184
    %2613 = vmatpush.msra.mxu0 %v183
    %2614 = vmatmul.f32.gmra.mxu0 %v2596
    %v2615 = vpop.f32.mrf.mxu0
    %v2616 = vadd.f32 %v1004, %v2615
    %2617 = vdwg.mxu0
    %v2618 = vmul.f32 %v2616, 0.35355338
    %v2620 = vsel %vm299, %v2618, 0
    %v2623 = vsel %vm299, %v2546, 0
    %2625 = vmatpush.xpose.msra.mxu0 0.0
    %2626 = vmatpush.xpose.msra.mxu0 0.0
    %2627 = vmatpush.xpose.msra.mxu0 0.0
    %2628 = vmatpush.xpose.msra.mxu0 0.0
    %2629 = vmatpush.xpose.msra.mxu0 0.0
    %2630 = vmatpush.xpose.msra.mxu0 0.0
    %2631 = vmatpush.xpose.msra.mxu0 0.0
    %2632 = vmatpush.xpose.msra.mxu0 0.0
    %2633 = vmatpush.xpose.msra.mxu0 0.0
    %2634 = vmatpush.xpose.msra.mxu0 0.0
    %2635 = vmatpush.xpose.msra.mxu0 0.0
    %2636 = vmatpush.xpose.msra.mxu0 0.0
    %2637 = vmatpush.xpose.msra.mxu0 0.0
    %2638 = vmatpush.xpose.msra.mxu0 0.0
    %2639 = vmatpush.xpose.msra.mxu0 0.0
    %2640 = vmatpush.xpose.msra.mxu0 %v2623
    %2641 = vmatmul.f32.gmra.mxu0 %v2620
    %v2642 = vpop.f32.mrf.mxu0
    %v2643 = vadd.f32 0.0, %v2642
    %2644 = vdwg.mxu0
    %v2645 = vsel %vm299, %v2643, -inf
    %2646 = vmax.xlane.f32.xlu0 %v2645
    %v2647 = vpop.xlane.xlu0 %2646
    %v2648 = vsub.f32 %v2643, %v2647
    %v2649 = vmul.f32 %v2648, 1.442695
    %v2650 = vpow.pop %v2649
    %v2651 = vsel %vm299, %v2650, 0.0
    %2652 = vadd.xlane.f32.xlu0 %v2651
    %v2653 = vpop.xlane.xlu0 %2652
    %v2654 = vrcp.pop %v2653
    %v2655 = vmul.f32 %v2653, %v2654
    %v2656 = vsub.f32 1.0, %v2655
    %v2657 = vmul.f32 %v2654, %v2656
    %v2658 = vadd.f32 %v2654, %v2657
    %vm2659 = vweird.f32 %v2653
    %vm2660 = vweird.f32 %v2654
    %vm2661 = vmor %vm2659, %vm2660
    %v2662 = vsel %vm2661, %v2654, %v2658
    %v2663 = vand.u32 2147483647, %v2653
    %vm2664 = vcmp.eq.f32.partialorder %v2663, 8.507059e+37
    %v2665 = vand.u32 %v2653, 2147483648
    %v2666 = vor.u32 1.1754944e-38, %v2665
    %v2667 = vsel %vm2664, %v2666, %v2662
    %v2668 = vmul.f32 %v2650, %v2667
    %v2670 = vsel %vm299, %v2668, 0
    %2672 = vmatpush.msra.mxu0 0.0
    %2673 = vmatpush.msra.mxu0 0.0
    %2674 = vmatpush.msra.mxu0 0.0
    %2675 = vmatpush.msra.mxu0 0.0
    %2676 = vmatpush.msra.mxu0 0.0
    %2677 = vmatpush.msra.mxu0 0.0
    %2678 = vmatpush.msra.mxu0 0.0
    %2679 = vmatpush.msra.mxu0 0.0
    %2680 = vmatpush.msra.mxu0 0.0
    %2681 = vmatpush.msra.mxu0 0.0
    %2682 = vmatpush.msra.mxu0 0.0
    %2683 = vmatpush.msra.mxu0 0.0
    %2684 = vmatpush.msra.mxu0 0.0
    %2685 = vmatpush.msra.mxu0 0.0
    %2686 = vmatpush.msra.mxu0 0.0
    %2687 = vmatpush.msra.mxu0 %v2572
    %2688 = vmatmul.f32.gmra.mxu0 %v2670
    %v2689 = vpop.f32.mrf.mxu0
    %v2690 = vadd.f32 0.0, %v2689
    %2691 = vdwg.mxu0
    %2692 = vrot.lane.b32.xlu0 %v2618, 120
    %v2693 = vpop.permute.xlu0 %2692
    %2694 = vrot.lane.b32.xlu0 %v2546, 120
    %v2695 = vpop.permute.xlu0 %2694
    %v2696 = vsel %vm299, %v2693, 0
    %v2698 = vsel %vm299, %v2695, 0
    %2700 = vmatpush.xpose.msra.mxu0 0.0
    %2701 = vmatpush.xpose.msra.mxu0 0.0
    %2702 = vmatpush.xpose.msra.mxu0 0.0
    %2703 = vmatpush.xpose.msra.mxu0 0.0
    %2704 = vmatpush.xpose.msra.mxu0 0.0
    %2705 = vmatpush.xpose.msra.mxu0 0.0
    %2706 = vmatpush.xpose.msra.mxu0 0.0
    %2707 = vmatpush.xpose.msra.mxu0 0.0
    %2708 = vmatpush.xpose.msra.mxu0 0.0
    %2709 = vmatpush.xpose.msra.mxu0 0.0
    %2710 = vmatpush.xpose.msra.mxu0 0.0
    %2711 = vmatpush.xpose.msra.mxu0 0.0
    %2712 = vmatpush.xpose.msra.mxu0 0.0
    %2713 = vmatpush.xpose.msra.mxu0 0.0
    %2714 = vmatpush.xpose.msra.mxu0 0.0
    %2715 = vmatpush.xpose.msra.mxu0 %v2698
    %2716 = vmatmul.f32.gmra.mxu0 %v2696
    %v2717 = vpop.f32.mrf.mxu0
    %v2718 = vadd.f32 0.0, %v2717
    %2719 = vdwg.mxu0
    %v2720 = vsel %vm299, %v2718, -inf
    %2721 = vmax.xlane.f32.xlu0 %v2720
    %v2722 = vpop.xlane.xlu0 %2721
    %v2723 = vsub.f32 %v2718, %v2722
    %v2724 = vmul.f32 %v2723, 1.442695
    %v2725 = vpow.pop %v2724
    %v2726 = vsel %vm299, %v2725, 0.0
    %2727 = vadd.xlane.f32.xlu0 %v2726
    %v2728 = vpop.xlane.xlu0 %2727
    %v2729 = vrcp.pop %v2728
    %v2730 = vmul.f32 %v2728, %v2729
    %v2731 = vsub.f32 1.0, %v2730
    %v2732 = vmul.f32 %v2729, %v2731
    %v2733 = vadd.f32 %v2729, %v2732
    %vm2734 = vweird.f32 %v2728
    %vm2735 = vweird.f32 %v2729
    %vm2736 = vmor %vm2734, %vm2735
    %v2737 = vsel %vm2736, %v2729, %v2733
    %v2738 = vand.u32 2147483647, %v2728
    %vm2739 = vcmp.eq.f32.partialorder %v2738, 8.507059e+37
    %v2740 = vand.u32 %v2728, 2147483648
    %v2741 = vor.u32 1.1754944e-38, %v2740
    %v2742 = vsel %vm2739, %v2741, %v2737
    %v2743 = vmul.f32 %v2725, %v2742
    %v2744 = vadd.f32 %v2668, %v2743
    %2746 = vrot.lane.b32.xlu0 %v2572, 120
    %v2747 = vpop.permute.xlu0 %2746
    %v2750 = vsel %vm299, %v2743, 0
    %2752 = vmatpush.msra.mxu0 0.0
    %2753 = vmatpush.msra.mxu0 0.0
    %2754 = vmatpush.msra.mxu0 0.0
    %2755 = vmatpush.msra.mxu0 0.0
    %2756 = vmatpush.msra.mxu0 0.0
    %2757 = vmatpush.msra.mxu0 0.0
    %2758 = vmatpush.msra.mxu0 0.0
    %2759 = vmatpush.msra.mxu0 0.0
    %2760 = vmatpush.msra.mxu0 0.0
    %2761 = vmatpush.msra.mxu0 0.0
    %2762 = vmatpush.msra.mxu0 0.0
    %2763 = vmatpush.msra.mxu0 0.0
    %2764 = vmatpush.msra.mxu0 0.0
    %2765 = vmatpush.msra.mxu0 0.0
    %2766 = vmatpush.msra.mxu0 0.0
    %2767 = vmatpush.msra.mxu0 %v2747
    %2768 = vmatmul.f32.gmra.mxu0 %v2750
    %v2769 = vpop.f32.mrf.mxu0
    %v2770 = vadd.f32 0.0, %v2769
    %2771 = vdwg.mxu0
    %2772 = vrot.lane.b32.xlu0 %v2618, 112
    %v2773 = vpop.permute.xlu0 %2772
    %2774 = vrot.lane.b32.xlu0 %v2546, 112
    %v2775 = vpop.permute.xlu0 %2774
    %v2776 = vsel %vm299, %v2773, 0
    %v2778 = vsel %vm299, %v2775, 0
    %2780 = vmatpush.xpose.msra.mxu0 0.0
    %2781 = vmatpush.xpose.msra.mxu0 0.0
    %2782 = vmatpush.xpose.msra.mxu0 0.0
    %2783 = vmatpush.xpose.msra.mxu0 0.0
    %2784 = vmatpush.xpose.msra.mxu0 0.0
    %2785 = vmatpush.xpose.msra.mxu0 0.0
    %2786 = vmatpush.xpose.msra.mxu0 0.0
    %2787 = vmatpush.xpose.msra.mxu0 0.0
    %2788 = vmatpush.xpose.msra.mxu0 0.0
    %2789 = vmatpush.xpose.msra.mxu0 0.0
    %2790 = vmatpush.xpose.msra.mxu0 0.0
    %2791 = vmatpush.xpose.msra.mxu0 0.0
    %2792 = vmatpush.xpose.msra.mxu0 0.0
    %2793 = vmatpush.xpose.msra.mxu0 0.0
    %2794 = vmatpush.xpose.msra.mxu0 0.0
    %2795 = vmatpush.xpose.msra.mxu0 %v2778
    %2796 = vmatmul.f32.gmra.mxu0 %v2776
    %v2797 = vpop.f32.mrf.mxu0
    %v2798 = vadd.f32 0.0, %v2797
    %2799 = vdwg.mxu0
    %v2800 = vsel %vm299, %v2798, -inf
    %2801 = vmax.xlane.f32.xlu0 %v2800
    %v2802 = vpop.xlane.xlu0 %2801
    %v2803 = vsub.f32 %v2798, %v2802
    %v2804 = vmul.f32 %v2803, 1.442695
    %v2805 = vpow.pop %v2804
    %v2806 = vsel %vm299, %v2805, 0.0
    %2807 = vadd.xlane.f32.xlu0 %v2806
    %v2808 = vpop.xlane.xlu0 %2807
    %v2809 = vrcp.pop %v2808
    %v2810 = vmul.f32 %v2808, %v2809
    %v2811 = vsub.f32 1.0, %v2810
    %v2812 = vmul.f32 %v2809, %v2811
    %v2813 = vadd.f32 %v2809, %v2812
    %vm2814 = vweird.f32 %v2808
    %vm2815 = vweird.f32 %v2809
    %vm2816 = vmor %vm2814, %vm2815
    %v2817 = vsel %vm2816, %v2809, %v2813
    %v2818 = vand.u32 2147483647, %v2808
    %vm2819 = vcmp.eq.f32.partialorder %v2818, 8.507059e+37
    %v2820 = vand.u32 %v2808, 2147483648
    %v2821 = vor.u32 1.1754944e-38, %v2820
    %v2822 = vsel %vm2819, %v2821, %v2817
    %v2823 = vmul.f32 %v2805, %v2822
    %v2824 = vadd.f32 %v2744, %v2823
    %2825 = vrot.lane.b32.xlu0 %v2572, 112
    %v2826 = vpop.permute.xlu0 %2825
    %v2829 = vsel %vm299, %v2823, 0
    %2831 = vmatpush.msra.mxu0 0.0
    %2832 = vmatpush.msra.mxu0 0.0
    %2833 = vmatpush.msra.mxu0 0.0
    %2834 = vmatpush.msra.mxu0 0.0
    %2835 = vmatpush.msra.mxu0 0.0
    %2836 = vmatpush.msra.mxu0 0.0
    %2837 = vmatpush.msra.mxu0 0.0
    %2838 = vmatpush.msra.mxu0 0.0
    %2839 = vmatpush.msra.mxu0 0.0
    %2840 = vmatpush.msra.mxu0 0.0
    %2841 = vmatpush.msra.mxu0 0.0
    %2842 = vmatpush.msra.mxu0 0.0
    %2843 = vmatpush.msra.mxu0 0.0
    %2844 = vmatpush.msra.mxu0 0.0
    %2845 = vmatpush.msra.mxu0 0.0
    %2846 = vmatpush.msra.mxu0 %v2826
    %2847 = vmatmul.f32.gmra.mxu0 %v2829
    %v2848 = vpop.f32.mrf.mxu0
    %v2849 = vadd.f32 0.0, %v2848
    %2850 = vdwg.mxu0
    %2851 = vrot.lane.b32.xlu0 %v2618, 104
    %v2852 = vpop.permute.xlu0 %2851
    %2853 = vrot.lane.b32.xlu0 %v2546, 104
    %v2854 = vpop.permute.xlu0 %2853
    %v2855 = vsel %vm299, %v2852, 0
    %v2857 = vsel %vm299, %v2854, 0
    %2859 = vmatpush.xpose.msra.mxu0 0.0
    %2860 = vmatpush.xpose.msra.mxu0 0.0
    %2861 = vmatpush.xpose.msra.mxu0 0.0
    %2862 = vmatpush.xpose.msra.mxu0 0.0
    %2863 = vmatpush.xpose.msra.mxu0 0.0
    %2864 = vmatpush.xpose.msra.mxu0 0.0
    %2865 = vmatpush.xpose.msra.mxu0 0.0
    %2866 = vmatpush.xpose.msra.mxu0 0.0
    %2867 = vmatpush.xpose.msra.mxu0 0.0
    %2868 = vmatpush.xpose.msra.mxu0 0.0
    %2869 = vmatpush.xpose.msra.mxu0 0.0
    %2870 = vmatpush.xpose.msra.mxu0 0.0
    %2871 = vmatpush.xpose.msra.mxu0 0.0
    %2872 = vmatpush.xpose.msra.mxu0 0.0
    %2873 = vmatpush.xpose.msra.mxu0 0.0
    %2874 = vmatpush.xpose.msra.mxu0 %v2857
    %2875 = vmatmul.f32.gmra.mxu0 %v2855
    %v2876 = vpop.f32.mrf.mxu0
    %v2877 = vadd.f32 0.0, %v2876
    %2878 = vdwg.mxu0
    %v2879 = vsel %vm299, %v2877, -inf
    %2880 = vmax.xlane.f32.xlu0 %v2879
    %v2881 = vpop.xlane.xlu0 %2880
    %v2882 = vsub.f32 %v2877, %v2881
    %v2883 = vmul.f32 %v2882, 1.442695
    %v2884 = vpow.pop %v2883
    %v2885 = vsel %vm299, %v2884, 0.0
    %2886 = vadd.xlane.f32.xlu0 %v2885
    %v2887 = vpop.xlane.xlu0 %2886
    %v2888 = vrcp.pop %v2887
    %v2889 = vmul.f32 %v2887, %v2888
    %v2890 = vsub.f32 1.0, %v2889
    %v2891 = vmul.f32 %v2888, %v2890
    %v2892 = vadd.f32 %v2888, %v2891
    %vm2893 = vweird.f32 %v2887
    %vm2894 = vweird.f32 %v2888
    %vm2895 = vmor %vm2893, %vm2894
    %v2896 = vsel %vm2895, %v2888, %v2892
    %v2897 = vand.u32 2147483647, %v2887
    %vm2898 = vcmp.eq.f32.partialorder %v2897, 8.507059e+37
    %v2899 = vand.u32 %v2887, 2147483648
    %v2900 = vor.u32 1.1754944e-38, %v2899
    %v2901 = vsel %vm2898, %v2900, %v2896
    %v2902 = vmul.f32 %v2884, %v2901
    %v2903 = vadd.f32 %v2824, %v2902
    %2904 = vrot.lane.b32.xlu0 %v2572, 104
    %v2905 = vpop.permute.xlu0 %2904
    %v2908 = vsel %vm299, %v2902, 0
    %2910 = vmatpush.msra.mxu0 0.0
    %2911 = vmatpush.msra.mxu0 0.0
    %2912 = vmatpush.msra.mxu0 0.0
    %2913 = vmatpush.msra.mxu0 0.0
    %2914 = vmatpush.msra.mxu0 0.0
    %2915 = vmatpush.msra.mxu0 0.0
    %2916 = vmatpush.msra.mxu0 0.0
    %2917 = vmatpush.msra.mxu0 0.0
    %2918 = vmatpush.msra.mxu0 0.0
    %2919 = vmatpush.msra.mxu0 0.0
    %2920 = vmatpush.msra.mxu0 0.0
    %2921 = vmatpush.msra.mxu0 0.0
    %2922 = vmatpush.msra.mxu0 0.0
    %2923 = vmatpush.msra.mxu0 0.0
    %2924 = vmatpush.msra.mxu0 0.0
    %2925 = vmatpush.msra.mxu0 %v2905
    %2926 = vmatmul.f32.gmra.mxu0 %v2908
    %v2927 = vpop.f32.mrf.mxu0
    %v2928 = vadd.f32 0.0, %v2927
    %2929 = vdwg.mxu0
    %2931 = vrot.lane.b32.xlu0 %v2770, 8
    %v2932 = vpop.permute.xlu0 %2931
    %2935 = vrot.lane.b32.xlu0 %v2849, 16
    %v2936 = vpop.permute.xlu0 %2935
    %2939 = vrot.lane.b32.xlu0 %v2928, 24
    %v2940 = vpop.permute.xlu0 %2939
    %v2942 = vsel %vm299, %v2690, %v2932
    %v2943 = vsel %vm622, %v2942, %v2936
    %v2944 = vsel %vm624, %v2943, %v2940
    %v2945 = vmul.f32 %v2903, 0.25
    %v2947 = vsel %vm272, %v2944, 0
    %2949 = vmatpush.msra.mxu0 0.0
    %2950 = vmatpush.msra.mxu0 0.0
    %2951 = vmatpush.msra.mxu0 0.0
    %2952 = vmatpush.msra.mxu0 0.0
    %2953 = vmatpush.msra.mxu0 0.0
    %2954 = vmatpush.msra.mxu0 0.0
    %2955 = vmatpush.msra.mxu0 0.0
    %2956 = vmatpush.msra.mxu0 0.0
    %2957 = vmatpush.msra.mxu0 0.0
    %2958 = vmatpush.msra.mxu0 0.0
    %2959 = vmatpush.msra.mxu0 0.0
    %2960 = vmatpush.msra.mxu0 0.0
    %2961 = vmatpush.msra.mxu0 %v196
    %2962 = vmatpush.msra.mxu0 %v195
    %2963 = vmatpush.msra.mxu0 %v194
    %2964 = vmatpush.msra.mxu0 %v193
    %2965 = vmatmul.f32.gmra.mxu0 %v2947
    %v2966 = vpop.f32.mrf.mxu0
    %v2967 = vadd.f32 %v1379, %v2966
    %2968 = vdwg.mxu0
    %v2970 = vrot.slane %v2967, 1
    %v2971 = vrot.slane %v2967, 2
    %v2972 = vrot.slane %v2967, 3
    %v2973 = vrot.slane %v2967, 4
    %v2974 = vrot.slane %v2967, 5
    %v2975 = vrot.slane %v2967, 6
    %v2976 = vrot.slane %v2967, 7
    %v2985 = vadd.f32 %v2395, %v2967
    %v2986 = vadd.f32 %v2396, %v2970
    %v2987 = vadd.f32 %v2397, %v2971
    %v2988 = vadd.f32 %v2398, %v2972
    %v2989 = vadd.f32 %v2399, %v2973
    %v2990 = vadd.f32 %v2400, %v2974
    %v2991 = vadd.f32 %v2401, %v2975
    %v2992 = vadd.f32 %v2402, %v2976
    %v3001 = vrot.slane %v2986, 7
    %v3002 = vsel %vm252, %v3001, %v2985
    %v3003 = vrot.slane %v2987, 6
    %v3004 = vsel %vm255, %v3003, %v3002
    %v3005 = vrot.slane %v2988, 5
    %v3006 = vsel %vm258, %v3005, %v3004
    %v3007 = vrot.slane %v2989, 4
    %v3008 = vsel %vm261, %v3007, %v3006
    %v3009 = vrot.slane %v2990, 3
    %v3010 = vsel %vm264, %v3009, %v3008
    %v3011 = vrot.slane %v2991, 2
    %v3012 = vsel %vm267, %v3011, %v3010
    %v3013 = vrot.slane %v2992, 1
    %v3014 = vsel %vm270, %v3013, %v3012
    %v3016 = vsel %vm272, %v3014, 0.0
    %3017 = vadd.xlane.f32.xlu0 %v3016
    %v3018 = vpop.xlane.xlu0 %3017
    %v3019 = vmul.f32 %v3018, %v708
    %v3021 = vrot.slane %v3019, 1
    %v3022 = vrot.slane %v3019, 2
    %v3023 = vrot.slane %v3019, 3
    %v3024 = vrot.slane %v3019, 4
    %v3025 = vrot.slane %v3019, 5
    %v3026 = vrot.slane %v3019, 6
    %v3027 = vrot.slane %v3019, 7
    %v3036 = vsub.f32 %v2985, %v3019
    %v3037 = vsub.f32 %v2986, %v3021
    %v3038 = vsub.f32 %v2987, %v3022
    %v3039 = vsub.f32 %v2988, %v3023
    %v3040 = vsub.f32 %v2989, %v3024
    %v3041 = vsub.f32 %v2990, %v3025
    %v3042 = vsub.f32 %v2991, %v3026
    %v3043 = vsub.f32 %v2992, %v3027
    %v3044 = vmul.f32 %v3036, %v3036
    %v3045 = vmul.f32 %v3037, %v3037
    %v3046 = vmul.f32 %v3038, %v3038
    %v3047 = vmul.f32 %v3039, %v3039
    %v3048 = vmul.f32 %v3040, %v3040
    %v3049 = vmul.f32 %v3041, %v3041
    %v3050 = vmul.f32 %v3042, %v3042
    %v3051 = vmul.f32 %v3043, %v3043
    %v3060 = vrot.slane %v3045, 7
    %v3061 = vsel %vm252, %v3060, %v3044
    %v3062 = vrot.slane %v3046, 6
    %v3063 = vsel %vm255, %v3062, %v3061
    %v3064 = vrot.slane %v3047, 5
    %v3065 = vsel %vm258, %v3064, %v3063
    %v3066 = vrot.slane %v3048, 4
    %v3067 = vsel %vm261, %v3066, %v3065
    %v3068 = vrot.slane %v3049, 3
    %v3069 = vsel %vm264, %v3068, %v3067
    %v3070 = vrot.slane %v3050, 2
    %v3071 = vsel %vm267, %v3070, %v3069
    %v3072 = vrot.slane %v3051, 1
    %v3073 = vsel %vm270, %v3072, %v3071
    %v3075 = vsel %vm272, %v3073, 0.0
    %3076 = vadd.xlane.f32.xlu0 %v3075
    %v3077 = vpop.xlane.xlu0 %3076
    %v3078 = vmul.f32 %v3077, %v708
    %v3079 = vadd.f32 %v3078, 1e-05
    %v3080 = vrsqrt.pop %v3079
    %v3081 = vmul.f32 %v3080, %v3079
    %v3082 = vmul.f32 %v3081, %v3080
    %v3083 = vmul.f32 0.5, %v3082
    %v3084 = vsub.f32 1.5, %v3083
    %v3085 = vmul.f32 %v3080, %v3084
    %vm3086 = vweird.f32 %v3079
    %vm3087 = vweird.f32 %v3080
    %vm3088 = vmor %vm3086, %vm3087
    %v3089 = vsel %vm3088, %v3080, %v3085
    %v3091 = vrot.slane %v3089, 1
    %v3092 = vrot.slane %v3089, 2
    %v3093 = vrot.slane %v3089, 3
    %v3094 = vrot.slane %v3089, 4
    %v3095 = vrot.slane %v3089, 5
    %v3096 = vrot.slane %v3089, 6
    %v3097 = vrot.slane %v3089, 7
    %v3106 = vmul.f32 %v3036, %v3089
    %v3107 = vmul.f32 %v3037, %v3091
    %v3108 = vmul.f32 %v3038, %v3092
    %v3109 = vmul.f32 %v3039, %v3093
    %v3110 = vmul.f32 %v3040, %v3094
    %v3111 = vmul.f32 %v3041, %v3095
    %v3112 = vmul.f32 %v3042, %v3096
    %v3113 = vmul.f32 %v3043, %v3097
    %v3114 = vmul.f32 %v3106, %v1550
    %v3115 = vmul.f32 %v3107, %v1550
    %v3116 = vmul.f32 %v3108, %v1550
    %v3117 = vmul.f32 %v3109, %v1550
    %v3118 = vmul.f32 %v3110, %v1550
    %v3119 = vmul.f32 %v3111, %v1550
    %v3120 = vmul.f32 %v3112, %v1550
    %v3121 = vmul.f32 %v3113, %v1550
    %v3122 = vadd.f32 %v3114, %v1561
    %v3123 = vadd.f32 %v3115, %v1561
    %v3124 = vadd.f32 %v3116, %v1561
    %v3125 = vadd.f32 %v3117, %v1561
    %v3126 = vadd.f32 %v3118, %v1561
    %v3127 = vadd.f32 %v3119, %v1561
    %v3128 = vadd.f32 %v3120, %v1561
    %v3129 = vadd.f32 %v3121, %v1561
    %s3130 = scalar_lea.vmem [#allocation14], 8
    %3131 = vst.msk [vmem:[%s3130] sm:$0xff] %vm299, %v2945
    %v3140 = vrot.slane %v3123, 7
    %v3141 = vsel %vm252, %v3140, %v3122
    %v3142 = vrot.slane %v3124, 6
    %v3143 = vsel %vm255, %v3142, %v3141
    %v3144 = vrot.slane %v3125, 5
    %v3145 = vsel %vm258, %v3144, %v3143
    %v3146 = vrot.slane %v3126, 4
    %v3147 = vsel %vm261, %v3146, %v3145
    %v3148 = vrot.slane %v3127, 3
    %v3149 = vsel %vm264, %v3148, %v3147
    %v3150 = vrot.slane %v3128, 2
    %v3151 = vsel %vm267, %v3150, %v3149
    %v3152 = vrot.slane %v3129, 1
    %v3153 = vsel %vm270, %v3152, %v3151
    %v3154 = vsel %vm272, %v3153, 0
    %3156 = vmatpush.msra.mxu0 0.0
    %3157 = vmatpush.msra.mxu0 0.0
    %3158 = vmatpush.msra.mxu0 0.0
    %3159 = vmatpush.msra.mxu0 0.0
    %3160 = vmatpush.msra.mxu0 0.0
    %3161 = vmatpush.msra.mxu0 0.0
    %3162 = vmatpush.msra.mxu0 0.0
    %3163 = vmatpush.msra.mxu0 0.0
    %3164 = vmatpush.msra.mxu0 0.0
    %3165 = vmatpush.msra.mxu0 0.0
    %3166 = vmatpush.msra.mxu0 0.0
    %3167 = vmatpush.msra.mxu0 0.0
    %3168 = vmatpush.msra.mxu0 %v203
    %3169 = vmatpush.msra.mxu0 %v202
    %3170 = vmatpush.msra.mxu0 %v201
    %3171 = vmatpush.msra.mxu0 %v200
    %3172 = vmatmul.f32.gmra.mxu0 %v3154
    %v3173 = vpop.f32.mrf.mxu0
    %v3174 = vadd.f32 %v1573, %v3173
    %3175 = vdwg.mxu0
    %v3176 = vmax.f32 %v3174, 0.0
    %v3178 = vsel %vm1623, %v3176, 0
    %3180 = vmatpush.msra.mxu0 0.0
    %3181 = vmatpush.msra.mxu0 0.0
    %3182 = vmatpush.msra.mxu0 0.0
    %3183 = vmatpush.msra.mxu0 0.0
    %3184 = vmatpush.msra.mxu0 0.0
    %3185 = vmatpush.msra.mxu0 0.0
    %3186 = vmatpush.msra.mxu0 0.0
    %3187 = vmatpush.msra.mxu0 0.0
    %3188 = vmatpush.msra.mxu0 %v212
    %3189 = vmatpush.msra.mxu0 %v211
    %3190 = vmatpush.msra.mxu0 %v210
    %3191 = vmatpush.msra.mxu0 %v209
    %3192 = vmatpush.msra.mxu0 %v208
    %3193 = vmatpush.msra.mxu0 %v207
    %3194 = vmatpush.msra.mxu0 %v206
    %3195 = vmatpush.msra.mxu0 %v205
    %3196 = vmatmul.f32.gmra.mxu0 %v3178
    %v3197 = vpop.f32.mrf.mxu0
    %v3198 = vadd.f32 %v1621, %v3197
    %3199 = vdwg.mxu0
    %v3201 = vrot.slane %v3198, 1
    %v3202 = vrot.slane %v3198, 2
    %v3203 = vrot.slane %v3198, 3
    %v3204 = vrot.slane %v3198, 4
    %v3205 = vrot.slane %v3198, 5
    %v3206 = vrot.slane %v3198, 6
    %v3207 = vrot.slane %v3198, 7
    %v3216 = vadd.f32 %v3122, %v3198
    %v3217 = vadd.f32 %v3123, %v3201
    %v3218 = vadd.f32 %v3124, %v3202
    %v3219 = vadd.f32 %v3125, %v3203
    %v3220 = vadd.f32 %v3126, %v3204
    %v3221 = vadd.f32 %v3127, %v3205
    %v3222 = vadd.f32 %v3128, %v3206
    %v3223 = vadd.f32 %v3129, %v3207
    %v3232 = vrot.slane %v3217, 7
    %v3233 = vsel %vm252, %v3232, %v3216
    %v3234 = vrot.slane %v3218, 6
    %v3235 = vsel %vm255, %v3234, %v3233
    %v3236 = vrot.slane %v3219, 5
    %v3237 = vsel %vm258, %v3236, %v3235
    %v3238 = vrot.slane %v3220, 4
    %v3239 = vsel %vm261, %v3238, %v3237
    %v3240 = vrot.slane %v3221, 3
    %v3241 = vsel %vm264, %v3240, %v3239
    %v3242 = vrot.slane %v3222, 2
    %v3243 = vsel %vm267, %v3242, %v3241
    %v3244 = vrot.slane %v3223, 1
    %v3245 = vsel %vm270, %v3244, %v3243
    %v3247 = vsel %vm272, %v3245, 0.0
    %3248 = vadd.xlane.f32.xlu0 %v3247
    %v3249 = vpop.xlane.xlu0 %3248
    %v3250 = vmul.f32 %v3249, %v708
    %v3252 = vrot.slane %v3250, 1
    %v3253 = vrot.slane %v3250, 2
    %v3254 = vrot.slane %v3250, 3
    %v3255 = vrot.slane %v3250, 4
    %v3256 = vrot.slane %v3250, 5
    %v3257 = vrot.slane %v3250, 6
    %v3258 = vrot.slane %v3250, 7
    %v3267 = vsub.f32 %v3216, %v3250
    %v3268 = vsub.f32 %v3217, %v3252
    %v3269 = vsub.f32 %v3218, %v3253
    %v3270 = vsub.f32 %v3219, %v3254
    %v3271 = vsub.f32 %v3220, %v3255
    %v3272 = vsub.f32 %v3221, %v3256
    %v3273 = vsub.f32 %v3222, %v3257
    %v3274 = vsub.f32 %v3223, %v3258
    %v3275 = vmul.f32 %v3267, %v3267
    %v3276 = vmul.f32 %v3268, %v3268
    %v3277 = vmul.f32 %v3269, %v3269
    %v3278 = vmul.f32 %v3270, %v3270
    %v3279 = vmul.f32 %v3271, %v3271
    %v3280 = vmul.f32 %v3272, %v3272
    %v3281 = vmul.f32 %v3273, %v3273
    %v3282 = vmul.f32 %v3274, %v3274
    %v3291 = vrot.slane %v3276, 7
    %v3292 = vsel %vm252, %v3291, %v3275
    %v3293 = vrot.slane %v3277, 6
    %v3294 = vsel %vm255, %v3293, %v3292
    %v3295 = vrot.slane %v3278, 5
    %v3296 = vsel %vm258, %v3295, %v3294
    %v3297 = vrot.slane %v3279, 4
    %v3298 = vsel %vm261, %v3297, %v3296
    %v3299 = vrot.slane %v3280, 3
    %v3300 = vsel %vm264, %v3299, %v3298
    %v3301 = vrot.slane %v3281, 2
    %v3302 = vsel %vm267, %v3301, %v3300
    %v3303 = vrot.slane %v3282, 1
    %v3304 = vsel %vm270, %v3303, %v3302
    %v3306 = vsel %vm272, %v3304, 0.0
    %3307 = vadd.xlane.f32.xlu0 %v3306
    %v3308 = vpop.xlane.xlu0 %3307
    %v3309 = vmul.f32 %v3308, %v708
    %v3310 = vadd.f32 %v3309, 1e-05
    %v3311 = vrsqrt.pop %v3310
    %v3312 = vmul.f32 %v3311, %v3310
    %v3313 = vmul.f32 %v3312, %v3311
    %v3314 = vmul.f32 0.5, %v3313
    %v3315 = vsub.f32 1.5, %v3314
    %v3316 = vmul.f32 %v3311, %v3315
    %vm3317 = vweird.f32 %v3310
    %vm3318 = vweird.f32 %v3311
    %vm3319 = vmor %vm3317, %vm3318
    %v3320 = vsel %vm3319, %v3311, %v3316
    %v3322 = vrot.slane %v3320, 1
    %v3323 = vrot.slane %v3320, 2
    %v3324 = vrot.slane %v3320, 3
    %v3325 = vrot.slane %v3320, 4
    %v3326 = vrot.slane %v3320, 5
    %v3327 = vrot.slane %v3320, 6
    %v3328 = vrot.slane %v3320, 7
    %v3337 = vmul.f32 %v3267, %v3320
    %v3338 = vmul.f32 %v3268, %v3322
    %v3339 = vmul.f32 %v3269, %v3323
    %v3340 = vmul.f32 %v3270, %v3324
    %v3341 = vmul.f32 %v3271, %v3325
    %v3342 = vmul.f32 %v3272, %v3326
    %v3343 = vmul.f32 %v3273, %v3327
    %v3344 = vmul.f32 %v3274, %v3328
    %v3345 = vmul.f32 %v3337, %v1793
    %v3346 = vmul.f32 %v3338, %v1793
    %v3347 = vmul.f32 %v3339, %v1793
    %v3348 = vmul.f32 %v3340, %v1793
    %v3349 = vmul.f32 %v3341, %v1793
    %v3350 = vmul.f32 %v3342, %v1793
    %v3351 = vmul.f32 %v3343, %v1793
    %v3352 = vmul.f32 %v3344, %v1793
    %v3353 = vadd.f32 %v3345, %v1804
    %v3354 = vadd.f32 %v3346, %v1804
    %v3355 = vadd.f32 %v3347, %v1804
    %v3356 = vadd.f32 %v3348, %v1804
    %v3357 = vadd.f32 %v3349, %v1804
    %v3358 = vadd.f32 %v3350, %v1804
    %v3359 = vadd.f32 %v3351, %v1804
    %v3360 = vadd.f32 %v3352, %v1804
    %3361 = vst.msk [vmem:[#allocation13 + $0x1] sm:$0x1] %vm1814, %v3353
    %3362 = vst.msk [vmem:[#allocation13 + $0x3] sm:$0x1] %vm1814, %v3354
    %3363 = vst.msk [vmem:[#allocation13 + $0x5] sm:$0x1] %vm1814, %v3355
    %3364 = vst.msk [vmem:[#allocation13 + $0x7] sm:$0x1] %vm1814, %v3356
    %3365 = vst.msk [vmem:[#allocation13 + $0x9] sm:$0x1] %vm1814, %v3357
    %3366 = vst.msk [vmem:[#allocation13 + $0xb] sm:$0x1] %vm1814, %v3358
    %3367 = vst.msk [vmem:[#allocation13 + $0xd] sm:$0x1] %vm1814, %v3359
    %3368 = vst.msk [vmem:[#allocation13 + $0xf] sm:$0x1] %vm1814, %v3360
    // Predicated region
    $region118: #{tpu_custom_call.1} parent=1 // pred_check
      _
    $region119: #{tpu_custom_call.1} parent=1 // pred_check_branch
      %3370 = sbr.rel (0) target = $region121
    $region120: #{tpu_custom_call.1} parent=1 // pred_region
      %3372 = vsyncadd [#allocation4], 0
      %s3373 = sshll.u32 [#allocation13], 4
      %s3374 = int_to_ptr.vmem [resolvable:$true] %s3373
      %s3375 = sshll.u32 %s23, 4
      %s3376 = int_to_ptr.hbm [resolvable:$true] %s3375
      %3381 = dma.vmem_to_hbm [thread:$0]  %s3374, 256, %s3376, [#allocation4], 32, 32, 2
    $region121: #{tpu_custom_call.1} parent=1 // pred_fallthru
      _
    // Predicated region
    $region122: #{tpu_custom_call.1} parent=1 // pred_check
      _
    $region123: #{tpu_custom_call.1} parent=1 // pred_check_branch
      %3383 = sbr.rel (0) target = $region125
    $region124: #{tpu_custom_call.1} parent=1 // pred_region
      %3385 = vsyncadd [#allocation15], 0
      %s3386 = sshll.u32 [#allocation14], 4
      %s3387 = int_to_ptr.vmem [resolvable:$true] %s3386
      %s3388 = sshll.u32 %s24, 4
      %s3389 = int_to_ptr.hbm [resolvable:$true] %s3388
      %3394 = dma.vmem_to_hbm [thread:$0]  %s3387, 256, %s3389, [#allocation15], 128, 128, 8
    $region125: #{tpu_custom_call.1} parent=1 // pred_fallthru
      _
    // Predicated region
    $region126: #{tpu_custom_call.1} parent=1 // pred_check
      _
    $region127: #{tpu_custom_call.1} parent=1 // pred_check_branch
      %3396 = sbr.rel (0) target = $region129
    $region128: #{tpu_custom_call.1} parent=1 // pred_region
      %3398 = dma.done [#allocation4], 256
    $region129: #{tpu_custom_call.1} parent=1 // pred_fallthru
      _
    // Predicated region
    $region130: #{tpu_custom_call.1} parent=1 // pred_check
      _
    $region131: #{tpu_custom_call.1} parent=1 // pred_check_branch
      %3400 = sbr.rel (0) target = $region133
    $region132: #{tpu_custom_call.1} parent=1 // pred_region
      %3402 = dma.done [#allocation15], 256
    $region133: #{tpu_custom_call.1} parent=1 // pred_fallthru
      _
    %3403 = vsyncpa [#allocation3], 1
    %3404 = vsyncpa [#allocation6], 1
    %3405 = vsyncpa [#allocation9], 1
    %3406 = vsyncpa [#allocation12], 1
    %3407 = vsyncpa [#allocation4], 1
    %3408 = vsyncpa [#allocation15], 1

</llo_original>
